<compile_context>
chip_gen: v7x
topology: tpu7x:2x2x1
jax: 0.10.0
libtpu: 0.0.40
codegen_flags: <defaults>
</compile_context>

<pallas_src>
import functools

import jax
import jax.numpy as jnp
from jax.experimental import pallas as pl
from jax.experimental.pallas import tpu as pltpu


def _round_up(n, m):
    return ((n + m - 1) // m) * m


def _lstm_recurrent_kernel(gx_ref, bias_ref, whh_ref, out_ref, h_ref, c_ref):
    """Sequential LSTM recurrence over one chunk of Tc timesteps.

    gx_ref : (Tc, Bs, 4*Hp) bf16 precomputed x_t @ W_ih^T (gate-padded, no bias)
    bias_ref: (1, 4*Hp)     f32  b_ih + b_hh (gate-padded)
    whh_ref: (Hp, 4*Hp)     bf16 recurrent weights (gate-padded, single-buffered)
    out_ref: (Tc, Bs, Hp)        hidden states for this chunk
    h_ref, c_ref: (Bs, Hp)  f32  persistent recurrent state (VMEM scratch)
    """
    # Grid is (batch_shard, time_chunk); reset state whenever the time axis
    # restarts (i.e. at the first chunk of each batch shard).
    @pl.when(pl.program_id(1) == 0)
    def _():
        h_ref[...] = jnp.zeros_like(h_ref)
        c_ref[...] = jnp.zeros_like(c_ref)

    hp = h_ref.shape[1]
    tc = out_ref.shape[0]

    def sigmoid(x):
        # One EUP op (tanh) instead of exp + reciprocal on the serial path.
        return 0.5 * (jnp.tanh(0.5 * x) + 1.0)

    def step(t, carry):
        h = h_ref[...]
        c = c_ref[...]
        # Single MXU matmul per timestep; W_hh is read from VMEM each step
        # (not pinned in vregs) to avoid spilling gate/activation registers.
        gates = (
            jnp.dot(h.astype(jnp.bfloat16), whh_ref[...],
                    preferred_element_type=jnp.float32)
            + gx_ref[t].astype(jnp.float32)
            + bias_ref[...]
        )  # (Bs, 4*Hp) f32, PyTorch gate order i, f, g, o

        # Gate slices are 128-lane aligned -> free views, no cross-lane work.
        i_g = sigmoid(gates[:, 0 * hp:1 * hp])
        f_g = sigmoid(gates[:, 1 * hp:2 * hp])
        g_g = jnp.tanh(gates[:, 2 * hp:3 * hp])
        o_g = sigmoid(gates[:, 3 * hp:4 * hp])

        c_new = f_g * c + i_g * g_g
        h_new = o_g * jnp.tanh(c_new)

        c_ref[...] = c_new
        h_ref[...] = h_new
        out_ref[t] = h_new.astype(out_ref.dtype)
        return carry

    # Partial unroll: keeps LLO scheduler visibility without exploding vreg
    # live ranges when Tc is large.
    jax.lax.fori_loop(0, tc, step, 0, unroll=min(tc, 8))


@functools.partial(jax.jit, static_argnames=("time_chunk",))
def encoder_forward(x, w_ih, w_hh, b_ih, b_hh, *, time_chunk=32):
    """nn.LSTM forward (returns encoded_sequence only, like the module).

    x:    (T, B, D) f32
    w_ih: (4H, D)   f32  (PyTorch layout)
    w_hh: (4H, H)   f32
    b_ih, b_hh: (4H,) f32
    """
    T, B, D = x.shape
    H = w_hh.shape[1]
    f32, bf16 = jnp.float32, jnp.bfloat16

    # ---- padding / layout ---------------------------------------------------
    Hp = _round_up(H, 128)              # each gate occupies whole 128-lane tiles

    # Batch: multiple of 16 (bf16 LHS sublane packing); shard across 2 grid
    # blocks (megacore on v7x) when large enough that each shard stays >= 16.
    Bp = _round_up(max(B, 16), 16)
    if Bp >= 32:
        num_b_shards = 2
        Bp = _round_up(Bp, 32)
    else:
        num_b_shards = 1
    Bs = Bp // num_b_shards

    # Time chunk: prefer the largest divisor of T <= time_chunk (no wasted
    # serial padded steps); fall back to padding only if divisors are tiny.
    Tc = max(1, min(time_chunk, T))
    best = 1
    for cand in range(Tc, 0, -1):
        if T % cand == 0:
            best = cand
            break
    if best >= max(Tc // 2, 1):
        Tc = best
        Tp = T
    else:
        Tp = _round_up(T, Tc)

    wih_t = w_ih.T.astype(f32)          # (D, 4H)
    whh_t = w_hh.T.astype(f32)          # (H, 4H)
    bias = (b_ih + b_hh).astype(f32)    # (4H,)

    # Gate-padded weights/bias: gate g lives in columns [g*Hp, g*Hp + H).
    wih_pad = jnp.zeros((D, 4 * Hp), f32)
    whh_pad = jnp.zeros((Hp, 4 * Hp), f32)
    bias_pad = jnp.zeros((4 * Hp,), f32)
    for g in range(4):
        wih_pad = wih_pad.at[:, g * Hp:g * Hp + H].set(wih_t[:, g * H:(g + 1) * H])
        whh_pad = whh_pad.at[:H, g * Hp:g * Hp + H].set(whh_t[:, g * H:(g + 1) * H])
        bias_pad = bias_pad.at[g * Hp:g * Hp + H].set(bias[g * H:(g + 1) * H])

    x_pad = jnp.zeros((Tp, Bp, D), x.dtype).at[:T, :B, :].set(x)

    # ---- hoisted input projection: one big bf16 MXU matmul (plain XLA) ------
    # Stored bf16 (dominant HBM stream of the recurrent kernel); f32 bias is
    # added inside the kernel instead so it is not truncated.
    gx = jnp.dot(
        x_pad.reshape(Tp * Bp, D).astype(bf16),
        wih_pad.astype(bf16),
        preferred_element_type=f32,
    ).reshape(Tp, Bp, 4 * Hp).astype(bf16)

    whh_bf16 = whh_pad.astype(bf16)
    bias_row = bias_pad.reshape(1, 4 * Hp)

    # ---- VMEM budget (double-buffered gx/out, single-buffered W_hh) ---------
    vmem_needed = (
        2 * Tc * Bs * 4 * Hp * 2        # gx blocks (bf16, double-buffered)
        + 2 * 1 * 4 * Hp * 4            # bias (f32)
        + 1 * Hp * 4 * Hp * 2           # W_hh (bf16, Buffered(1))
        + 2 * Tc * Bs * Hp * 4          # out blocks (f32, double-buffered)
        + 2 * Bs * Hp * 4               # h, c scratch (f32)
    )
    vmem_limit = int(min(max(vmem_needed + (4 << 20), 32 << 20), 64 << 20))

    # ---- recurrent kernel: grid (batch_shard, time_chunk) -------------------
    out_padded = pl.pallas_call(
        _lstm_recurrent_kernel,
        out_shape=jax.ShapeDtypeStruct((Tp, Bp, Hp), x.dtype),
        grid_spec=pltpu.PrefetchScalarGridSpec(
            num_scalar_prefetch=0,
            grid=(num_b_shards, Tp // Tc),
            in_specs=[
                pl.BlockSpec((Tc, Bs, 4 * Hp), lambda b, t: (t, b, 0)),  # gates_x
                pl.BlockSpec((1, 4 * Hp), lambda b, t: (0, 0)),          # bias
                pl.BlockSpec((Hp, 4 * Hp), lambda b, t: (0, 0),          # W_hh^T
                             pipeline_mode=pl.Buffered(1)),
            ],
            out_specs=pl.BlockSpec((Tc, Bs, Hp), lambda b, t: (t, b, 0)),
            scratch_shapes=[
                pltpu.VMEM((Bs, Hp), f32),  # h state (persists across grid steps)
                pltpu.VMEM((Bs, Hp), f32),  # c state
            ],
        ),
        compiler_params=pltpu.CompilerParams(
            # batch shards are independent (megacore); time axis is sequential.
            dimension_semantics=("parallel", "arbitrary"),
            vmem_limit_bytes=vmem_limit,
        ),
    )(gx, bias_row, whh_bf16)

    return out_padded[:T, :B, :H]


def _lstm_reference(x, w_ih, w_hh, b_ih, b_hh):
    """Pure-JAX f32 reference (lax.scan) mirroring nn.LSTM semantics."""
    T, B, D = x.shape
    H = w_hh.shape[1]
    bias = b_ih + b_hh

    def step(carry, x_t):
        h, c = carry
        gates = x_t @ w_ih.T + h @ w_hh.T + bias
        i_g = jax.nn.sigmoid(gates[:, 0 * H:1 * H])
        f_g = jax.nn.sigmoid(gates[:, 1 * H:2 * H])
        g_g = jnp.tanh(gates[:, 2 * H:3 * H])
        o_g = jax.nn.sigmoid(gates[:, 3 * H:4 * H])
        c = f_g * c + i_g * g_g
        h = o_g * jnp.tanh(c)
        return (h, c), h

    h0 = jnp.zeros((B, H), x.dtype)
    c0 = jnp.zeros((B, H), x.dtype)
    _, hs = jax.lax.scan(step, (h0, c0), x)
    return hs


if __name__ == "__main__":
    # Small shapes consistent with a (seq, batch, feature) LSTM input.
    T, B, D, H = 8, 4, 16, 32

    key = jax.random.PRNGKey(0)
    kx, k1, k2, k3, k4 = jax.random.split(key, 5)

    # Deterministic parameter init matching nn.LSTM's U(-1/sqrt(H), 1/sqrt(H)).
    bound = 1.0 / jnp.sqrt(jnp.float32(H))
    w_ih = jax.random.uniform(k1, (4 * H, D), jnp.float32, -bound, bound)
    w_hh = jax.random.uniform(k2, (4 * H, H), jnp.float32, -bound, bound)
    b_ih = jax.random.uniform(k3, (4 * H,), jnp.float32, -bound, bound)
    b_hh = jax.random.uniform(k4, (4 * H,), jnp.float32, -bound, bound)

    x = jax.random.normal(kx, (T, B, D), jnp.float32)

    out = jax.block_until_ready(encoder_forward(x, w_ih, w_hh, b_ih, b_hh))
    ref = jax.block_until_ready(_lstm_reference(x, w_ih, w_hh, b_ih, b_hh))

    assert out.shape == (T, B, H)
    # bf16 MXU inputs / bf16 gx stream -> widened tolerance vs the f32 reference.
    max_err = float(jnp.max(jnp.abs(out - ref)))
    assert jnp.allclose(out, ref, atol=5e-2, rtol=5e-2), (
        f"Pallas LSTM mismatch vs reference, max|diff|={max_err}")
    print("KERNEL_OK")
</pallas_src>

<mosaic_0001>
module attributes {stable_mosaic.version = 11 : i64} {
  func.func @_lstm_recurrent_kernel(%arg0: i32, %arg1: i32, %arg2: memref<8x16x512xbf16, #tpu.memory_space<vmem>>, %arg3: memref<1x512xf32, #tpu.memory_space<vmem>>, %arg4: memref<128x512xbf16, #tpu.memory_space<vmem>>, %arg5: memref<8x16x128xf32, #tpu.memory_space<vmem>>, %arg6: memref<16x128xf32, #tpu.memory_space<vmem>>, %arg7: memref<16x128xf32, #tpu.memory_space<vmem>>) attributes {dimension_semantics = [#tpu.dimension_semantics<parallel>, #tpu.dimension_semantics<arbitrary>], iteration_bounds = array<i64: 1, 1>, scalar_prefetch = 0 : i64, scratch_operands = 2 : i64, tpu.core_type = #tpu.core_type<tc>, window_params = [{transform_indices = @transform_0, window_bounds = array<i64: 8, 16, 512>}, {pipeline_mode = #tpu.pipeline_mode<synchronous>, transform_indices = @transform_1, window_bounds = array<i64: 1, 512>}, {pipeline_mode = #tpu.pipeline_mode<synchronous>, transform_indices = @transform_2, window_bounds = array<i64: 128, 512>}, {transform_indices = @transform_3, window_bounds = array<i64: 8, 16, 128>}]} {
    %c0_i32 = arith.constant 0 : i32
    %0 = arith.cmpi eq, %arg1, %c0_i32 : i32
    %1 = arith.extui %0 : i1 to i32
    %c0_i32_0 = arith.constant 0 : i32
    %2 = arith.cmpi ne, %1, %c0_i32_0 : i32
    scf.if %2 {
      %cst_208 = arith.constant 0.000000e+00 : f32
      %403 = vector.broadcast %cst_208 : f32 to vector<16x128xf32>
      %c0_209 = arith.constant 0 : index
      %c0_210 = arith.constant 0 : index
      %404 = vector.load %arg6[%c0_209, %c0_210] : memref<16x128xf32, #tpu.memory_space<vmem>>, vector<16x128xf32>
      tpu.vector_store %arg6[%c0_209, %c0_210], %403 {strides = array<i32>} : memref<16x128xf32, #tpu.memory_space<vmem>>, vector<16x128xf32>,
      %cst_211 = arith.constant 0.000000e+00 : f32
      %405 = vector.broadcast %cst_211 : f32 to vector<16x128xf32>
      %c0_212 = arith.constant 0 : index
      %c0_213 = arith.constant 0 : index
      %406 = vector.load %arg7[%c0_212, %c0_213] : memref<16x128xf32, #tpu.memory_space<vmem>>, vector<16x128xf32>
      tpu.vector_store %arg7[%c0_212, %c0_213], %405 {strides = array<i32>} : memref<16x128xf32, #tpu.memory_space<vmem>>, vector<16x128xf32>,
    } else {
    }
    %c0_i32_1 = arith.constant 0 : i32
    %c0 = arith.constant 0 : index
    %c0_2 = arith.constant 0 : index
    %3 = vector.load %arg6[%c0, %c0_2] : memref<16x128xf32, #tpu.memory_space<vmem>>, vector<16x128xf32>
    %c0_3 = arith.constant 0 : index
    %c0_4 = arith.constant 0 : index
    %4 = vector.load %arg7[%c0_3, %c0_4] : memref<16x128xf32, #tpu.memory_space<vmem>>, vector<16x128xf32>
    %5 = arith.truncf %3 : vector<16x128xf32> to vector<16x128xbf16>
    %c0_5 = arith.constant 0 : index
    %c0_6 = arith.constant 0 : index
    %6 = vector.load %arg4[%c0_5, %c0_6] : memref<128x512xbf16, #tpu.memory_space<vmem>>, vector<128x512xbf16>
    %cst = arith.constant dense<0.000000e+00> : vector<16x512xf32>
    %7 = tpu.matmul %5, %6, %cst {dimension_numbers = #tpu.dot_dimension_numbers<[1], [0], [0], [1], [0, 0, 1, 1], [], []>} : vector<16x128xbf16>, vector<128x512xbf16>, vector<16x512xf32> -> vector<16x512xf32>
    %8 = arith.index_cast %c0_i32_1 : i32 to index
    %c0_7 = arith.constant 0 : index
    %c0_8 = arith.constant 0 : index
    %9 = vector.load %arg2[%8, %c0_7, %c0_8] : memref<8x16x512xbf16, #tpu.memory_space<vmem>>, vector<1x16x512xbf16>
    %10 = vector.shape_cast %9 : vector<1x16x512xbf16> to vector<16x512xbf16>
    %11 = arith.extf %10 : vector<16x512xbf16> to vector<16x512xf32>
    %12 = arith.addf %7, %11 : vector<16x512xf32>
    %c0_9 = arith.constant 0 : index
    %c0_10 = arith.constant 0 : index
    %13 = vector.load %arg3[%c0_9, %c0_10] : memref<1x512xf32, #tpu.memory_space<vmem>>, vector<1x512xf32>
    %14 = vector.broadcast %13 : vector<1x512xf32> to vector<16x512xf32>
    %15 = arith.addf %12, %14 : vector<16x512xf32>
    %16 = vector.extract_strided_slice %15 {offsets = [0, 0], sizes = [16, 128], strides = [1, 1]} : vector<16x512xf32> to vector<16x128xf32>
    %cst_11 = arith.constant 5.000000e-01 : f32
    %17 = vector.broadcast %cst_11 : f32 to vector<16x128xf32>
    %18 = arith.mulf %17, %16 : vector<16x128xf32>
    %19 = math.tanh %18 : vector<16x128xf32>
    %cst_12 = arith.constant 1.000000e+00 : f32
    %20 = vector.broadcast %cst_12 : f32 to vector<16x128xf32>
    %21 = arith.addf %19, %20 : vector<16x128xf32>
    %cst_13 = arith.constant 5.000000e-01 : f32
    %22 = vector.broadcast %cst_13 : f32 to vector<16x128xf32>
    %23 = arith.mulf %22, %21 : vector<16x128xf32>
    %24 = vector.extract_strided_slice %15 {offsets = [0, 128], sizes = [16, 128], strides = [1, 1]} : vector<16x512xf32> to vector<16x128xf32>
    %cst_14 = arith.constant 5.000000e-01 : f32
    %25 = vector.broadcast %cst_14 : f32 to vector<16x128xf32>
    %26 = arith.mulf %25, %24 : vector<16x128xf32>
    %27 = math.tanh %26 : vector<16x128xf32>
    %cst_15 = arith.constant 1.000000e+00 : f32
    %28 = vector.broadcast %cst_15 : f32 to vector<16x128xf32>
    %29 = arith.addf %27, %28 : vector<16x128xf32>
    %cst_16 = arith.constant 5.000000e-01 : f32
    %30 = vector.broadcast %cst_16 : f32 to vector<16x128xf32>
    %31 = arith.mulf %30, %29 : vector<16x128xf32>
    %32 = vector.extract_strided_slice %15 {offsets = [0, 256], sizes = [16, 128], strides = [1, 1]} : vector<16x512xf32> to vector<16x128xf32>
    %33 = math.tanh %32 : vector<16x128xf32>
    %34 = vector.extract_strided_slice %15 {offsets = [0, 384], sizes = [16, 128], strides = [1, 1]} : vector<16x512xf32> to vector<16x128xf32>
    %cst_17 = arith.constant 5.000000e-01 : f32
    %35 = vector.broadcast %cst_17 : f32 to vector<16x128xf32>
    %36 = arith.mulf %35, %34 : vector<16x128xf32>
    %37 = math.tanh %36 : vector<16x128xf32>
    %cst_18 = arith.constant 1.000000e+00 : f32
    %38 = vector.broadcast %cst_18 : f32 to vector<16x128xf32>
    %39 = arith.addf %37, %38 : vector<16x128xf32>
    %cst_19 = arith.constant 5.000000e-01 : f32
    %40 = vector.broadcast %cst_19 : f32 to vector<16x128xf32>
    %41 = arith.mulf %40, %39 : vector<16x128xf32>
    %42 = arith.mulf %31, %4 : vector<16x128xf32>
    %43 = arith.mulf %23, %33 : vector<16x128xf32>
    %44 = arith.addf %42, %43 : vector<16x128xf32>
    %45 = math.tanh %44 : vector<16x128xf32>
    %46 = arith.mulf %41, %45 : vector<16x128xf32>
    %c0_20 = arith.constant 0 : index
    %c0_21 = arith.constant 0 : index
    %47 = vector.load %arg7[%c0_20, %c0_21] : memref<16x128xf32, #tpu.memory_space<vmem>>, vector<16x128xf32>
    tpu.vector_store %arg7[%c0_20, %c0_21], %44 {strides = array<i32>} : memref<16x128xf32, #tpu.memory_space<vmem>>, vector<16x128xf32>,
    %c0_22 = arith.constant 0 : index
    %c0_23 = arith.constant 0 : index
    %48 = vector.load %arg6[%c0_22, %c0_23] : memref<16x128xf32, #tpu.memory_space<vmem>>, vector<16x128xf32>
    tpu.vector_store %arg6[%c0_22, %c0_23], %46 {strides = array<i32>} : memref<16x128xf32, #tpu.memory_space<vmem>>, vector<16x128xf32>,
    %49 = arith.index_cast %c0_i32_1 : i32 to index
    %c0_24 = arith.constant 0 : index
    %c0_25 = arith.constant 0 : index
    %50 = vector.load %arg5[%49, %c0_24, %c0_25] : memref<8x16x128xf32, #tpu.memory_space<vmem>>, vector<1x16x128xf32>
    %51 = vector.shape_cast %50 : vector<1x16x128xf32> to vector<16x128xf32>
    %52 = vector.shape_cast %46 : vector<16x128xf32> to vector<1x16x128xf32>
    tpu.vector_store %arg5[%49, %c0_24, %c0_25], %52 {strides = array<i32>} : memref<8x16x128xf32, #tpu.memory_space<vmem>>, vector<1x16x128xf32>,
    %c1_i32 = arith.constant 1 : i32
    %c0_26 = arith.constant 0 : index
    %c0_27 = arith.constant 0 : index
    %53 = vector.load %arg6[%c0_26, %c0_27] : memref<16x128xf32, #tpu.memory_space<vmem>>, vector<16x128xf32>
    %c0_28 = arith.constant 0 : index
    %c0_29 = arith.constant 0 : index
    %54 = vector.load %arg7[%c0_28, %c0_29] : memref<16x128xf32, #tpu.memory_space<vmem>>, vector<16x128xf32>
    %55 = arith.truncf %53 : vector<16x128xf32> to vector<16x128xbf16>
    %c0_30 = arith.constant 0 : index
    %c0_31 = arith.constant 0 : index
    %56 = vector.load %arg4[%c0_30, %c0_31] : memref<128x512xbf16, #tpu.memory_space<vmem>>, vector<128x512xbf16>
    %cst_32 = arith.constant dense<0.000000e+00> : vector<16x512xf32>
    %57 = tpu.matmul %55, %56, %cst_32 {dimension_numbers = #tpu.dot_dimension_numbers<[1], [0], [0], [1], [0, 0, 1, 1], [], []>} : vector<16x128xbf16>, vector<128x512xbf16>, vector<16x512xf32> -> vector<16x512xf32>
    %58 = arith.index_cast %c1_i32 : i32 to index
    %c0_33 = arith.constant 0 : index
    %c0_34 = arith.constant 0 : index
    %59 = vector.load %arg2[%58, %c0_33, %c0_34] : memref<8x16x512xbf16, #tpu.memory_space<vmem>>, vector<1x16x512xbf16>
    %60 = vector.shape_cast %59 : vector<1x16x512xbf16> to vector<16x512xbf16>
    %61 = arith.extf %60 : vector<16x512xbf16> to vector<16x512xf32>
    %62 = arith.addf %57, %61 : vector<16x512xf32>
    %c0_35 = arith.constant 0 : index
    %c0_36 = arith.constant 0 : index
    %63 = vector.load %arg3[%c0_35, %c0_36] : memref<1x512xf32, #tpu.memory_space<vmem>>, vector<1x512xf32>
    %64 = vector.broadcast %63 : vector<1x512xf32> to vector<16x512xf32>
    %65 = arith.addf %62, %64 : vector<16x512xf32>
    %66 = vector.extract_strided_slice %65 {offsets = [0, 0], sizes = [16, 128], strides = [1, 1]} : vector<16x512xf32> to vector<16x128xf32>
    %cst_37 = arith.constant 5.000000e-01 : f32
    %67 = vector.broadcast %cst_37 : f32 to vector<16x128xf32>
    %68 = arith.mulf %67, %66 : vector<16x128xf32>
    %69 = math.tanh %68 : vector<16x128xf32>
    %cst_38 = arith.constant 1.000000e+00 : f32
    %70 = vector.broadcast %cst_38 : f32 to vector<16x128xf32>
    %71 = arith.addf %69, %70 : vector<16x128xf32>
    %cst_39 = arith.constant 5.000000e-01 : f32
    %72 = vector.broadcast %cst_39 : f32 to vector<16x128xf32>
    %73 = arith.mulf %72, %71 : vector<16x128xf32>
    %74 = vector.extract_strided_slice %65 {offsets = [0, 128], sizes = [16, 128], strides = [1, 1]} : vector<16x512xf32> to vector<16x128xf32>
    %cst_40 = arith.constant 5.000000e-01 : f32
    %75 = vector.broadcast %cst_40 : f32 to vector<16x128xf32>
    %76 = arith.mulf %75, %74 : vector<16x128xf32>
    %77 = math.tanh %76 : vector<16x128xf32>
    %cst_41 = arith.constant 1.000000e+00 : f32
    %78 = vector.broadcast %cst_41 : f32 to vector<16x128xf32>
    %79 = arith.addf %77, %78 : vector<16x128xf32>
    %cst_42 = arith.constant 5.000000e-01 : f32
    %80 = vector.broadcast %cst_42 : f32 to vector<16x128xf32>
    %81 = arith.mulf %80, %79 : vector<16x128xf32>
    %82 = vector.extract_strided_slice %65 {offsets = [0, 256], sizes = [16, 128], strides = [1, 1]} : vector<16x512xf32> to vector<16x128xf32>
    %83 = math.tanh %82 : vector<16x128xf32>
    %84 = vector.extract_strided_slice %65 {offsets = [0, 384], sizes = [16, 128], strides = [1, 1]} : vector<16x512xf32> to vector<16x128xf32>
    %cst_43 = arith.constant 5.000000e-01 : f32
    %85 = vector.broadcast %cst_43 : f32 to vector<16x128xf32>
    %86 = arith.mulf %85, %84 : vector<16x128xf32>
    %87 = math.tanh %86 : vector<16x128xf32>
    %cst_44 = arith.constant 1.000000e+00 : f32
    %88 = vector.broadcast %cst_44 : f32 to vector<16x128xf32>
    %89 = arith.addf %87, %88 : vector<16x128xf32>
    %cst_45 = arith.constant 5.000000e-01 : f32
    %90 = vector.broadcast %cst_45 : f32 to vector<16x128xf32>
    %91 = arith.mulf %90, %89 : vector<16x128xf32>
    %92 = arith.mulf %81, %54 : vector<16x128xf32>
    %93 = arith.mulf %73, %83 : vector<16x128xf32>
    %94 = arith.addf %92, %93 : vector<16x128xf32>
    %95 = math.tanh %94 : vector<16x128xf32>
    %96 = arith.mulf %91, %95 : vector<16x128xf32>
    %c0_46 = arith.constant 0 : index
    %c0_47 = arith.constant 0 : index
    %97 = vector.load %arg7[%c0_46, %c0_47] : memref<16x128xf32, #tpu.memory_space<vmem>>, vector<16x128xf32>
    tpu.vector_store %arg7[%c0_46, %c0_47], %94 {strides = array<i32>} : memref<16x128xf32, #tpu.memory_space<vmem>>, vector<16x128xf32>,
    %c0_48 = arith.constant 0 : index
    %c0_49 = arith.constant 0 : index
    %98 = vector.load %arg6[%c0_48, %c0_49] : memref<16x128xf32, #tpu.memory_space<vmem>>, vector<16x128xf32>
    tpu.vector_store %arg6[%c0_48, %c0_49], %96 {strides = array<i32>} : memref<16x128xf32, #tpu.memory_space<vmem>>, vector<16x128xf32>,
    %99 = arith.index_cast %c1_i32 : i32 to index
    %c0_50 = arith.constant 0 : index
    %c0_51 = arith.constant 0 : index
    %100 = vector.load %arg5[%99, %c0_50, %c0_51] : memref<8x16x128xf32, #tpu.memory_space<vmem>>, vector<1x16x128xf32>
    %101 = vector.shape_cast %100 : vector<1x16x128xf32> to vector<16x128xf32>
    %102 = vector.shape_cast %96 : vector<16x128xf32> to vector<1x16x128xf32>
    tpu.vector_store %arg5[%99, %c0_50, %c0_51], %102 {strides = array<i32>} : memref<8x16x128xf32, #tpu.memory_space<vmem>>, vector<1x16x128xf32>,
    %c2_i32 = arith.constant 2 : i32
    %c0_52 = arith.constant 0 : index
    %c0_53 = arith.constant 0 : index
    %103 = vector.load %arg6[%c0_52, %c0_53] : memref<16x128xf32, #tpu.memory_space<vmem>>, vector<16x128xf32>
    %c0_54 = arith.constant 0 : index
    %c0_55 = arith.constant 0 : index
    %104 = vector.load %arg7[%c0_54, %c0_55] : memref<16x128xf32, #tpu.memory_space<vmem>>, vector<16x128xf32>
    %105 = arith.truncf %103 : vector<16x128xf32> to vector<16x128xbf16>
    %c0_56 = arith.constant 0 : index
    %c0_57 = arith.constant 0 : index
    %106 = vector.load %arg4[%c0_56, %c0_57] : memref<128x512xbf16, #tpu.memory_space<vmem>>, vector<128x512xbf16>
    %cst_58 = arith.constant dense<0.000000e+00> : vector<16x512xf32>
    %107 = tpu.matmul %105, %106, %cst_58 {dimension_numbers = #tpu.dot_dimension_numbers<[1], [0], [0], [1], [0, 0, 1, 1], [], []>} : vector<16x128xbf16>, vector<128x512xbf16>, vector<16x512xf32> -> vector<16x512xf32>
    %108 = arith.index_cast %c2_i32 : i32 to index
    %c0_59 = arith.constant 0 : index
    %c0_60 = arith.constant 0 : index
    %109 = vector.load %arg2[%108, %c0_59, %c0_60] : memref<8x16x512xbf16, #tpu.memory_space<vmem>>, vector<1x16x512xbf16>
    %110 = vector.shape_cast %109 : vector<1x16x512xbf16> to vector<16x512xbf16>
    %111 = arith.extf %110 : vector<16x512xbf16> to vector<16x512xf32>
    %112 = arith.addf %107, %111 : vector<16x512xf32>
    %c0_61 = arith.constant 0 : index
    %c0_62 = arith.constant 0 : index
    %113 = vector.load %arg3[%c0_61, %c0_62] : memref<1x512xf32, #tpu.memory_space<vmem>>, vector<1x512xf32>
    %114 = vector.broadcast %113 : vector<1x512xf32> to vector<16x512xf32>
    %115 = arith.addf %112, %114 : vector<16x512xf32>
    %116 = vector.extract_strided_slice %115 {offsets = [0, 0], sizes = [16, 128], strides = [1, 1]} : vector<16x512xf32> to vector<16x128xf32>
    %cst_63 = arith.constant 5.000000e-01 : f32
    %117 = vector.broadcast %cst_63 : f32 to vector<16x128xf32>
    %118 = arith.mulf %117, %116 : vector<16x128xf32>
    %119 = math.tanh %118 : vector<16x128xf32>
    %cst_64 = arith.constant 1.000000e+00 : f32
    %120 = vector.broadcast %cst_64 : f32 to vector<16x128xf32>
    %121 = arith.addf %119, %120 : vector<16x128xf32>
    %cst_65 = arith.constant 5.000000e-01 : f32
    %122 = vector.broadcast %cst_65 : f32 to vector<16x128xf32>
    %123 = arith.mulf %122, %121 : vector<16x128xf32>
    %124 = vector.extract_strided_slice %115 {offsets = [0, 128], sizes = [16, 128], strides = [1, 1]} : vector<16x512xf32> to vector<16x128xf32>
    %cst_66 = arith.constant 5.000000e-01 : f32
    %125 = vector.broadcast %cst_66 : f32 to vector<16x128xf32>
    %126 = arith.mulf %125, %124 : vector<16x128xf32>
    %127 = math.tanh %126 : vector<16x128xf32>
    %cst_67 = arith.constant 1.000000e+00 : f32
    %128 = vector.broadcast %cst_67 : f32 to vector<16x128xf32>
    %129 = arith.addf %127, %128 : vector<16x128xf32>
    %cst_68 = arith.constant 5.000000e-01 : f32
    %130 = vector.broadcast %cst_68 : f32 to vector<16x128xf32>
    %131 = arith.mulf %130, %129 : vector<16x128xf32>
    %132 = vector.extract_strided_slice %115 {offsets = [0, 256], sizes = [16, 128], strides = [1, 1]} : vector<16x512xf32> to vector<16x128xf32>
    %133 = math.tanh %132 : vector<16x128xf32>
    %134 = vector.extract_strided_slice %115 {offsets = [0, 384], sizes = [16, 128], strides = [1, 1]} : vector<16x512xf32> to vector<16x128xf32>
    %cst_69 = arith.constant 5.000000e-01 : f32
    %135 = vector.broadcast %cst_69 : f32 to vector<16x128xf32>
    %136 = arith.mulf %135, %134 : vector<16x128xf32>
    %137 = math.tanh %136 : vector<16x128xf32>
    %cst_70 = arith.constant 1.000000e+00 : f32
    %138 = vector.broadcast %cst_70 : f32 to vector<16x128xf32>
    %139 = arith.addf %137, %138 : vector<16x128xf32>
    %cst_71 = arith.constant 5.000000e-01 : f32
    %140 = vector.broadcast %cst_71 : f32 to vector<16x128xf32>
    %141 = arith.mulf %140, %139 : vector<16x128xf32>
    %142 = arith.mulf %131, %104 : vector<16x128xf32>
    %143 = arith.mulf %123, %133 : vector<16x128xf32>
    %144 = arith.addf %142, %143 : vector<16x128xf32>
    %145 = math.tanh %144 : vector<16x128xf32>
    %146 = arith.mulf %141, %145 : vector<16x128xf32>
    %c0_72 = arith.constant 0 : index
    %c0_73 = arith.constant 0 : index
    %147 = vector.load %arg7[%c0_72, %c0_73] : memref<16x128xf32, #tpu.memory_space<vmem>>, vector<16x128xf32>
    tpu.vector_store %arg7[%c0_72, %c0_73], %144 {strides = array<i32>} : memref<16x128xf32, #tpu.memory_space<vmem>>, vector<16x128xf32>,
    %c0_74 = arith.constant 0 : index
    %c0_75 = arith.constant 0 : index
    %148 = vector.load %arg6[%c0_74, %c0_75] : memref<16x128xf32, #tpu.memory_space<vmem>>, vector<16x128xf32>
    tpu.vector_store %arg6[%c0_74, %c0_75], %146 {strides = array<i32>} : memref<16x128xf32, #tpu.memory_space<vmem>>, vector<16x128xf32>,
    %149 = arith.index_cast %c2_i32 : i32 to index
    %c0_76 = arith.constant 0 : index
    %c0_77 = arith.constant 0 : index
    %150 = vector.load %arg5[%149, %c0_76, %c0_77] : memref<8x16x128xf32, #tpu.memory_space<vmem>>, vector<1x16x128xf32>
    %151 = vector.shape_cast %150 : vector<1x16x128xf32> to vector<16x128xf32>
    %152 = vector.shape_cast %146 : vector<16x128xf32> to vector<1x16x128xf32>
    tpu.vector_store %arg5[%149, %c0_76, %c0_77], %152 {strides = array<i32>} : memref<8x16x128xf32, #tpu.memory_space<vmem>>, vector<1x16x128xf32>,
    %c3_i32 = arith.constant 3 : i32
    %c0_78 = arith.constant 0 : index
    %c0_79 = arith.constant 0 : index
    %153 = vector.load %arg6[%c0_78, %c0_79] : memref<16x128xf32, #tpu.memory_space<vmem>>, vector<16x128xf32>
    %c0_80 = arith.constant 0 : index
    %c0_81 = arith.constant 0 : index
    %154 = vector.load %arg7[%c0_80, %c0_81] : memref<16x128xf32, #tpu.memory_space<vmem>>, vector<16x128xf32>
    %155 = arith.truncf %153 : vector<16x128xf32> to vector<16x128xbf16>
    %c0_82 = arith.constant 0 : index
    %c0_83 = arith.constant 0 : index
    %156 = vector.load %arg4[%c0_82, %c0_83] : memref<128x512xbf16, #tpu.memory_space<vmem>>, vector<128x512xbf16>
    %cst_84 = arith.constant dense<0.000000e+00> : vector<16x512xf32>
    %157 = tpu.matmul %155, %156, %cst_84 {dimension_numbers = #tpu.dot_dimension_numbers<[1], [0], [0], [1], [0, 0, 1, 1], [], []>} : vector<16x128xbf16>, vector<128x512xbf16>, vector<16x512xf32> -> vector<16x512xf32>
    %158 = arith.index_cast %c3_i32 : i32 to index
    %c0_85 = arith.constant 0 : index
    %c0_86 = arith.constant 0 : index
    %159 = vector.load %arg2[%158, %c0_85, %c0_86] : memref<8x16x512xbf16, #tpu.memory_space<vmem>>, vector<1x16x512xbf16>
    %160 = vector.shape_cast %159 : vector<1x16x512xbf16> to vector<16x512xbf16>
    %161 = arith.extf %160 : vector<16x512xbf16> to vector<16x512xf32>
    %162 = arith.addf %157, %161 : vector<16x512xf32>
    %c0_87 = arith.constant 0 : index
    %c0_88 = arith.constant 0 : index
    %163 = vector.load %arg3[%c0_87, %c0_88] : memref<1x512xf32, #tpu.memory_space<vmem>>, vector<1x512xf32>
    %164 = vector.broadcast %163 : vector<1x512xf32> to vector<16x512xf32>
    %165 = arith.addf %162, %164 : vector<16x512xf32>
    %166 = vector.extract_strided_slice %165 {offsets = [0, 0], sizes = [16, 128], strides = [1, 1]} : vector<16x512xf32> to vector<16x128xf32>
    %cst_89 = arith.constant 5.000000e-01 : f32
    %167 = vector.broadcast %cst_89 : f32 to vector<16x128xf32>
    %168 = arith.mulf %167, %166 : vector<16x128xf32>
    %169 = math.tanh %168 : vector<16x128xf32>
    %cst_90 = arith.constant 1.000000e+00 : f32
    %170 = vector.broadcast %cst_90 : f32 to vector<16x128xf32>
    %171 = arith.addf %169, %170 : vector<16x128xf32>
    %cst_91 = arith.constant 5.000000e-01 : f32
    %172 = vector.broadcast %cst_91 : f32 to vector<16x128xf32>
    %173 = arith.mulf %172, %171 : vector<16x128xf32>
    %174 = vector.extract_strided_slice %165 {offsets = [0, 128], sizes = [16, 128], strides = [1, 1]} : vector<16x512xf32> to vector<16x128xf32>
    %cst_92 = arith.constant 5.000000e-01 : f32
    %175 = vector.broadcast %cst_92 : f32 to vector<16x128xf32>
    %176 = arith.mulf %175, %174 : vector<16x128xf32>
    %177 = math.tanh %176 : vector<16x128xf32>
    %cst_93 = arith.constant 1.000000e+00 : f32
    %178 = vector.broadcast %cst_93 : f32 to vector<16x128xf32>
    %179 = arith.addf %177, %178 : vector<16x128xf32>
    %cst_94 = arith.constant 5.000000e-01 : f32
    %180 = vector.broadcast %cst_94 : f32 to vector<16x128xf32>
    %181 = arith.mulf %180, %179 : vector<16x128xf32>
    %182 = vector.extract_strided_slice %165 {offsets = [0, 256], sizes = [16, 128], strides = [1, 1]} : vector<16x512xf32> to vector<16x128xf32>
    %183 = math.tanh %182 : vector<16x128xf32>
    %184 = vector.extract_strided_slice %165 {offsets = [0, 384], sizes = [16, 128], strides = [1, 1]} : vector<16x512xf32> to vector<16x128xf32>
    %cst_95 = arith.constant 5.000000e-01 : f32
    %185 = vector.broadcast %cst_95 : f32 to vector<16x128xf32>
    %186 = arith.mulf %185, %184 : vector<16x128xf32>
    %187 = math.tanh %186 : vector<16x128xf32>
    %cst_96 = arith.constant 1.000000e+00 : f32
    %188 = vector.broadcast %cst_96 : f32 to vector<16x128xf32>
    %189 = arith.addf %187, %188 : vector<16x128xf32>
    %cst_97 = arith.constant 5.000000e-01 : f32
    %190 = vector.broadcast %cst_97 : f32 to vector<16x128xf32>
    %191 = arith.mulf %190, %189 : vector<16x128xf32>
    %192 = arith.mulf %181, %154 : vector<16x128xf32>
    %193 = arith.mulf %173, %183 : vector<16x128xf32>
    %194 = arith.addf %192, %193 : vector<16x128xf32>
    %195 = math.tanh %194 : vector<16x128xf32>
    %196 = arith.mulf %191, %195 : vector<16x128xf32>
    %c0_98 = arith.constant 0 : index
    %c0_99 = arith.constant 0 : index
    %197 = vector.load %arg7[%c0_98, %c0_99] : memref<16x128xf32, #tpu.memory_space<vmem>>, vector<16x128xf32>
    tpu.vector_store %arg7[%c0_98, %c0_99], %194 {strides = array<i32>} : memref<16x128xf32, #tpu.memory_space<vmem>>, vector<16x128xf32>,
    %c0_100 = arith.constant 0 : index
    %c0_101 = arith.constant 0 : index
    %198 = vector.load %arg6[%c0_100, %c0_101] : memref<16x128xf32, #tpu.memory_space<vmem>>, vector<16x128xf32>
    tpu.vector_store %arg6[%c0_100, %c0_101], %196 {strides = array<i32>} : memref<16x128xf32, #tpu.memory_space<vmem>>, vector<16x128xf32>,
    %199 = arith.index_cast %c3_i32 : i32 to index
    %c0_102 = arith.constant 0 : index
    %c0_103 = arith.constant 0 : index
    %200 = vector.load %arg5[%199, %c0_102, %c0_103] : memref<8x16x128xf32, #tpu.memory_space<vmem>>, vector<1x16x128xf32>
    %201 = vector.shape_cast %200 : vector<1x16x128xf32> to vector<16x128xf32>
    %202 = vector.shape_cast %196 : vector<16x128xf32> to vector<1x16x128xf32>
    tpu.vector_store %arg5[%199, %c0_102, %c0_103], %202 {strides = array<i32>} : memref<8x16x128xf32, #tpu.memory_space<vmem>>, vector<1x16x128xf32>,
    %c4_i32 = arith.constant 4 : i32
    %c0_104 = arith.constant 0 : index
    %c0_105 = arith.constant 0 : index
    %203 = vector.load %arg6[%c0_104, %c0_105] : memref<16x128xf32, #tpu.memory_space<vmem>>, vector<16x128xf32>
    %c0_106 = arith.constant 0 : index
    %c0_107 = arith.constant 0 : index
    %204 = vector.load %arg7[%c0_106, %c0_107] : memref<16x128xf32, #tpu.memory_space<vmem>>, vector<16x128xf32>
    %205 = arith.truncf %203 : vector<16x128xf32> to vector<16x128xbf16>
    %c0_108 = arith.constant 0 : index
    %c0_109 = arith.constant 0 : index
    %206 = vector.load %arg4[%c0_108, %c0_109] : memref<128x512xbf16, #tpu.memory_space<vmem>>, vector<128x512xbf16>
    %cst_110 = arith.constant dense<0.000000e+00> : vector<16x512xf32>
    %207 = tpu.matmul %205, %206, %cst_110 {dimension_numbers = #tpu.dot_dimension_numbers<[1], [0], [0], [1], [0, 0, 1, 1], [], []>} : vector<16x128xbf16>, vector<128x512xbf16>, vector<16x512xf32> -> vector<16x512xf32>
    %208 = arith.index_cast %c4_i32 : i32 to index
    %c0_111 = arith.constant 0 : index
    %c0_112 = arith.constant 0 : index
    %209 = vector.load %arg2[%208, %c0_111, %c0_112] : memref<8x16x512xbf16, #tpu.memory_space<vmem>>, vector<1x16x512xbf16>
    %210 = vector.shape_cast %209 : vector<1x16x512xbf16> to vector<16x512xbf16>
    %211 = arith.extf %210 : vector<16x512xbf16> to vector<16x512xf32>
    %212 = arith.addf %207, %211 : vector<16x512xf32>
    %c0_113 = arith.constant 0 : index
    %c0_114 = arith.constant 0 : index
    %213 = vector.load %arg3[%c0_113, %c0_114] : memref<1x512xf32, #tpu.memory_space<vmem>>, vector<1x512xf32>
    %214 = vector.broadcast %213 : vector<1x512xf32> to vector<16x512xf32>
    %215 = arith.addf %212, %214 : vector<16x512xf32>
    %216 = vector.extract_strided_slice %215 {offsets = [0, 0], sizes = [16, 128], strides = [1, 1]} : vector<16x512xf32> to vector<16x128xf32>
    %cst_115 = arith.constant 5.000000e-01 : f32
    %217 = vector.broadcast %cst_115 : f32 to vector<16x128xf32>
    %218 = arith.mulf %217, %216 : vector<16x128xf32>
    %219 = math.tanh %218 : vector<16x128xf32>
    %cst_116 = arith.constant 1.000000e+00 : f32
    %220 = vector.broadcast %cst_116 : f32 to vector<16x128xf32>
    %221 = arith.addf %219, %220 : vector<16x128xf32>
    %cst_117 = arith.constant 5.000000e-01 : f32
    %222 = vector.broadcast %cst_117 : f32 to vector<16x128xf32>
    %223 = arith.mulf %222, %221 : vector<16x128xf32>
    %224 = vector.extract_strided_slice %215 {offsets = [0, 128], sizes = [16, 128], strides = [1, 1]} : vector<16x512xf32> to vector<16x128xf32>
    %cst_118 = arith.constant 5.000000e-01 : f32
    %225 = vector.broadcast %cst_118 : f32 to vector<16x128xf32>
    %226 = arith.mulf %225, %224 : vector<16x128xf32>
    %227 = math.tanh %226 : vector<16x128xf32>
    %cst_119 = arith.constant 1.000000e+00 : f32
    %228 = vector.broadcast %cst_119 : f32 to vector<16x128xf32>
    %229 = arith.addf %227, %228 : vector<16x128xf32>
    %cst_120 = arith.constant 5.000000e-01 : f32
    %230 = vector.broadcast %cst_120 : f32 to vector<16x128xf32>
    %231 = arith.mulf %230, %229 : vector<16x128xf32>
    %232 = vector.extract_strided_slice %215 {offsets = [0, 256], sizes = [16, 128], strides = [1, 1]} : vector<16x512xf32> to vector<16x128xf32>
    %233 = math.tanh %232 : vector<16x128xf32>
    %234 = vector.extract_strided_slice %215 {offsets = [0, 384], sizes = [16, 128], strides = [1, 1]} : vector<16x512xf32> to vector<16x128xf32>
    %cst_121 = arith.constant 5.000000e-01 : f32
    %235 = vector.broadcast %cst_121 : f32 to vector<16x128xf32>
    %236 = arith.mulf %235, %234 : vector<16x128xf32>
    %237 = math.tanh %236 : vector<16x128xf32>
    %cst_122 = arith.constant 1.000000e+00 : f32
    %238 = vector.broadcast %cst_122 : f32 to vector<16x128xf32>
    %239 = arith.addf %237, %238 : vector<16x128xf32>
    %cst_123 = arith.constant 5.000000e-01 : f32
    %240 = vector.broadcast %cst_123 : f32 to vector<16x128xf32>
    %241 = arith.mulf %240, %239 : vector<16x128xf32>
    %242 = arith.mulf %231, %204 : vector<16x128xf32>
    %243 = arith.mulf %223, %233 : vector<16x128xf32>
    %244 = arith.addf %242, %243 : vector<16x128xf32>
    %245 = math.tanh %244 : vector<16x128xf32>
    %246 = arith.mulf %241, %245 : vector<16x128xf32>
    %c0_124 = arith.constant 0 : index
    %c0_125 = arith.constant 0 : index
    %247 = vector.load %arg7[%c0_124, %c0_125] : memref<16x128xf32, #tpu.memory_space<vmem>>, vector<16x128xf32>
    tpu.vector_store %arg7[%c0_124, %c0_125], %244 {strides = array<i32>} : memref<16x128xf32, #tpu.memory_space<vmem>>, vector<16x128xf32>,
    %c0_126 = arith.constant 0 : index
    %c0_127 = arith.constant 0 : index
    %248 = vector.load %arg6[%c0_126, %c0_127] : memref<16x128xf32, #tpu.memory_space<vmem>>, vector<16x128xf32>
    tpu.vector_store %arg6[%c0_126, %c0_127], %246 {strides = array<i32>} : memref<16x128xf32, #tpu.memory_space<vmem>>, vector<16x128xf32>,
    %249 = arith.index_cast %c4_i32 : i32 to index
    %c0_128 = arith.constant 0 : index
    %c0_129 = arith.constant 0 : index
    %250 = vector.load %arg5[%249, %c0_128, %c0_129] : memref<8x16x128xf32, #tpu.memory_space<vmem>>, vector<1x16x128xf32>
    %251 = vector.shape_cast %250 : vector<1x16x128xf32> to vector<16x128xf32>
    %252 = vector.shape_cast %246 : vector<16x128xf32> to vector<1x16x128xf32>
    tpu.vector_store %arg5[%249, %c0_128, %c0_129], %252 {strides = array<i32>} : memref<8x16x128xf32, #tpu.memory_space<vmem>>, vector<1x16x128xf32>,
    %c5_i32 = arith.constant 5 : i32
    %c0_130 = arith.constant 0 : index
    %c0_131 = arith.constant 0 : index
    %253 = vector.load %arg6[%c0_130, %c0_131] : memref<16x128xf32, #tpu.memory_space<vmem>>, vector<16x128xf32>
    %c0_132 = arith.constant 0 : index
    %c0_133 = arith.constant 0 : index
    %254 = vector.load %arg7[%c0_132, %c0_133] : memref<16x128xf32, #tpu.memory_space<vmem>>, vector<16x128xf32>
    %255 = arith.truncf %253 : vector<16x128xf32> to vector<16x128xbf16>
    %c0_134 = arith.constant 0 : index
    %c0_135 = arith.constant 0 : index
    %256 = vector.load %arg4[%c0_134, %c0_135] : memref<128x512xbf16, #tpu.memory_space<vmem>>, vector<128x512xbf16>
    %cst_136 = arith.constant dense<0.000000e+00> : vector<16x512xf32>
    %257 = tpu.matmul %255, %256, %cst_136 {dimension_numbers = #tpu.dot_dimension_numbers<[1], [0], [0], [1], [0, 0, 1, 1], [], []>} : vector<16x128xbf16>, vector<128x512xbf16>, vector<16x512xf32> -> vector<16x512xf32>
    %258 = arith.index_cast %c5_i32 : i32 to index
    %c0_137 = arith.constant 0 : index
    %c0_138 = arith.constant 0 : index
    %259 = vector.load %arg2[%258, %c0_137, %c0_138] : memref<8x16x512xbf16, #tpu.memory_space<vmem>>, vector<1x16x512xbf16>
    %260 = vector.shape_cast %259 : vector<1x16x512xbf16> to vector<16x512xbf16>
    %261 = arith.extf %260 : vector<16x512xbf16> to vector<16x512xf32>
    %262 = arith.addf %257, %261 : vector<16x512xf32>
    %c0_139 = arith.constant 0 : index
    %c0_140 = arith.constant 0 : index
    %263 = vector.load %arg3[%c0_139, %c0_140] : memref<1x512xf32, #tpu.memory_space<vmem>>, vector<1x512xf32>
    %264 = vector.broadcast %263 : vector<1x512xf32> to vector<16x512xf32>
    %265 = arith.addf %262, %264 : vector<16x512xf32>
    %266 = vector.extract_strided_slice %265 {offsets = [0, 0], sizes = [16, 128], strides = [1, 1]} : vector<16x512xf32> to vector<16x128xf32>
    %cst_141 = arith.constant 5.000000e-01 : f32
    %267 = vector.broadcast %cst_141 : f32 to vector<16x128xf32>
    %268 = arith.mulf %267, %266 : vector<16x128xf32>
    %269 = math.tanh %268 : vector<16x128xf32>
    %cst_142 = arith.constant 1.000000e+00 : f32
    %270 = vector.broadcast %cst_142 : f32 to vector<16x128xf32>
    %271 = arith.addf %269, %270 : vector<16x128xf32>
    %cst_143 = arith.constant 5.000000e-01 : f32
    %272 = vector.broadcast %cst_143 : f32 to vector<16x128xf32>
    %273 = arith.mulf %272, %271 : vector<16x128xf32>
    %274 = vector.extract_strided_slice %265 {offsets = [0, 128], sizes = [16, 128], strides = [1, 1]} : vector<16x512xf32> to vector<16x128xf32>
    %cst_144 = arith.constant 5.000000e-01 : f32
    %275 = vector.broadcast %cst_144 : f32 to vector<16x128xf32>
    %276 = arith.mulf %275, %274 : vector<16x128xf32>
    %277 = math.tanh %276 : vector<16x128xf32>
    %cst_145 = arith.constant 1.000000e+00 : f32
    %278 = vector.broadcast %cst_145 : f32 to vector<16x128xf32>
    %279 = arith.addf %277, %278 : vector<16x128xf32>
    %cst_146 = arith.constant 5.000000e-01 : f32
    %280 = vector.broadcast %cst_146 : f32 to vector<16x128xf32>
    %281 = arith.mulf %280, %279 : vector<16x128xf32>
    %282 = vector.extract_strided_slice %265 {offsets = [0, 256], sizes = [16, 128], strides = [1, 1]} : vector<16x512xf32> to vector<16x128xf32>
    %283 = math.tanh %282 : vector<16x128xf32>
    %284 = vector.extract_strided_slice %265 {offsets = [0, 384], sizes = [16, 128], strides = [1, 1]} : vector<16x512xf32> to vector<16x128xf32>
    %cst_147 = arith.constant 5.000000e-01 : f32
    %285 = vector.broadcast %cst_147 : f32 to vector<16x128xf32>
    %286 = arith.mulf %285, %284 : vector<16x128xf32>
    %287 = math.tanh %286 : vector<16x128xf32>
    %cst_148 = arith.constant 1.000000e+00 : f32
    %288 = vector.broadcast %cst_148 : f32 to vector<16x128xf32>
    %289 = arith.addf %287, %288 : vector<16x128xf32>
    %cst_149 = arith.constant 5.000000e-01 : f32
    %290 = vector.broadcast %cst_149 : f32 to vector<16x128xf32>
    %291 = arith.mulf %290, %289 : vector<16x128xf32>
    %292 = arith.mulf %281, %254 : vector<16x128xf32>
    %293 = arith.mulf %273, %283 : vector<16x128xf32>
    %294 = arith.addf %292, %293 : vector<16x128xf32>
    %295 = math.tanh %294 : vector<16x128xf32>
    %296 = arith.mulf %291, %295 : vector<16x128xf32>
    %c0_150 = arith.constant 0 : index
    %c0_151 = arith.constant 0 : index
    %297 = vector.load %arg7[%c0_150, %c0_151] : memref<16x128xf32, #tpu.memory_space<vmem>>, vector<16x128xf32>
    tpu.vector_store %arg7[%c0_150, %c0_151], %294 {strides = array<i32>} : memref<16x128xf32, #tpu.memory_space<vmem>>, vector<16x128xf32>,
    %c0_152 = arith.constant 0 : index
    %c0_153 = arith.constant 0 : index
    %298 = vector.load %arg6[%c0_152, %c0_153] : memref<16x128xf32, #tpu.memory_space<vmem>>, vector<16x128xf32>
    tpu.vector_store %arg6[%c0_152, %c0_153], %296 {strides = array<i32>} : memref<16x128xf32, #tpu.memory_space<vmem>>, vector<16x128xf32>,
    %299 = arith.index_cast %c5_i32 : i32 to index
    %c0_154 = arith.constant 0 : index
    %c0_155 = arith.constant 0 : index
    %300 = vector.load %arg5[%299, %c0_154, %c0_155] : memref<8x16x128xf32, #tpu.memory_space<vmem>>, vector<1x16x128xf32>
    %301 = vector.shape_cast %300 : vector<1x16x128xf32> to vector<16x128xf32>
    %302 = vector.shape_cast %296 : vector<16x128xf32> to vector<1x16x128xf32>
    tpu.vector_store %arg5[%299, %c0_154, %c0_155], %302 {strides = array<i32>} : memref<8x16x128xf32, #tpu.memory_space<vmem>>, vector<1x16x128xf32>,
    %c6_i32 = arith.constant 6 : i32
    %c0_156 = arith.constant 0 : index
    %c0_157 = arith.constant 0 : index
    %303 = vector.load %arg6[%c0_156, %c0_157] : memref<16x128xf32, #tpu.memory_space<vmem>>, vector<16x128xf32>
    %c0_158 = arith.constant 0 : index
    %c0_159 = arith.constant 0 : index
    %304 = vector.load %arg7[%c0_158, %c0_159] : memref<16x128xf32, #tpu.memory_space<vmem>>, vector<16x128xf32>
    %305 = arith.truncf %303 : vector<16x128xf32> to vector<16x128xbf16>
    %c0_160 = arith.constant 0 : index
    %c0_161 = arith.constant 0 : index
    %306 = vector.load %arg4[%c0_160, %c0_161] : memref<128x512xbf16, #tpu.memory_space<vmem>>, vector<128x512xbf16>
    %cst_162 = arith.constant dense<0.000000e+00> : vector<16x512xf32>
    %307 = tpu.matmul %305, %306, %cst_162 {dimension_numbers = #tpu.dot_dimension_numbers<[1], [0], [0], [1], [0, 0, 1, 1], [], []>} : vector<16x128xbf16>, vector<128x512xbf16>, vector<16x512xf32> -> vector<16x512xf32>
    %308 = arith.index_cast %c6_i32 : i32 to index
    %c0_163 = arith.constant 0 : index
    %c0_164 = arith.constant 0 : index
    %309 = vector.load %arg2[%308, %c0_163, %c0_164] : memref<8x16x512xbf16, #tpu.memory_space<vmem>>, vector<1x16x512xbf16>
    %310 = vector.shape_cast %309 : vector<1x16x512xbf16> to vector<16x512xbf16>
    %311 = arith.extf %310 : vector<16x512xbf16> to vector<16x512xf32>
    %312 = arith.addf %307, %311 : vector<16x512xf32>
    %c0_165 = arith.constant 0 : index
    %c0_166 = arith.constant 0 : index
    %313 = vector.load %arg3[%c0_165, %c0_166] : memref<1x512xf32, #tpu.memory_space<vmem>>, vector<1x512xf32>
    %314 = vector.broadcast %313 : vector<1x512xf32> to vector<16x512xf32>
    %315 = arith.addf %312, %314 : vector<16x512xf32>
    %316 = vector.extract_strided_slice %315 {offsets = [0, 0], sizes = [16, 128], strides = [1, 1]} : vector<16x512xf32> to vector<16x128xf32>
    %cst_167 = arith.constant 5.000000e-01 : f32
    %317 = vector.broadcast %cst_167 : f32 to vector<16x128xf32>
    %318 = arith.mulf %317, %316 : vector<16x128xf32>
    %319 = math.tanh %318 : vector<16x128xf32>
    %cst_168 = arith.constant 1.000000e+00 : f32
    %320 = vector.broadcast %cst_168 : f32 to vector<16x128xf32>
    %321 = arith.addf %319, %320 : vector<16x128xf32>
    %cst_169 = arith.constant 5.000000e-01 : f32
    %322 = vector.broadcast %cst_169 : f32 to vector<16x128xf32>
    %323 = arith.mulf %322, %321 : vector<16x128xf32>
    %324 = vector.extract_strided_slice %315 {offsets = [0, 128], sizes = [16, 128], strides = [1, 1]} : vector<16x512xf32> to vector<16x128xf32>
    %cst_170 = arith.constant 5.000000e-01 : f32
    %325 = vector.broadcast %cst_170 : f32 to vector<16x128xf32>
    %326 = arith.mulf %325, %324 : vector<16x128xf32>
    %327 = math.tanh %326 : vector<16x128xf32>
    %cst_171 = arith.constant 1.000000e+00 : f32
    %328 = vector.broadcast %cst_171 : f32 to vector<16x128xf32>
    %329 = arith.addf %327, %328 : vector<16x128xf32>
    %cst_172 = arith.constant 5.000000e-01 : f32
    %330 = vector.broadcast %cst_172 : f32 to vector<16x128xf32>
    %331 = arith.mulf %330, %329 : vector<16x128xf32>
    %332 = vector.extract_strided_slice %315 {offsets = [0, 256], sizes = [16, 128], strides = [1, 1]} : vector<16x512xf32> to vector<16x128xf32>
    %333 = math.tanh %332 : vector<16x128xf32>
    %334 = vector.extract_strided_slice %315 {offsets = [0, 384], sizes = [16, 128], strides = [1, 1]} : vector<16x512xf32> to vector<16x128xf32>
    %cst_173 = arith.constant 5.000000e-01 : f32
    %335 = vector.broadcast %cst_173 : f32 to vector<16x128xf32>
    %336 = arith.mulf %335, %334 : vector<16x128xf32>
    %337 = math.tanh %336 : vector<16x128xf32>
    %cst_174 = arith.constant 1.000000e+00 : f32
    %338 = vector.broadcast %cst_174 : f32 to vector<16x128xf32>
    %339 = arith.addf %337, %338 : vector<16x128xf32>
    %cst_175 = arith.constant 5.000000e-01 : f32
    %340 = vector.broadcast %cst_175 : f32 to vector<16x128xf32>
    %341 = arith.mulf %340, %339 : vector<16x128xf32>
    %342 = arith.mulf %331, %304 : vector<16x128xf32>
    %343 = arith.mulf %323, %333 : vector<16x128xf32>
    %344 = arith.addf %342, %343 : vector<16x128xf32>
    %345 = math.tanh %344 : vector<16x128xf32>
    %346 = arith.mulf %341, %345 : vector<16x128xf32>
    %c0_176 = arith.constant 0 : index
    %c0_177 = arith.constant 0 : index
    %347 = vector.load %arg7[%c0_176, %c0_177] : memref<16x128xf32, #tpu.memory_space<vmem>>, vector<16x128xf32>
    tpu.vector_store %arg7[%c0_176, %c0_177], %344 {strides = array<i32>} : memref<16x128xf32, #tpu.memory_space<vmem>>, vector<16x128xf32>,
    %c0_178 = arith.constant 0 : index
    %c0_179 = arith.constant 0 : index
    %348 = vector.load %arg6[%c0_178, %c0_179] : memref<16x128xf32, #tpu.memory_space<vmem>>, vector<16x128xf32>
    tpu.vector_store %arg6[%c0_178, %c0_179], %346 {strides = array<i32>} : memref<16x128xf32, #tpu.memory_space<vmem>>, vector<16x128xf32>,
    %349 = arith.index_cast %c6_i32 : i32 to index
    %c0_180 = arith.constant 0 : index
    %c0_181 = arith.constant 0 : index
    %350 = vector.load %arg5[%349, %c0_180, %c0_181] : memref<8x16x128xf32, #tpu.memory_space<vmem>>, vector<1x16x128xf32>
    %351 = vector.shape_cast %350 : vector<1x16x128xf32> to vector<16x128xf32>
    %352 = vector.shape_cast %346 : vector<16x128xf32> to vector<1x16x128xf32>
    tpu.vector_store %arg5[%349, %c0_180, %c0_181], %352 {strides = array<i32>} : memref<8x16x128xf32, #tpu.memory_space<vmem>>, vector<1x16x128xf32>,
    %c7_i32 = arith.constant 7 : i32
    %c0_182 = arith.constant 0 : index
    %c0_183 = arith.constant 0 : index
    %353 = vector.load %arg6[%c0_182, %c0_183] : memref<16x128xf32, #tpu.memory_space<vmem>>, vector<16x128xf32>
    %c0_184 = arith.constant 0 : index
    %c0_185 = arith.constant 0 : index
    %354 = vector.load %arg7[%c0_184, %c0_185] : memref<16x128xf32, #tpu.memory_space<vmem>>, vector<16x128xf32>
    %355 = arith.truncf %353 : vector<16x128xf32> to vector<16x128xbf16>
    %c0_186 = arith.constant 0 : index
    %c0_187 = arith.constant 0 : index
    %356 = vector.load %arg4[%c0_186, %c0_187] : memref<128x512xbf16, #tpu.memory_space<vmem>>, vector<128x512xbf16>
    %cst_188 = arith.constant dense<0.000000e+00> : vector<16x512xf32>
    %357 = tpu.matmul %355, %356, %cst_188 {dimension_numbers = #tpu.dot_dimension_numbers<[1], [0], [0], [1], [0, 0, 1, 1], [], []>} : vector<16x128xbf16>, vector<128x512xbf16>, vector<16x512xf32> -> vector<16x512xf32>
    %358 = arith.index_cast %c7_i32 : i32 to index
    %c0_189 = arith.constant 0 : index
    %c0_190 = arith.constant 0 : index
    %359 = vector.load %arg2[%358, %c0_189, %c0_190] : memref<8x16x512xbf16, #tpu.memory_space<vmem>>, vector<1x16x512xbf16>
    %360 = vector.shape_cast %359 : vector<1x16x512xbf16> to vector<16x512xbf16>
    %361 = arith.extf %360 : vector<16x512xbf16> to vector<16x512xf32>
    %362 = arith.addf %357, %361 : vector<16x512xf32>
    %c0_191 = arith.constant 0 : index
    %c0_192 = arith.constant 0 : index
    %363 = vector.load %arg3[%c0_191, %c0_192] : memref<1x512xf32, #tpu.memory_space<vmem>>, vector<1x512xf32>
    %364 = vector.broadcast %363 : vector<1x512xf32> to vector<16x512xf32>
    %365 = arith.addf %362, %364 : vector<16x512xf32>
    %366 = vector.extract_strided_slice %365 {offsets = [0, 0], sizes = [16, 128], strides = [1, 1]} : vector<16x512xf32> to vector<16x128xf32>
    %cst_193 = arith.constant 5.000000e-01 : f32
    %367 = vector.broadcast %cst_193 : f32 to vector<16x128xf32>
    %368 = arith.mulf %367, %366 : vector<16x128xf32>
    %369 = math.tanh %368 : vector<16x128xf32>
    %cst_194 = arith.constant 1.000000e+00 : f32
    %370 = vector.broadcast %cst_194 : f32 to vector<16x128xf32>
    %371 = arith.addf %369, %370 : vector<16x128xf32>
    %cst_195 = arith.constant 5.000000e-01 : f32
    %372 = vector.broadcast %cst_195 : f32 to vector<16x128xf32>
    %373 = arith.mulf %372, %371 : vector<16x128xf32>
    %374 = vector.extract_strided_slice %365 {offsets = [0, 128], sizes = [16, 128], strides = [1, 1]} : vector<16x512xf32> to vector<16x128xf32>
    %cst_196 = arith.constant 5.000000e-01 : f32
    %375 = vector.broadcast %cst_196 : f32 to vector<16x128xf32>
    %376 = arith.mulf %375, %374 : vector<16x128xf32>
    %377 = math.tanh %376 : vector<16x128xf32>
    %cst_197 = arith.constant 1.000000e+00 : f32
    %378 = vector.broadcast %cst_197 : f32 to vector<16x128xf32>
    %379 = arith.addf %377, %378 : vector<16x128xf32>
    %cst_198 = arith.constant 5.000000e-01 : f32
    %380 = vector.broadcast %cst_198 : f32 to vector<16x128xf32>
    %381 = arith.mulf %380, %379 : vector<16x128xf32>
    %382 = vector.extract_strided_slice %365 {offsets = [0, 256], sizes = [16, 128], strides = [1, 1]} : vector<16x512xf32> to vector<16x128xf32>
    %383 = math.tanh %382 : vector<16x128xf32>
    %384 = vector.extract_strided_slice %365 {offsets = [0, 384], sizes = [16, 128], strides = [1, 1]} : vector<16x512xf32> to vector<16x128xf32>
    %cst_199 = arith.constant 5.000000e-01 : f32
    %385 = vector.broadcast %cst_199 : f32 to vector<16x128xf32>
    %386 = arith.mulf %385, %384 : vector<16x128xf32>
    %387 = math.tanh %386 : vector<16x128xf32>
    %cst_200 = arith.constant 1.000000e+00 : f32
    %388 = vector.broadcast %cst_200 : f32 to vector<16x128xf32>
    %389 = arith.addf %387, %388 : vector<16x128xf32>
    %cst_201 = arith.constant 5.000000e-01 : f32
    %390 = vector.broadcast %cst_201 : f32 to vector<16x128xf32>
    %391 = arith.mulf %390, %389 : vector<16x128xf32>
    %392 = arith.mulf %381, %354 : vector<16x128xf32>
    %393 = arith.mulf %373, %383 : vector<16x128xf32>
    %394 = arith.addf %392, %393 : vector<16x128xf32>
    %395 = math.tanh %394 : vector<16x128xf32>
    %396 = arith.mulf %391, %395 : vector<16x128xf32>
    %c0_202 = arith.constant 0 : index
    %c0_203 = arith.constant 0 : index
    %397 = vector.load %arg7[%c0_202, %c0_203] : memref<16x128xf32, #tpu.memory_space<vmem>>, vector<16x128xf32>
    tpu.vector_store %arg7[%c0_202, %c0_203], %394 {strides = array<i32>} : memref<16x128xf32, #tpu.memory_space<vmem>>, vector<16x128xf32>,
    %c0_204 = arith.constant 0 : index
    %c0_205 = arith.constant 0 : index
    %398 = vector.load %arg6[%c0_204, %c0_205] : memref<16x128xf32, #tpu.memory_space<vmem>>, vector<16x128xf32>
    tpu.vector_store %arg6[%c0_204, %c0_205], %396 {strides = array<i32>} : memref<16x128xf32, #tpu.memory_space<vmem>>, vector<16x128xf32>,
    %399 = arith.index_cast %c7_i32 : i32 to index
    %c0_206 = arith.constant 0 : index
    %c0_207 = arith.constant 0 : index
    %400 = vector.load %arg5[%399, %c0_206, %c0_207] : memref<8x16x128xf32, #tpu.memory_space<vmem>>, vector<1x16x128xf32>
    %401 = vector.shape_cast %400 : vector<1x16x128xf32> to vector<16x128xf32>
    %402 = vector.shape_cast %396 : vector<16x128xf32> to vector<1x16x128xf32>
    tpu.vector_store %arg5[%399, %c0_206, %c0_207], %402 {strides = array<i32>} : memref<8x16x128xf32, #tpu.memory_space<vmem>>, vector<1x16x128xf32>,
    %c8_i32 = arith.constant 8 : i32
    return
  }
  func.func @transform_0(%arg0: i32, %arg1: i32) -> (i32, i32, i32) {
    %c0_i32 = arith.constant 0 : i32
    %c0_i32_0 = arith.constant 0 : i32
    return %arg1, %arg0, %c0_i32 : i32, i32, i32
  }
  func.func @transform_1(%arg0: i32, %arg1: i32) -> (i32, i32) {
    %c0_i32 = arith.constant 0 : i32
    %c0_i32_0 = arith.constant 0 : i32
    %c0_i32_1 = arith.constant 0 : i32
    return %c0_i32, %c0_i32_0 : i32, i32
  }
  func.func @transform_2(%arg0: i32, %arg1: i32) -> (i32, i32) {
    %c0_i32 = arith.constant 0 : i32
    %c0_i32_0 = arith.constant 0 : i32
    %c0_i32_1 = arith.constant 0 : i32
    return %c0_i32, %c0_i32_0 : i32, i32
  }
  func.func @transform_3(%arg0: i32, %arg1: i32) -> (i32, i32, i32) {
    %c0_i32 = arith.constant 0 : i32
    %c0_i32_0 = arith.constant 0 : i32
    return %arg1, %arg0, %c0_i32 : i32, i32, i32
  }
}

</mosaic_0001>

<llo_original>
// kernel: encoder_forward.1
$region0: #{encoder_forward.1}
  #allocation0 [shape = 'u32[]', space=smem, size = 0x4, offset = 0x4, fixed_abs, tag = 'smem constant byte address 0x4 - core index']
  #allocation1 [shape = 'u32[144,128]{1,0:T(1,128)}', space=vmem, size = 0x12000, scoped, tag = 'internal scratch']
  #allocation2 [shape = 'f32[16,128]{1,0:T(8,128)}', space=vmem, size = 0x2000, scoped, tag = 'scratch operand']
  #allocation3 [shape = 'f32[16,128]{1,0:T(8,128)}', space=vmem, size = 0x2000, scoped, tag = 'scratch operand']
  %s0 = inlined_call_operand.vmem [shape: bf16[8,16,512], index: 0, kind: input, shape index: {}]
  %s1 = inlined_call_operand.vmem [shape: f32[1,512], index: 1, kind: input, shape index: {}]
  %s2 = inlined_call_operand.vmem [shape: bf16[128,512], index: 2, kind: input, shape index: {}]
  %s3 = inlined_call_operand.vmem [shape: f32[8,16,128], index: 3, kind: output, shape index: {}]
  %s4 = sld [smem:[#allocation0]]
  $region26: #{encoder_forward.1} parent=0
    _
  %s6 = ssub.s32 1, %s4
  %s7 = scalar_select 0, %s6, %s4
  // Predicated region
  $region2: #{encoder_forward.1} parent=0 // pred_check
    _
  $region3: #{encoder_forward.1} parent=0 // pred_check_branch
    %9 = sbr.rel (0) target = $region5
  $region4: #{encoder_forward.1} parent=0 // pred_region
    _
  $region5: #{encoder_forward.1} parent=0 // pred_fallthru
    _
  // Predicated region
  $region6: #{encoder_forward.1} parent=0 // pred_check
    _
  $region7: #{encoder_forward.1} parent=0 // pred_check_branch
    %11 = sbr.rel (0) target = $region9
  $region8: #{encoder_forward.1} parent=0 // pred_region
    _
  $region9: #{encoder_forward.1} parent=0 // pred_fallthru
    _
  // Predicated region
  $region10: #{encoder_forward.1} parent=0 // pred_check
    _
  $region11: #{encoder_forward.1} parent=0 // pred_check_branch
    %13 = sbr.rel (0) target = $region13
  $region12: #{encoder_forward.1} parent=0 // pred_region
    _
  $region13: #{encoder_forward.1} parent=0 // pred_fallthru
    _
  %p15 = scmp.eq.s32.totalorder 0, 0
  // Predicated region
  $region14: #{encoder_forward.1} parent=0 // pred_check
    %p16 = pneg %p15
  $region15: #{encoder_forward.1} parent=0 // pred_check_branch
    %18 = sbr.rel (%p16) target = $region17
  $region16: #{encoder_forward.1} parent=0 // pred_region
    %19 = vst [vmem:[#allocation2] sm:$0xff] 0.0
    %20 = vst [vmem:[#allocation2 + $0x8] sm:$0xff] 0.0
    %21 = vst [vmem:[#allocation3] sm:$0xff] 0.0
    %22 = vst [vmem:[#allocation3 + $0x8] sm:$0xff] 0.0
  $region17: #{encoder_forward.1} parent=0 // pred_fallthru
    _
  %v23 = vld [vmem:[#allocation2] sm:$0xff]
  %v24 = vld [vmem:[#allocation2 + $0x8] sm:$0xff]
  %v25 = vld [vmem:[#allocation3] sm:$0xff]
  %v26 = vld [vmem:[#allocation3 + $0x8] sm:$0xff]
  %v27 = vpack.c.bf16 %v24, %v23
  %v28 = vld [vmem:[%s2] sm:$0xff]
  %v29 = vld [vmem:[%s2 + $0x8] sm:$0xff]
  %v30 = vld [vmem:[%s2 + $0x10] sm:$0xff]
  %v31 = vld [vmem:[%s2 + $0x18] sm:$0xff]
  %v32 = vld [vmem:[%s2 + $0x20] sm:$0xff]
  %v33 = vld [vmem:[%s2 + $0x28] sm:$0xff]
  %v34 = vld [vmem:[%s2 + $0x30] sm:$0xff]
  %v35 = vld [vmem:[%s2 + $0x38] sm:$0xff]
  %v36 = vld [vmem:[%s2 + $0x40] sm:$0xff]
  %v37 = vld [vmem:[%s2 + $0x48] sm:$0xff]
  %v38 = vld [vmem:[%s2 + $0x50] sm:$0xff]
  %v39 = vld [vmem:[%s2 + $0x58] sm:$0xff]
  %v40 = vld [vmem:[%s2 + $0x60] sm:$0xff]
  %v41 = vld [vmem:[%s2 + $0x68] sm:$0xff]
  %v42 = vld [vmem:[%s2 + $0x70] sm:$0xff]
  %v43 = vld [vmem:[%s2 + $0x78] sm:$0xff]
  %v44 = vld [vmem:[%s2 + $0x80] sm:$0xff]
  %v45 = vld [vmem:[%s2 + $0x88] sm:$0xff]
  %v46 = vld [vmem:[%s2 + $0x90] sm:$0xff]
  %v47 = vld [vmem:[%s2 + $0x98] sm:$0xff]
  %v48 = vld [vmem:[%s2 + $0xa0] sm:$0xff]
  %v49 = vld [vmem:[%s2 + $0xa8] sm:$0xff]
  %v50 = vld [vmem:[%s2 + $0xb0] sm:$0xff]
  %v51 = vld [vmem:[%s2 + $0xb8] sm:$0xff]
  %v52 = vld [vmem:[%s2 + $0xc0] sm:$0xff]
  %v53 = vld [vmem:[%s2 + $0xc8] sm:$0xff]
  %v54 = vld [vmem:[%s2 + $0xd0] sm:$0xff]
  %v55 = vld [vmem:[%s2 + $0xd8] sm:$0xff]
  %v56 = vld [vmem:[%s2 + $0xe0] sm:$0xff]
  %v57 = vld [vmem:[%s2 + $0xe8] sm:$0xff]
  %v58 = vld [vmem:[%s2 + $0xf0] sm:$0xff]
  %v59 = vld [vmem:[%s2 + $0xf8] sm:$0xff]
  %v60 = vld [vmem:[%s0] sm:$0xff]
  %v61 = vld [vmem:[%s0 + $0x8] sm:$0xff]
  %v62 = vld [vmem:[%s0 + $0x10] sm:$0xff]
  %v63 = vld [vmem:[%s0 + $0x18] sm:$0xff]
  %v64 = vunpack.c.l.bf16 %v60
  %v65 = vunpack.c.h.bf16 %v60
  %v66 = vunpack.c.l.bf16 %v61
  %v67 = vunpack.c.h.bf16 %v61
  %v68 = vunpack.c.l.bf16 %v62
  %v69 = vunpack.c.h.bf16 %v62
  %v70 = vunpack.c.l.bf16 %v63
  %v71 = vunpack.c.h.bf16 %v63
  %v104 = vunpack.c.l.b16 %v28
  %v105 = vunpack.c.h.b16 %v28
  %v106 = vunpack.c.l.b16 %v29
  %v107 = vunpack.c.h.b16 %v29
  %v108 = vunpack.c.l.b16 %v30
  %v109 = vunpack.c.h.b16 %v30
  %v110 = vunpack.c.l.b16 %v31
  %v111 = vunpack.c.h.b16 %v31
  %v112 = vunpack.c.l.b16 %v32
  %v113 = vunpack.c.h.b16 %v32
  %v114 = vunpack.c.l.b16 %v33
  %v115 = vunpack.c.h.b16 %v33
  %v116 = vunpack.c.l.b16 %v34
  %v117 = vunpack.c.h.b16 %v34
  %v118 = vunpack.c.l.b16 %v35
  %v119 = vunpack.c.h.b16 %v35
  %v120 = vunpack.c.l.b16 %v36
  %v121 = vunpack.c.h.b16 %v36
  %v122 = vunpack.c.l.b16 %v37
  %v123 = vunpack.c.h.b16 %v37
  %v124 = vunpack.c.l.b16 %v38
  %v125 = vunpack.c.h.b16 %v38
  %v126 = vunpack.c.l.b16 %v39
  %v127 = vunpack.c.h.b16 %v39
  %v128 = vunpack.c.l.b16 %v40
  %v129 = vunpack.c.h.b16 %v40
  %v130 = vunpack.c.l.b16 %v41
  %v131 = vunpack.c.h.b16 %v41
  %v132 = vunpack.c.l.b16 %v42
  %v133 = vunpack.c.h.b16 %v42
  %v134 = vunpack.c.l.b16 %v43
  %v135 = vunpack.c.h.b16 %v43
  %v136 = vunpack.c.l.b16 %v44
  %v137 = vunpack.c.h.b16 %v44
  %v138 = vunpack.c.l.b16 %v45
  %v139 = vunpack.c.h.b16 %v45
  %v140 = vunpack.c.l.b16 %v46
  %v141 = vunpack.c.h.b16 %v46
  %v142 = vunpack.c.l.b16 %v47
  %v143 = vunpack.c.h.b16 %v47
  %v144 = vunpack.c.l.b16 %v48
  %v145 = vunpack.c.h.b16 %v48
  %v146 = vunpack.c.l.b16 %v49
  %v147 = vunpack.c.h.b16 %v49
  %v148 = vunpack.c.l.b16 %v50
  %v149 = vunpack.c.h.b16 %v50
  %v150 = vunpack.c.l.b16 %v51
  %v151 = vunpack.c.h.b16 %v51
  %v152 = vunpack.c.l.b16 %v52
  %v153 = vunpack.c.h.b16 %v52
  %v154 = vunpack.c.l.b16 %v53
  %v155 = vunpack.c.h.b16 %v53
  %v156 = vunpack.c.l.b16 %v54
  %v157 = vunpack.c.h.b16 %v54
  %v158 = vunpack.c.l.b16 %v55
  %v159 = vunpack.c.h.b16 %v55
  %v160 = vunpack.c.l.b16 %v56
  %v161 = vunpack.c.h.b16 %v56
  %v162 = vunpack.c.l.b16 %v57
  %v163 = vunpack.c.h.b16 %v57
  %v164 = vunpack.c.l.b16 %v58
  %v165 = vunpack.c.h.b16 %v58
  %v166 = vunpack.c.l.b16 %v59
  %v167 = vunpack.c.h.b16 %v59
  %v168 = vpack.c.b16 %v108, %v104
  %v169 = vpack.c.b16 %v109, %v105
  %v170 = vpack.c.b16 %v110, %v106
  %v171 = vpack.c.b16 %v111, %v107
  %v172 = vpack.c.b16 %v116, %v112
  %v173 = vpack.c.b16 %v117, %v113
  %v174 = vpack.c.b16 %v118, %v114
  %v175 = vpack.c.b16 %v119, %v115
  %v176 = vpack.c.b16 %v124, %v120
  %v177 = vpack.c.b16 %v125, %v121
  %v178 = vpack.c.b16 %v126, %v122
  %v179 = vpack.c.b16 %v127, %v123
  %v180 = vpack.c.b16 %v132, %v128
  %v181 = vpack.c.b16 %v133, %v129
  %v182 = vpack.c.b16 %v134, %v130
  %v183 = vpack.c.b16 %v135, %v131
  %v184 = vpack.c.b16 %v140, %v136
  %v185 = vpack.c.b16 %v141, %v137
  %v186 = vpack.c.b16 %v142, %v138
  %v187 = vpack.c.b16 %v143, %v139
  %v188 = vpack.c.b16 %v148, %v144
  %v189 = vpack.c.b16 %v149, %v145
  %v190 = vpack.c.b16 %v150, %v146
  %v191 = vpack.c.b16 %v151, %v147
  %v192 = vpack.c.b16 %v156, %v152
  %v193 = vpack.c.b16 %v157, %v153
  %v194 = vpack.c.b16 %v158, %v154
  %v195 = vpack.c.b16 %v159, %v155
  %v196 = vpack.c.b16 %v164, %v160
  %v197 = vpack.c.b16 %v165, %v161
  %v198 = vpack.c.b16 %v166, %v162
  %v199 = vpack.c.b16 %v167, %v163
  %232 = vmatprep.subr.bf16.mxu0 %v169
  %233 = vmatpush1.bf16.msra.mxu0 %v168
  %234 = vmatprep.subr.bf16.mxu0 %v173
  %235 = vmatpush1.bf16.msra.mxu0 %v172
  %236 = vmatprep.subr.bf16.mxu0 %v177
  %237 = vmatpush1.bf16.msra.mxu0 %v176
  %238 = vmatprep.subr.bf16.mxu0 %v181
  %239 = vmatpush1.bf16.msra.mxu0 %v180
  %240 = vmatprep.subr.bf16.mxu0 %v185
  %241 = vmatpush1.bf16.msra.mxu0 %v184
  %242 = vmatprep.subr.bf16.mxu0 %v189
  %243 = vmatpush1.bf16.msra.mxu0 %v188
  %244 = vmatprep.subr.bf16.mxu0 %v193
  %245 = vmatpush1.bf16.msra.mxu0 %v192
  %246 = vmatprep.subr.bf16.mxu0 %v197
  %247 = vmatpush1.bf16.msra.mxu0 %v196
  %248 = vmatprep.subr.bf16.mxu0 0
  %249 = vmatpush1.bf16.msra.mxu0 0
  %250 = vmatprep.subr.bf16.mxu0 0
  %251 = vmatpush1.bf16.msra.mxu0 0
  %252 = vmatprep.subr.bf16.mxu0 0
  %253 = vmatpush1.bf16.msra.mxu0 0
  %254 = vmatprep.subr.bf16.mxu0 0
  %255 = vmatpush1.bf16.msra.mxu0 0
  %256 = vmatprep.subr.bf16.mxu0 0
  %257 = vmatpush1.bf16.msra.mxu0 0
  %258 = vmatprep.subr.bf16.mxu0 0
  %259 = vmatpush1.bf16.msra.mxu0 0
  %260 = vmatprep.subr.bf16.mxu0 0
  %261 = vmatpush1.bf16.msra.mxu0 0
  %262 = vmatprep.subr.bf16.mxu0 0
  %263 = vmatpush1.bf16.msra.mxu0 0
  %264 = vmatprep.mubr.bf16.mxu0 0
  %265 = vmatmul.mubr.bf16.gmra.mrb[0].mxu0 %v27
  %v266 = vpop.f32.mrb[0].mxu0
  %v267 = vadd.f32 %v64, %v266
  %v268 = vpop.f32.mrb[0].mxu0
  %v269 = vadd.f32 %v65, %v268
  %v270 = vpop.f32.mrb[0].mxu0
  %v271 = vadd.f32 %v68, %v270
  %v272 = vpop.f32.mrb[0].mxu0
  %v273 = vadd.f32 %v69, %v272
  %274 = vdwg.mxu0
  %275 = vmatprep.subr.bf16.mxu0 %v171
  %276 = vmatpush1.bf16.msra.mxu0 %v170
  %277 = vmatprep.subr.bf16.mxu0 %v175
  %278 = vmatpush1.bf16.msra.mxu0 %v174
  %279 = vmatprep.subr.bf16.mxu0 %v179
  %280 = vmatpush1.bf16.msra.mxu0 %v178
  %281 = vmatprep.subr.bf16.mxu0 %v183
  %282 = vmatpush1.bf16.msra.mxu0 %v182
  %283 = vmatprep.subr.bf16.mxu0 %v187
  %284 = vmatpush1.bf16.msra.mxu0 %v186
  %285 = vmatprep.subr.bf16.mxu0 %v191
  %286 = vmatpush1.bf16.msra.mxu0 %v190
  %287 = vmatprep.subr.bf16.mxu0 %v195
  %288 = vmatpush1.bf16.msra.mxu0 %v194
  %289 = vmatprep.subr.bf16.mxu0 %v199
  %290 = vmatpush1.bf16.msra.mxu0 %v198
  %291 = vmatprep.subr.bf16.mxu0 0
  %292 = vmatpush1.bf16.msra.mxu0 0
  %293 = vmatprep.subr.bf16.mxu0 0
  %294 = vmatpush1.bf16.msra.mxu0 0
  %295 = vmatprep.subr.bf16.mxu0 0
  %296 = vmatpush1.bf16.msra.mxu0 0
  %297 = vmatprep.subr.bf16.mxu0 0
  %298 = vmatpush1.bf16.msra.mxu0 0
  %299 = vmatprep.subr.bf16.mxu0 0
  %300 = vmatpush1.bf16.msra.mxu0 0
  %301 = vmatprep.subr.bf16.mxu0 0
  %302 = vmatpush1.bf16.msra.mxu0 0
  %303 = vmatprep.subr.bf16.mxu0 0
  %304 = vmatpush1.bf16.msra.mxu0 0
  %305 = vmatprep.subr.bf16.mxu0 0
  %306 = vmatpush1.bf16.msra.mxu0 0
  %307 = vmatprep.mubr.bf16.mxu0 0
  %308 = vmatmul.mubr.bf16.gmra.mrb[0].mxu0 %v27
  %v309 = vpop.f32.mrb[0].mxu0
  %v310 = vadd.f32 %v66, %v309
  %v311 = vpop.f32.mrb[0].mxu0
  %v312 = vadd.f32 %v67, %v311
  %v313 = vpop.f32.mrb[0].mxu0
  %v314 = vadd.f32 %v70, %v313
  %v315 = vpop.f32.mrb[0].mxu0
  %v316 = vadd.f32 %v71, %v315
  %317 = vdwg.mxu0
  %v318 = vld [vmem:[%s1] sm:$0xf]
  %v320 = vlaneseq
  %v321 = vshrl.u32 %v320, 7
  %v322 = vsub.s32 0, %v321
  %v323 = vrot.slane %v318, %v322
  %v324 = vlaneseq
  %v325 = vshrl.u32 %v324, 7
  %v326 = vsub.s32 1, %v325
  %v327 = vrot.slane %v318, %v326
  %v328 = vlaneseq
  %v329 = vshrl.u32 %v328, 7
  %v330 = vsub.s32 2, %v329
  %v331 = vrot.slane %v318, %v330
  %v332 = vlaneseq
  %v333 = vshrl.u32 %v332, 7
  %v334 = vsub.s32 3, %v333
  %v335 = vrot.slane %v318, %v334
  %v340 = vadd.f32 %v267, %v323
  %v341 = vadd.f32 %v269, %v327
  %v342 = vadd.f32 %v310, %v331
  %v343 = vadd.f32 %v312, %v335
  %v344 = vadd.f32 %v271, %v323
  %v345 = vadd.f32 %v273, %v327
  %v346 = vadd.f32 %v314, %v331
  %v347 = vadd.f32 %v316, %v335
  %v348 = vmul.f32 %v340, 0.5
  %v349 = vmul.f32 %v344, 0.5
  %v350 = vtanh.pop %v348
  %v351 = vtanh.pop %v349
  %v352 = vadd.f32 %v350, 1.0
  %v353 = vadd.f32 %v351, 1.0
  %v354 = vmul.f32 %v352, 0.5
  %v355 = vmul.f32 %v353, 0.5
  %v356 = vmul.f32 %v341, 0.5
  %v357 = vmul.f32 %v345, 0.5
  %v358 = vtanh.pop %v356
  %v359 = vtanh.pop %v357
  %v360 = vadd.f32 %v358, 1.0
  %v361 = vadd.f32 %v359, 1.0
  %v362 = vmul.f32 %v360, 0.5
  %v363 = vmul.f32 %v361, 0.5
  %v364 = vtanh.pop %v342
  %v365 = vtanh.pop %v346
  %v366 = vmul.f32 %v343, 0.5
  %v367 = vmul.f32 %v347, 0.5
  %v368 = vtanh.pop %v366
  %v369 = vtanh.pop %v367
  %v370 = vadd.f32 %v368, 1.0
  %v371 = vadd.f32 %v369, 1.0
  %v372 = vmul.f32 %v370, 0.5
  %v373 = vmul.f32 %v371, 0.5
  %v374 = vmul.f32 %v362, %v25
  %v375 = vmul.f32 %v363, %v26
  %v376 = vmul.f32 %v354, %v364
  %v377 = vmul.f32 %v355, %v365
  %v378 = vadd.f32 %v374, %v376
  %v379 = vadd.f32 %v375, %v377
  %v380 = vtanh.pop %v378
  %v381 = vtanh.pop %v379
  %v382 = vmul.f32 %v372, %v380
  %v383 = vmul.f32 %v373, %v381
  %384 = vst [vmem:[#allocation3] sm:$0xff] %v378
  %385 = vst [vmem:[#allocation3 + $0x8] sm:$0xff] %v379
  %386 = vst [vmem:[#allocation2] sm:$0xff] %v382
  %387 = vst [vmem:[#allocation2 + $0x8] sm:$0xff] %v383
  %388 = vst [vmem:[%s3] sm:$0xff] %v382
  %389 = vst [vmem:[%s3 + $0x8] sm:$0xff] %v383
  %v390 = vld [vmem:[#allocation2] sm:$0xff]
  %v391 = vld [vmem:[#allocation2 + $0x8] sm:$0xff]
  %v392 = vld [vmem:[#allocation3] sm:$0xff]
  %v393 = vld [vmem:[#allocation3 + $0x8] sm:$0xff]
  %v394 = vpack.c.bf16 %v391, %v390
  %v395 = vld [vmem:[%s2] sm:$0xff]
  %v396 = vld [vmem:[%s2 + $0x8] sm:$0xff]
  %v397 = vld [vmem:[%s2 + $0x10] sm:$0xff]
  %v398 = vld [vmem:[%s2 + $0x18] sm:$0xff]
  %v399 = vld [vmem:[%s2 + $0x20] sm:$0xff]
  %v400 = vld [vmem:[%s2 + $0x28] sm:$0xff]
  %v401 = vld [vmem:[%s2 + $0x30] sm:$0xff]
  %v402 = vld [vmem:[%s2 + $0x38] sm:$0xff]
  %v403 = vld [vmem:[%s2 + $0x40] sm:$0xff]
  %v404 = vld [vmem:[%s2 + $0x48] sm:$0xff]
  %v405 = vld [vmem:[%s2 + $0x50] sm:$0xff]
  %v406 = vld [vmem:[%s2 + $0x58] sm:$0xff]
  %v407 = vld [vmem:[%s2 + $0x60] sm:$0xff]
  %v408 = vld [vmem:[%s2 + $0x68] sm:$0xff]
  %v409 = vld [vmem:[%s2 + $0x70] sm:$0xff]
  %v410 = vld [vmem:[%s2 + $0x78] sm:$0xff]
  %v411 = vld [vmem:[%s2 + $0x80] sm:$0xff]
  %v412 = vld [vmem:[%s2 + $0x88] sm:$0xff]
  %v413 = vld [vmem:[%s2 + $0x90] sm:$0xff]
  %v414 = vld [vmem:[%s2 + $0x98] sm:$0xff]
  %v415 = vld [vmem:[%s2 + $0xa0] sm:$0xff]
  %v416 = vld [vmem:[%s2 + $0xa8] sm:$0xff]
  %v417 = vld [vmem:[%s2 + $0xb0] sm:$0xff]
  %v418 = vld [vmem:[%s2 + $0xb8] sm:$0xff]
  %v419 = vld [vmem:[%s2 + $0xc0] sm:$0xff]
  %v420 = vld [vmem:[%s2 + $0xc8] sm:$0xff]
  %v421 = vld [vmem:[%s2 + $0xd0] sm:$0xff]
  %v422 = vld [vmem:[%s2 + $0xd8] sm:$0xff]
  %v423 = vld [vmem:[%s2 + $0xe0] sm:$0xff]
  %v424 = vld [vmem:[%s2 + $0xe8] sm:$0xff]
  %v425 = vld [vmem:[%s2 + $0xf0] sm:$0xff]
  %v426 = vld [vmem:[%s2 + $0xf8] sm:$0xff]
  %s427 = scalar_lea.vmem %s0, 32
  %v428 = vld [vmem:[%s427] sm:$0xff]
  %v429 = vld [vmem:[%s427 + $0x8] sm:$0xff]
  %v430 = vld [vmem:[%s427 + $0x10] sm:$0xff]
  %v431 = vld [vmem:[%s427 + $0x18] sm:$0xff]
  %v432 = vunpack.c.l.bf16 %v428
  %v433 = vunpack.c.h.bf16 %v428
  %v434 = vunpack.c.l.bf16 %v429
  %v435 = vunpack.c.h.bf16 %v429
  %v436 = vunpack.c.l.bf16 %v430
  %v437 = vunpack.c.h.bf16 %v430
  %v438 = vunpack.c.l.bf16 %v431
  %v439 = vunpack.c.h.bf16 %v431
  %v472 = vunpack.c.l.b16 %v395
  %v473 = vunpack.c.h.b16 %v395
  %v474 = vunpack.c.l.b16 %v396
  %v475 = vunpack.c.h.b16 %v396
  %v476 = vunpack.c.l.b16 %v397
  %v477 = vunpack.c.h.b16 %v397
  %v478 = vunpack.c.l.b16 %v398
  %v479 = vunpack.c.h.b16 %v398
  %v480 = vunpack.c.l.b16 %v399
  %v481 = vunpack.c.h.b16 %v399
  %v482 = vunpack.c.l.b16 %v400
  %v483 = vunpack.c.h.b16 %v400
  %v484 = vunpack.c.l.b16 %v401
  %v485 = vunpack.c.h.b16 %v401
  %v486 = vunpack.c.l.b16 %v402
  %v487 = vunpack.c.h.b16 %v402
  %v488 = vunpack.c.l.b16 %v403
  %v489 = vunpack.c.h.b16 %v403
  %v490 = vunpack.c.l.b16 %v404
  %v491 = vunpack.c.h.b16 %v404
  %v492 = vunpack.c.l.b16 %v405
  %v493 = vunpack.c.h.b16 %v405
  %v494 = vunpack.c.l.b16 %v406
  %v495 = vunpack.c.h.b16 %v406
  %v496 = vunpack.c.l.b16 %v407
  %v497 = vunpack.c.h.b16 %v407
  %v498 = vunpack.c.l.b16 %v408
  %v499 = vunpack.c.h.b16 %v408
  %v500 = vunpack.c.l.b16 %v409
  %v501 = vunpack.c.h.b16 %v409
  %v502 = vunpack.c.l.b16 %v410
  %v503 = vunpack.c.h.b16 %v410
  %v504 = vunpack.c.l.b16 %v411
  %v505 = vunpack.c.h.b16 %v411
  %v506 = vunpack.c.l.b16 %v412
  %v507 = vunpack.c.h.b16 %v412
  %v508 = vunpack.c.l.b16 %v413
  %v509 = vunpack.c.h.b16 %v413
  %v510 = vunpack.c.l.b16 %v414
  %v511 = vunpack.c.h.b16 %v414
  %v512 = vunpack.c.l.b16 %v415
  %v513 = vunpack.c.h.b16 %v415
  %v514 = vunpack.c.l.b16 %v416
  %v515 = vunpack.c.h.b16 %v416
  %v516 = vunpack.c.l.b16 %v417
  %v517 = vunpack.c.h.b16 %v417
  %v518 = vunpack.c.l.b16 %v418
  %v519 = vunpack.c.h.b16 %v418
  %v520 = vunpack.c.l.b16 %v419
  %v521 = vunpack.c.h.b16 %v419
  %v522 = vunpack.c.l.b16 %v420
  %v523 = vunpack.c.h.b16 %v420
  %v524 = vunpack.c.l.b16 %v421
  %v525 = vunpack.c.h.b16 %v421
  %v526 = vunpack.c.l.b16 %v422
  %v527 = vunpack.c.h.b16 %v422
  %v528 = vunpack.c.l.b16 %v423
  %v529 = vunpack.c.h.b16 %v423
  %v530 = vunpack.c.l.b16 %v424
  %v531 = vunpack.c.h.b16 %v424
  %v532 = vunpack.c.l.b16 %v425
  %v533 = vunpack.c.h.b16 %v425
  %v534 = vunpack.c.l.b16 %v426
  %v535 = vunpack.c.h.b16 %v426
  %v536 = vpack.c.b16 %v476, %v472
  %v537 = vpack.c.b16 %v477, %v473
  %v538 = vpack.c.b16 %v478, %v474
  %v539 = vpack.c.b16 %v479, %v475
  %v540 = vpack.c.b16 %v484, %v480
  %v541 = vpack.c.b16 %v485, %v481
  %v542 = vpack.c.b16 %v486, %v482
  %v543 = vpack.c.b16 %v487, %v483
  %v544 = vpack.c.b16 %v492, %v488
  %v545 = vpack.c.b16 %v493, %v489
  %v546 = vpack.c.b16 %v494, %v490
  %v547 = vpack.c.b16 %v495, %v491
  %v548 = vpack.c.b16 %v500, %v496
  %v549 = vpack.c.b16 %v501, %v497
  %v550 = vpack.c.b16 %v502, %v498
  %v551 = vpack.c.b16 %v503, %v499
  %v552 = vpack.c.b16 %v508, %v504
  %v553 = vpack.c.b16 %v509, %v505
  %v554 = vpack.c.b16 %v510, %v506
  %v555 = vpack.c.b16 %v511, %v507
  %v556 = vpack.c.b16 %v516, %v512
  %v557 = vpack.c.b16 %v517, %v513
  %v558 = vpack.c.b16 %v518, %v514
  %v559 = vpack.c.b16 %v519, %v515
  %v560 = vpack.c.b16 %v524, %v520
  %v561 = vpack.c.b16 %v525, %v521
  %v562 = vpack.c.b16 %v526, %v522
  %v563 = vpack.c.b16 %v527, %v523
  %v564 = vpack.c.b16 %v532, %v528
  %v565 = vpack.c.b16 %v533, %v529
  %v566 = vpack.c.b16 %v534, %v530
  %v567 = vpack.c.b16 %v535, %v531
  %600 = vmatprep.subr.bf16.mxu0 %v537
  %601 = vmatpush1.bf16.msra.mxu0 %v536
  %602 = vmatprep.subr.bf16.mxu0 %v541
  %603 = vmatpush1.bf16.msra.mxu0 %v540
  %604 = vmatprep.subr.bf16.mxu0 %v545
  %605 = vmatpush1.bf16.msra.mxu0 %v544
  %606 = vmatprep.subr.bf16.mxu0 %v549
  %607 = vmatpush1.bf16.msra.mxu0 %v548
  %608 = vmatprep.subr.bf16.mxu0 %v553
  %609 = vmatpush1.bf16.msra.mxu0 %v552
  %610 = vmatprep.subr.bf16.mxu0 %v557
  %611 = vmatpush1.bf16.msra.mxu0 %v556
  %612 = vmatprep.subr.bf16.mxu0 %v561
  %613 = vmatpush1.bf16.msra.mxu0 %v560
  %614 = vmatprep.subr.bf16.mxu0 %v565
  %615 = vmatpush1.bf16.msra.mxu0 %v564
  %616 = vmatprep.subr.bf16.mxu0 0
  %617 = vmatpush1.bf16.msra.mxu0 0
  %618 = vmatprep.subr.bf16.mxu0 0
  %619 = vmatpush1.bf16.msra.mxu0 0
  %620 = vmatprep.subr.bf16.mxu0 0
  %621 = vmatpush1.bf16.msra.mxu0 0
  %622 = vmatprep.subr.bf16.mxu0 0
  %623 = vmatpush1.bf16.msra.mxu0 0
  %624 = vmatprep.subr.bf16.mxu0 0
  %625 = vmatpush1.bf16.msra.mxu0 0
  %626 = vmatprep.subr.bf16.mxu0 0
  %627 = vmatpush1.bf16.msra.mxu0 0
  %628 = vmatprep.subr.bf16.mxu0 0
  %629 = vmatpush1.bf16.msra.mxu0 0
  %630 = vmatprep.subr.bf16.mxu0 0
  %631 = vmatpush1.bf16.msra.mxu0 0
  %632 = vmatprep.mubr.bf16.mxu0 0
  %633 = vmatmul.mubr.bf16.gmra.mrb[0].mxu0 %v394
  %v634 = vpop.f32.mrb[0].mxu0
  %v635 = vadd.f32 %v432, %v634
  %v636 = vpop.f32.mrb[0].mxu0
  %v637 = vadd.f32 %v433, %v636
  %v638 = vpop.f32.mrb[0].mxu0
  %v639 = vadd.f32 %v436, %v638
  %v640 = vpop.f32.mrb[0].mxu0
  %v641 = vadd.f32 %v437, %v640
  %642 = vdwg.mxu0
  %643 = vmatprep.subr.bf16.mxu0 %v539
  %644 = vmatpush1.bf16.msra.mxu0 %v538
  %645 = vmatprep.subr.bf16.mxu0 %v543
  %646 = vmatpush1.bf16.msra.mxu0 %v542
  %647 = vmatprep.subr.bf16.mxu0 %v547
  %648 = vmatpush1.bf16.msra.mxu0 %v546
  %649 = vmatprep.subr.bf16.mxu0 %v551
  %650 = vmatpush1.bf16.msra.mxu0 %v550
  %651 = vmatprep.subr.bf16.mxu0 %v555
  %652 = vmatpush1.bf16.msra.mxu0 %v554
  %653 = vmatprep.subr.bf16.mxu0 %v559
  %654 = vmatpush1.bf16.msra.mxu0 %v558
  %655 = vmatprep.subr.bf16.mxu0 %v563
  %656 = vmatpush1.bf16.msra.mxu0 %v562
  %657 = vmatprep.subr.bf16.mxu0 %v567
  %658 = vmatpush1.bf16.msra.mxu0 %v566
  %659 = vmatprep.subr.bf16.mxu0 0
  %660 = vmatpush1.bf16.msra.mxu0 0
  %661 = vmatprep.subr.bf16.mxu0 0
  %662 = vmatpush1.bf16.msra.mxu0 0
  %663 = vmatprep.subr.bf16.mxu0 0
  %664 = vmatpush1.bf16.msra.mxu0 0
  %665 = vmatprep.subr.bf16.mxu0 0
  %666 = vmatpush1.bf16.msra.mxu0 0
  %667 = vmatprep.subr.bf16.mxu0 0
  %668 = vmatpush1.bf16.msra.mxu0 0
  %669 = vmatprep.subr.bf16.mxu0 0
  %670 = vmatpush1.bf16.msra.mxu0 0
  %671 = vmatprep.subr.bf16.mxu0 0
  %672 = vmatpush1.bf16.msra.mxu0 0
  %673 = vmatprep.subr.bf16.mxu0 0
  %674 = vmatpush1.bf16.msra.mxu0 0
  %675 = vmatprep.mubr.bf16.mxu0 0
  %676 = vmatmul.mubr.bf16.gmra.mrb[0].mxu0 %v394
  %v677 = vpop.f32.mrb[0].mxu0
  %v678 = vadd.f32 %v434, %v677
  %v679 = vpop.f32.mrb[0].mxu0
  %v680 = vadd.f32 %v435, %v679
  %v681 = vpop.f32.mrb[0].mxu0
  %v682 = vadd.f32 %v438, %v681
  %v683 = vpop.f32.mrb[0].mxu0
  %v684 = vadd.f32 %v439, %v683
  %685 = vdwg.mxu0
  %v686 = vld [vmem:[%s1] sm:$0xf]
  %v688 = vlaneseq
  %v689 = vshrl.u32 %v688, 7
  %v690 = vsub.s32 0, %v689
  %v691 = vrot.slane %v686, %v690
  %v692 = vlaneseq
  %v693 = vshrl.u32 %v692, 7
  %v694 = vsub.s32 1, %v693
  %v695 = vrot.slane %v686, %v694
  %v696 = vlaneseq
  %v697 = vshrl.u32 %v696, 7
  %v698 = vsub.s32 2, %v697
  %v699 = vrot.slane %v686, %v698
  %v700 = vlaneseq
  %v701 = vshrl.u32 %v700, 7
  %v702 = vsub.s32 3, %v701
  %v703 = vrot.slane %v686, %v702
  %v708 = vadd.f32 %v635, %v691
  %v709 = vadd.f32 %v637, %v695
  %v710 = vadd.f32 %v678, %v699
  %v711 = vadd.f32 %v680, %v703
  %v712 = vadd.f32 %v639, %v691
  %v713 = vadd.f32 %v641, %v695
  %v714 = vadd.f32 %v682, %v699
  %v715 = vadd.f32 %v684, %v703
  %v716 = vmul.f32 %v708, 0.5
  %v717 = vmul.f32 %v712, 0.5
  %v718 = vtanh.pop %v716
  %v719 = vtanh.pop %v717
  %v720 = vadd.f32 %v718, 1.0
  %v721 = vadd.f32 %v719, 1.0
  %v722 = vmul.f32 %v720, 0.5
  %v723 = vmul.f32 %v721, 0.5
  %v724 = vmul.f32 %v709, 0.5
  %v725 = vmul.f32 %v713, 0.5
  %v726 = vtanh.pop %v724
  %v727 = vtanh.pop %v725
  %v728 = vadd.f32 %v726, 1.0
  %v729 = vadd.f32 %v727, 1.0
  %v730 = vmul.f32 %v728, 0.5
  %v731 = vmul.f32 %v729, 0.5
  %v732 = vtanh.pop %v710
  %v733 = vtanh.pop %v714
  %v734 = vmul.f32 %v711, 0.5
  %v735 = vmul.f32 %v715, 0.5
  %v736 = vtanh.pop %v734
  %v737 = vtanh.pop %v735
  %v738 = vadd.f32 %v736, 1.0
  %v739 = vadd.f32 %v737, 1.0
  %v740 = vmul.f32 %v738, 0.5
  %v741 = vmul.f32 %v739, 0.5
  %v742 = vmul.f32 %v730, %v392
  %v743 = vmul.f32 %v731, %v393
  %v744 = vmul.f32 %v722, %v732
  %v745 = vmul.f32 %v723, %v733
  %v746 = vadd.f32 %v742, %v744
  %v747 = vadd.f32 %v743, %v745
  %v748 = vtanh.pop %v746
  %v749 = vtanh.pop %v747
  %v750 = vmul.f32 %v740, %v748
  %v751 = vmul.f32 %v741, %v749
  %752 = vst [vmem:[#allocation3] sm:$0xff] %v746
  %753 = vst [vmem:[#allocation3 + $0x8] sm:$0xff] %v747
  %754 = vst [vmem:[#allocation2] sm:$0xff] %v750
  %755 = vst [vmem:[#allocation2 + $0x8] sm:$0xff] %v751
  %s756 = scalar_lea.vmem %s3, 16
  %757 = vst [vmem:[%s756] sm:$0xff] %v750
  %758 = vst [vmem:[%s756 + $0x8] sm:$0xff] %v751
  %v759 = vld [vmem:[#allocation2] sm:$0xff]
  %v760 = vld [vmem:[#allocation2 + $0x8] sm:$0xff]
  %v761 = vld [vmem:[#allocation3] sm:$0xff]
  %v762 = vld [vmem:[#allocation3 + $0x8] sm:$0xff]
  %v763 = vpack.c.bf16 %v760, %v759
  %v764 = vld [vmem:[%s2] sm:$0xff]
  %v765 = vld [vmem:[%s2 + $0x8] sm:$0xff]
  %v766 = vld [vmem:[%s2 + $0x10] sm:$0xff]
  %v767 = vld [vmem:[%s2 + $0x18] sm:$0xff]
  %v768 = vld [vmem:[%s2 + $0x20] sm:$0xff]
  %v769 = vld [vmem:[%s2 + $0x28] sm:$0xff]
  %v770 = vld [vmem:[%s2 + $0x30] sm:$0xff]
  %v771 = vld [vmem:[%s2 + $0x38] sm:$0xff]
  %v772 = vld [vmem:[%s2 + $0x40] sm:$0xff]
  %v773 = vld [vmem:[%s2 + $0x48] sm:$0xff]
  %v774 = vld [vmem:[%s2 + $0x50] sm:$0xff]
  %v775 = vld [vmem:[%s2 + $0x58] sm:$0xff]
  %v776 = vld [vmem:[%s2 + $0x60] sm:$0xff]
  %v777 = vld [vmem:[%s2 + $0x68] sm:$0xff]
  %v778 = vld [vmem:[%s2 + $0x70] sm:$0xff]
  %v779 = vld [vmem:[%s2 + $0x78] sm:$0xff]
  %v780 = vld [vmem:[%s2 + $0x80] sm:$0xff]
  %v781 = vld [vmem:[%s2 + $0x88] sm:$0xff]
  %v782 = vld [vmem:[%s2 + $0x90] sm:$0xff]
  %v783 = vld [vmem:[%s2 + $0x98] sm:$0xff]
  %v784 = vld [vmem:[%s2 + $0xa0] sm:$0xff]
  %v785 = vld [vmem:[%s2 + $0xa8] sm:$0xff]
  %v786 = vld [vmem:[%s2 + $0xb0] sm:$0xff]
  %v787 = vld [vmem:[%s2 + $0xb8] sm:$0xff]
  %v788 = vld [vmem:[%s2 + $0xc0] sm:$0xff]
  %v789 = vld [vmem:[%s2 + $0xc8] sm:$0xff]
  %v790 = vld [vmem:[%s2 + $0xd0] sm:$0xff]
  %v791 = vld [vmem:[%s2 + $0xd8] sm:$0xff]
  %v792 = vld [vmem:[%s2 + $0xe0] sm:$0xff]
  %v793 = vld [vmem:[%s2 + $0xe8] sm:$0xff]
  %v794 = vld [vmem:[%s2 + $0xf0] sm:$0xff]
  %v795 = vld [vmem:[%s2 + $0xf8] sm:$0xff]
  %s796 = scalar_lea.vmem %s0, 64
  %v797 = vld [vmem:[%s796] sm:$0xff]
  %v798 = vld [vmem:[%s796 + $0x8] sm:$0xff]
  %v799 = vld [vmem:[%s796 + $0x10] sm:$0xff]
  %v800 = vld [vmem:[%s796 + $0x18] sm:$0xff]
  %v801 = vunpack.c.l.bf16 %v797
  %v802 = vunpack.c.h.bf16 %v797
  %v803 = vunpack.c.l.bf16 %v798
  %v804 = vunpack.c.h.bf16 %v798
  %v805 = vunpack.c.l.bf16 %v799
  %v806 = vunpack.c.h.bf16 %v799
  %v807 = vunpack.c.l.bf16 %v800
  %v808 = vunpack.c.h.bf16 %v800
  %v841 = vunpack.c.l.b16 %v764
  %v842 = vunpack.c.h.b16 %v764
  %v843 = vunpack.c.l.b16 %v765
  %v844 = vunpack.c.h.b16 %v765
  %v845 = vunpack.c.l.b16 %v766
  %v846 = vunpack.c.h.b16 %v766
  %v847 = vunpack.c.l.b16 %v767
  %v848 = vunpack.c.h.b16 %v767
  %v849 = vunpack.c.l.b16 %v768
  %v850 = vunpack.c.h.b16 %v768
  %v851 = vunpack.c.l.b16 %v769
  %v852 = vunpack.c.h.b16 %v769
  %v853 = vunpack.c.l.b16 %v770
  %v854 = vunpack.c.h.b16 %v770
  %v855 = vunpack.c.l.b16 %v771
  %v856 = vunpack.c.h.b16 %v771
  %v857 = vunpack.c.l.b16 %v772
  %v858 = vunpack.c.h.b16 %v772
  %v859 = vunpack.c.l.b16 %v773
  %v860 = vunpack.c.h.b16 %v773
  %v861 = vunpack.c.l.b16 %v774
  %v862 = vunpack.c.h.b16 %v774
  %v863 = vunpack.c.l.b16 %v775
  %v864 = vunpack.c.h.b16 %v775
  %v865 = vunpack.c.l.b16 %v776
  %v866 = vunpack.c.h.b16 %v776
  %v867 = vunpack.c.l.b16 %v777
  %v868 = vunpack.c.h.b16 %v777
  %v869 = vunpack.c.l.b16 %v778
  %v870 = vunpack.c.h.b16 %v778
  %v871 = vunpack.c.l.b16 %v779
  %v872 = vunpack.c.h.b16 %v779
  %v873 = vunpack.c.l.b16 %v780
  %v874 = vunpack.c.h.b16 %v780
  %v875 = vunpack.c.l.b16 %v781
  %v876 = vunpack.c.h.b16 %v781
  %v877 = vunpack.c.l.b16 %v782
  %v878 = vunpack.c.h.b16 %v782
  %v879 = vunpack.c.l.b16 %v783
  %v880 = vunpack.c.h.b16 %v783
  %v881 = vunpack.c.l.b16 %v784
  %v882 = vunpack.c.h.b16 %v784
  %v883 = vunpack.c.l.b16 %v785
  %v884 = vunpack.c.h.b16 %v785
  %v885 = vunpack.c.l.b16 %v786
  %v886 = vunpack.c.h.b16 %v786
  %v887 = vunpack.c.l.b16 %v787
  %v888 = vunpack.c.h.b16 %v787
  %v889 = vunpack.c.l.b16 %v788
  %v890 = vunpack.c.h.b16 %v788
  %v891 = vunpack.c.l.b16 %v789
  %v892 = vunpack.c.h.b16 %v789
  %v893 = vunpack.c.l.b16 %v790
  %v894 = vunpack.c.h.b16 %v790
  %v895 = vunpack.c.l.b16 %v791
  %v896 = vunpack.c.h.b16 %v791
  %v897 = vunpack.c.l.b16 %v792
  %v898 = vunpack.c.h.b16 %v792
  %v899 = vunpack.c.l.b16 %v793
  %v900 = vunpack.c.h.b16 %v793
  %v901 = vunpack.c.l.b16 %v794
  %v902 = vunpack.c.h.b16 %v794
  %v903 = vunpack.c.l.b16 %v795
  %v904 = vunpack.c.h.b16 %v795
  %v905 = vpack.c.b16 %v845, %v841
  %v906 = vpack.c.b16 %v846, %v842
  %v907 = vpack.c.b16 %v847, %v843
  %v908 = vpack.c.b16 %v848, %v844
  %v909 = vpack.c.b16 %v853, %v849
  %v910 = vpack.c.b16 %v854, %v850
  %v911 = vpack.c.b16 %v855, %v851
  %v912 = vpack.c.b16 %v856, %v852
  %v913 = vpack.c.b16 %v861, %v857
  %v914 = vpack.c.b16 %v862, %v858
  %v915 = vpack.c.b16 %v863, %v859
  %v916 = vpack.c.b16 %v864, %v860
  %v917 = vpack.c.b16 %v869, %v865
  %v918 = vpack.c.b16 %v870, %v866
  %v919 = vpack.c.b16 %v871, %v867
  %v920 = vpack.c.b16 %v872, %v868
  %v921 = vpack.c.b16 %v877, %v873
  %v922 = vpack.c.b16 %v878, %v874
  %v923 = vpack.c.b16 %v879, %v875
  %v924 = vpack.c.b16 %v880, %v876
  %v925 = vpack.c.b16 %v885, %v881
  %v926 = vpack.c.b16 %v886, %v882
  %v927 = vpack.c.b16 %v887, %v883
  %v928 = vpack.c.b16 %v888, %v884
  %v929 = vpack.c.b16 %v893, %v889
  %v930 = vpack.c.b16 %v894, %v890
  %v931 = vpack.c.b16 %v895, %v891
  %v932 = vpack.c.b16 %v896, %v892
  %v933 = vpack.c.b16 %v901, %v897
  %v934 = vpack.c.b16 %v902, %v898
  %v935 = vpack.c.b16 %v903, %v899
  %v936 = vpack.c.b16 %v904, %v900
  %969 = vmatprep.subr.bf16.mxu0 %v906
  %970 = vmatpush1.bf16.msra.mxu0 %v905
  %971 = vmatprep.subr.bf16.mxu0 %v910
  %972 = vmatpush1.bf16.msra.mxu0 %v909
  %973 = vmatprep.subr.bf16.mxu0 %v914
  %974 = vmatpush1.bf16.msra.mxu0 %v913
  %975 = vmatprep.subr.bf16.mxu0 %v918
  %976 = vmatpush1.bf16.msra.mxu0 %v917
  %977 = vmatprep.subr.bf16.mxu0 %v922
  %978 = vmatpush1.bf16.msra.mxu0 %v921
  %979 = vmatprep.subr.bf16.mxu0 %v926
  %980 = vmatpush1.bf16.msra.mxu0 %v925
  %981 = vmatprep.subr.bf16.mxu0 %v930
  %982 = vmatpush1.bf16.msra.mxu0 %v929
  %983 = vmatprep.subr.bf16.mxu0 %v934
  %984 = vmatpush1.bf16.msra.mxu0 %v933
  %985 = vmatprep.subr.bf16.mxu0 0
  %986 = vmatpush1.bf16.msra.mxu0 0
  %987 = vmatprep.subr.bf16.mxu0 0
  %988 = vmatpush1.bf16.msra.mxu0 0
  %989 = vmatprep.subr.bf16.mxu0 0
  %990 = vmatpush1.bf16.msra.mxu0 0
  %991 = vmatprep.subr.bf16.mxu0 0
  %992 = vmatpush1.bf16.msra.mxu0 0
  %993 = vmatprep.subr.bf16.mxu0 0
  %994 = vmatpush1.bf16.msra.mxu0 0
  %995 = vmatprep.subr.bf16.mxu0 0
  %996 = vmatpush1.bf16.msra.mxu0 0
  %997 = vmatprep.subr.bf16.mxu0 0
  %998 = vmatpush1.bf16.msra.mxu0 0
  %999 = vmatprep.subr.bf16.mxu0 0
  %1000 = vmatpush1.bf16.msra.mxu0 0
  %1001 = vmatprep.mubr.bf16.mxu0 0
  %1002 = vmatmul.mubr.bf16.gmra.mrb[0].mxu0 %v763
  %v1003 = vpop.f32.mrb[0].mxu0
  %v1004 = vadd.f32 %v801, %v1003
  %v1005 = vpop.f32.mrb[0].mxu0
  %v1006 = vadd.f32 %v802, %v1005
  %v1007 = vpop.f32.mrb[0].mxu0
  %v1008 = vadd.f32 %v805, %v1007
  %v1009 = vpop.f32.mrb[0].mxu0
  %v1010 = vadd.f32 %v806, %v1009
  %1011 = vdwg.mxu0
  %1012 = vmatprep.subr.bf16.mxu0 %v908
  %1013 = vmatpush1.bf16.msra.mxu0 %v907
  %1014 = vmatprep.subr.bf16.mxu0 %v912
  %1015 = vmatpush1.bf16.msra.mxu0 %v911
  %1016 = vmatprep.subr.bf16.mxu0 %v916
  %1017 = vmatpush1.bf16.msra.mxu0 %v915
  %1018 = vmatprep.subr.bf16.mxu0 %v920
  %1019 = vmatpush1.bf16.msra.mxu0 %v919
  %1020 = vmatprep.subr.bf16.mxu0 %v924
  %1021 = vmatpush1.bf16.msra.mxu0 %v923
  %1022 = vmatprep.subr.bf16.mxu0 %v928
  %1023 = vmatpush1.bf16.msra.mxu0 %v927
  %1024 = vmatprep.subr.bf16.mxu0 %v932
  %1025 = vmatpush1.bf16.msra.mxu0 %v931
  %1026 = vmatprep.subr.bf16.mxu0 %v936
  %1027 = vmatpush1.bf16.msra.mxu0 %v935
  %1028 = vmatprep.subr.bf16.mxu0 0
  %1029 = vmatpush1.bf16.msra.mxu0 0
  %1030 = vmatprep.subr.bf16.mxu0 0
  %1031 = vmatpush1.bf16.msra.mxu0 0
  %1032 = vmatprep.subr.bf16.mxu0 0
  %1033 = vmatpush1.bf16.msra.mxu0 0
  %1034 = vmatprep.subr.bf16.mxu0 0
  %1035 = vmatpush1.bf16.msra.mxu0 0
  %1036 = vmatprep.subr.bf16.mxu0 0
  %1037 = vmatpush1.bf16.msra.mxu0 0
  %1038 = vmatprep.subr.bf16.mxu0 0
  %1039 = vmatpush1.bf16.msra.mxu0 0
  %1040 = vmatprep.subr.bf16.mxu0 0
  %1041 = vmatpush1.bf16.msra.mxu0 0
  %1042 = vmatprep.subr.bf16.mxu0 0
  %1043 = vmatpush1.bf16.msra.mxu0 0
  %1044 = vmatprep.mubr.bf16.mxu0 0
  %1045 = vmatmul.mubr.bf16.gmra.mrb[0].mxu0 %v763
  %v1046 = vpop.f32.mrb[0].mxu0
  %v1047 = vadd.f32 %v803, %v1046
  %v1048 = vpop.f32.mrb[0].mxu0
  %v1049 = vadd.f32 %v804, %v1048
  %v1050 = vpop.f32.mrb[0].mxu0
  %v1051 = vadd.f32 %v807, %v1050
  %v1052 = vpop.f32.mrb[0].mxu0
  %v1053 = vadd.f32 %v808, %v1052
  %1054 = vdwg.mxu0
  %v1055 = vld [vmem:[%s1] sm:$0xf]
  %v1057 = vlaneseq
  %v1058 = vshrl.u32 %v1057, 7
  %v1059 = vsub.s32 0, %v1058
  %v1060 = vrot.slane %v1055, %v1059
  %v1061 = vlaneseq
  %v1062 = vshrl.u32 %v1061, 7
  %v1063 = vsub.s32 1, %v1062
  %v1064 = vrot.slane %v1055, %v1063
  %v1065 = vlaneseq
  %v1066 = vshrl.u32 %v1065, 7
  %v1067 = vsub.s32 2, %v1066
  %v1068 = vrot.slane %v1055, %v1067
  %v1069 = vlaneseq
  %v1070 = vshrl.u32 %v1069, 7
  %v1071 = vsub.s32 3, %v1070
  %v1072 = vrot.slane %v1055, %v1071
  %v1077 = vadd.f32 %v1004, %v1060
  %v1078 = vadd.f32 %v1006, %v1064
  %v1079 = vadd.f32 %v1047, %v1068
  %v1080 = vadd.f32 %v1049, %v1072
  %v1081 = vadd.f32 %v1008, %v1060
  %v1082 = vadd.f32 %v1010, %v1064
  %v1083 = vadd.f32 %v1051, %v1068
  %v1084 = vadd.f32 %v1053, %v1072
  %v1085 = vmul.f32 %v1077, 0.5
  %v1086 = vmul.f32 %v1081, 0.5
  %v1087 = vtanh.pop %v1085
  %v1088 = vtanh.pop %v1086
  %v1089 = vadd.f32 %v1087, 1.0
  %v1090 = vadd.f32 %v1088, 1.0
  %v1091 = vmul.f32 %v1089, 0.5
  %v1092 = vmul.f32 %v1090, 0.5
  %v1093 = vmul.f32 %v1078, 0.5
  %v1094 = vmul.f32 %v1082, 0.5
  %v1095 = vtanh.pop %v1093
  %v1096 = vtanh.pop %v1094
  %v1097 = vadd.f32 %v1095, 1.0
  %v1098 = vadd.f32 %v1096, 1.0
  %v1099 = vmul.f32 %v1097, 0.5
  %v1100 = vmul.f32 %v1098, 0.5
  %v1101 = vtanh.pop %v1079
  %v1102 = vtanh.pop %v1083
  %v1103 = vmul.f32 %v1080, 0.5
  %v1104 = vmul.f32 %v1084, 0.5
  %v1105 = vtanh.pop %v1103
  %v1106 = vtanh.pop %v1104
  %v1107 = vadd.f32 %v1105, 1.0
  %v1108 = vadd.f32 %v1106, 1.0
  %v1109 = vmul.f32 %v1107, 0.5
  %v1110 = vmul.f32 %v1108, 0.5
  %v1111 = vmul.f32 %v1099, %v761
  %v1112 = vmul.f32 %v1100, %v762
  %v1113 = vmul.f32 %v1091, %v1101
  %v1114 = vmul.f32 %v1092, %v1102
  %v1115 = vadd.f32 %v1111, %v1113
  %v1116 = vadd.f32 %v1112, %v1114
  %v1117 = vtanh.pop %v1115
  %v1118 = vtanh.pop %v1116
  %v1119 = vmul.f32 %v1109, %v1117
  %v1120 = vmul.f32 %v1110, %v1118
  %1121 = vst [vmem:[#allocation3] sm:$0xff] %v1115
  %1122 = vst [vmem:[#allocation3 + $0x8] sm:$0xff] %v1116
  %1123 = vst [vmem:[#allocation2] sm:$0xff] %v1119
  %1124 = vst [vmem:[#allocation2 + $0x8] sm:$0xff] %v1120
  %s1125 = scalar_lea.vmem %s3, 32
  %1126 = vst [vmem:[%s1125] sm:$0xff] %v1119
  %1127 = vst [vmem:[%s1125 + $0x8] sm:$0xff] %v1120
  %v1128 = vld [vmem:[#allocation2] sm:$0xff]
  %v1129 = vld [vmem:[#allocation2 + $0x8] sm:$0xff]
  %v1130 = vld [vmem:[#allocation3] sm:$0xff]
  %v1131 = vld [vmem:[#allocation3 + $0x8] sm:$0xff]
  %v1132 = vpack.c.bf16 %v1129, %v1128
  %v1133 = vld [vmem:[%s2] sm:$0xff]
  %v1134 = vld [vmem:[%s2 + $0x8] sm:$0xff]
  %v1135 = vld [vmem:[%s2 + $0x10] sm:$0xff]
  %v1136 = vld [vmem:[%s2 + $0x18] sm:$0xff]
  %v1137 = vld [vmem:[%s2 + $0x20] sm:$0xff]
  %v1138 = vld [vmem:[%s2 + $0x28] sm:$0xff]
  %v1139 = vld [vmem:[%s2 + $0x30] sm:$0xff]
  %v1140 = vld [vmem:[%s2 + $0x38] sm:$0xff]
  %v1141 = vld [vmem:[%s2 + $0x40] sm:$0xff]
  %v1142 = vld [vmem:[%s2 + $0x48] sm:$0xff]
  %v1143 = vld [vmem:[%s2 + $0x50] sm:$0xff]
  %v1144 = vld [vmem:[%s2 + $0x58] sm:$0xff]
  %v1145 = vld [vmem:[%s2 + $0x60] sm:$0xff]
  %v1146 = vld [vmem:[%s2 + $0x68] sm:$0xff]
  %v1147 = vld [vmem:[%s2 + $0x70] sm:$0xff]
  %v1148 = vld [vmem:[%s2 + $0x78] sm:$0xff]
  %v1149 = vld [vmem:[%s2 + $0x80] sm:$0xff]
  %v1150 = vld [vmem:[%s2 + $0x88] sm:$0xff]
  %v1151 = vld [vmem:[%s2 + $0x90] sm:$0xff]
  %v1152 = vld [vmem:[%s2 + $0x98] sm:$0xff]
  %v1153 = vld [vmem:[%s2 + $0xa0] sm:$0xff]
  %v1154 = vld [vmem:[%s2 + $0xa8] sm:$0xff]
  %v1155 = vld [vmem:[%s2 + $0xb0] sm:$0xff]
  %v1156 = vld [vmem:[%s2 + $0xb8] sm:$0xff]
  %v1157 = vld [vmem:[%s2 + $0xc0] sm:$0xff]
  %v1158 = vld [vmem:[%s2 + $0xc8] sm:$0xff]
  %v1159 = vld [vmem:[%s2 + $0xd0] sm:$0xff]
  %v1160 = vld [vmem:[%s2 + $0xd8] sm:$0xff]
  %v1161 = vld [vmem:[%s2 + $0xe0] sm:$0xff]
  %v1162 = vld [vmem:[%s2 + $0xe8] sm:$0xff]
  %v1163 = vld [vmem:[%s2 + $0xf0] sm:$0xff]
  %v1164 = vld [vmem:[%s2 + $0xf8] sm:$0xff]
  %s1165 = scalar_lea.vmem %s0, 96
  %v1166 = vld [vmem:[%s1165] sm:$0xff]
  %v1167 = vld [vmem:[%s1165 + $0x8] sm:$0xff]
  %v1168 = vld [vmem:[%s1165 + $0x10] sm:$0xff]
  %v1169 = vld [vmem:[%s1165 + $0x18] sm:$0xff]
  %v1170 = vunpack.c.l.bf16 %v1166
  %v1171 = vunpack.c.h.bf16 %v1166
  %v1172 = vunpack.c.l.bf16 %v1167
  %v1173 = vunpack.c.h.bf16 %v1167
  %v1174 = vunpack.c.l.bf16 %v1168
  %v1175 = vunpack.c.h.bf16 %v1168
  %v1176 = vunpack.c.l.bf16 %v1169
  %v1177 = vunpack.c.h.bf16 %v1169
  %v1210 = vunpack.c.l.b16 %v1133
  %v1211 = vunpack.c.h.b16 %v1133
  %v1212 = vunpack.c.l.b16 %v1134
  %v1213 = vunpack.c.h.b16 %v1134
  %v1214 = vunpack.c.l.b16 %v1135
  %v1215 = vunpack.c.h.b16 %v1135
  %v1216 = vunpack.c.l.b16 %v1136
  %v1217 = vunpack.c.h.b16 %v1136
  %v1218 = vunpack.c.l.b16 %v1137
  %v1219 = vunpack.c.h.b16 %v1137
  %v1220 = vunpack.c.l.b16 %v1138
  %v1221 = vunpack.c.h.b16 %v1138
  %v1222 = vunpack.c.l.b16 %v1139
  %v1223 = vunpack.c.h.b16 %v1139
  %v1224 = vunpack.c.l.b16 %v1140
  %v1225 = vunpack.c.h.b16 %v1140
  %v1226 = vunpack.c.l.b16 %v1141
  %v1227 = vunpack.c.h.b16 %v1141
  %v1228 = vunpack.c.l.b16 %v1142
  %v1229 = vunpack.c.h.b16 %v1142
  %v1230 = vunpack.c.l.b16 %v1143
  %v1231 = vunpack.c.h.b16 %v1143
  %v1232 = vunpack.c.l.b16 %v1144
  %v1233 = vunpack.c.h.b16 %v1144
  %v1234 = vunpack.c.l.b16 %v1145
  %v1235 = vunpack.c.h.b16 %v1145
  %v1236 = vunpack.c.l.b16 %v1146
  %v1237 = vunpack.c.h.b16 %v1146
  %v1238 = vunpack.c.l.b16 %v1147
  %v1239 = vunpack.c.h.b16 %v1147
  %v1240 = vunpack.c.l.b16 %v1148
  %v1241 = vunpack.c.h.b16 %v1148
  %v1242 = vunpack.c.l.b16 %v1149
  %v1243 = vunpack.c.h.b16 %v1149
  %v1244 = vunpack.c.l.b16 %v1150
  %v1245 = vunpack.c.h.b16 %v1150
  %v1246 = vunpack.c.l.b16 %v1151
  %v1247 = vunpack.c.h.b16 %v1151
  %v1248 = vunpack.c.l.b16 %v1152
  %v1249 = vunpack.c.h.b16 %v1152
  %v1250 = vunpack.c.l.b16 %v1153
  %v1251 = vunpack.c.h.b16 %v1153
  %v1252 = vunpack.c.l.b16 %v1154
  %v1253 = vunpack.c.h.b16 %v1154
  %v1254 = vunpack.c.l.b16 %v1155
  %v1255 = vunpack.c.h.b16 %v1155
  %v1256 = vunpack.c.l.b16 %v1156
  %v1257 = vunpack.c.h.b16 %v1156
  %v1258 = vunpack.c.l.b16 %v1157
  %v1259 = vunpack.c.h.b16 %v1157
  %v1260 = vunpack.c.l.b16 %v1158
  %v1261 = vunpack.c.h.b16 %v1158
  %v1262 = vunpack.c.l.b16 %v1159
  %v1263 = vunpack.c.h.b16 %v1159
  %v1264 = vunpack.c.l.b16 %v1160
  %v1265 = vunpack.c.h.b16 %v1160
  %v1266 = vunpack.c.l.b16 %v1161
  %v1267 = vunpack.c.h.b16 %v1161
  %v1268 = vunpack.c.l.b16 %v1162
  %v1269 = vunpack.c.h.b16 %v1162
  %v1270 = vunpack.c.l.b16 %v1163
  %v1271 = vunpack.c.h.b16 %v1163
  %v1272 = vunpack.c.l.b16 %v1164
  %v1273 = vunpack.c.h.b16 %v1164
  %v1274 = vpack.c.b16 %v1214, %v1210
  %v1275 = vpack.c.b16 %v1215, %v1211
  %v1276 = vpack.c.b16 %v1216, %v1212
  %v1277 = vpack.c.b16 %v1217, %v1213
  %v1278 = vpack.c.b16 %v1222, %v1218
  %v1279 = vpack.c.b16 %v1223, %v1219
  %v1280 = vpack.c.b16 %v1224, %v1220
  %v1281 = vpack.c.b16 %v1225, %v1221
  %v1282 = vpack.c.b16 %v1230, %v1226
  %v1283 = vpack.c.b16 %v1231, %v1227
  %v1284 = vpack.c.b16 %v1232, %v1228
  %v1285 = vpack.c.b16 %v1233, %v1229
  %v1286 = vpack.c.b16 %v1238, %v1234
  %v1287 = vpack.c.b16 %v1239, %v1235
  %v1288 = vpack.c.b16 %v1240, %v1236
  %v1289 = vpack.c.b16 %v1241, %v1237
  %v1290 = vpack.c.b16 %v1246, %v1242
  %v1291 = vpack.c.b16 %v1247, %v1243
  %v1292 = vpack.c.b16 %v1248, %v1244
  %v1293 = vpack.c.b16 %v1249, %v1245
  %v1294 = vpack.c.b16 %v1254, %v1250
  %v1295 = vpack.c.b16 %v1255, %v1251
  %v1296 = vpack.c.b16 %v1256, %v1252
  %v1297 = vpack.c.b16 %v1257, %v1253
  %v1298 = vpack.c.b16 %v1262, %v1258
  %v1299 = vpack.c.b16 %v1263, %v1259
  %v1300 = vpack.c.b16 %v1264, %v1260
  %v1301 = vpack.c.b16 %v1265, %v1261
  %v1302 = vpack.c.b16 %v1270, %v1266
  %v1303 = vpack.c.b16 %v1271, %v1267
  %v1304 = vpack.c.b16 %v1272, %v1268
  %v1305 = vpack.c.b16 %v1273, %v1269
  %1338 = vmatprep.subr.bf16.mxu0 %v1275
  %1339 = vmatpush1.bf16.msra.mxu0 %v1274
  %1340 = vmatprep.subr.bf16.mxu0 %v1279
  %1341 = vmatpush1.bf16.msra.mxu0 %v1278
  %1342 = vmatprep.subr.bf16.mxu0 %v1283
  %1343 = vmatpush1.bf16.msra.mxu0 %v1282
  %1344 = vmatprep.subr.bf16.mxu0 %v1287
  %1345 = vmatpush1.bf16.msra.mxu0 %v1286
  %1346 = vmatprep.subr.bf16.mxu0 %v1291
  %1347 = vmatpush1.bf16.msra.mxu0 %v1290
  %1348 = vmatprep.subr.bf16.mxu0 %v1295
  %1349 = vmatpush1.bf16.msra.mxu0 %v1294
  %1350 = vmatprep.subr.bf16.mxu0 %v1299
  %1351 = vmatpush1.bf16.msra.mxu0 %v1298
  %1352 = vmatprep.subr.bf16.mxu0 %v1303
  %1353 = vmatpush1.bf16.msra.mxu0 %v1302
  %1354 = vmatprep.subr.bf16.mxu0 0
  %1355 = vmatpush1.bf16.msra.mxu0 0
  %1356 = vmatprep.subr.bf16.mxu0 0
  %1357 = vmatpush1.bf16.msra.mxu0 0
  %1358 = vmatprep.subr.bf16.mxu0 0
  %1359 = vmatpush1.bf16.msra.mxu0 0
  %1360 = vmatprep.subr.bf16.mxu0 0
  %1361 = vmatpush1.bf16.msra.mxu0 0
  %1362 = vmatprep.subr.bf16.mxu0 0
  %1363 = vmatpush1.bf16.msra.mxu0 0
  %1364 = vmatprep.subr.bf16.mxu0 0
  %1365 = vmatpush1.bf16.msra.mxu0 0
  %1366 = vmatprep.subr.bf16.mxu0 0
  %1367 = vmatpush1.bf16.msra.mxu0 0
  %1368 = vmatprep.subr.bf16.mxu0 0
  %1369 = vmatpush1.bf16.msra.mxu0 0
  %1370 = vmatprep.mubr.bf16.mxu0 0
  %1371 = vmatmul.mubr.bf16.gmra.mrb[0].mxu0 %v1132
  %v1372 = vpop.f32.mrb[0].mxu0
  %v1373 = vadd.f32 %v1170, %v1372
  %v1374 = vpop.f32.mrb[0].mxu0
  %v1375 = vadd.f32 %v1171, %v1374
  %v1376 = vpop.f32.mrb[0].mxu0
  %v1377 = vadd.f32 %v1174, %v1376
  %v1378 = vpop.f32.mrb[0].mxu0
  %v1379 = vadd.f32 %v1175, %v1378
  %1380 = vdwg.mxu0
  %1381 = vmatprep.subr.bf16.mxu0 %v1277
  %1382 = vmatpush1.bf16.msra.mxu0 %v1276
  %1383 = vmatprep.subr.bf16.mxu0 %v1281
  %1384 = vmatpush1.bf16.msra.mxu0 %v1280
  %1385 = vmatprep.subr.bf16.mxu0 %v1285
  %1386 = vmatpush1.bf16.msra.mxu0 %v1284
  %1387 = vmatprep.subr.bf16.mxu0 %v1289
  %1388 = vmatpush1.bf16.msra.mxu0 %v1288
  %1389 = vmatprep.subr.bf16.mxu0 %v1293
  %1390 = vmatpush1.bf16.msra.mxu0 %v1292
  %1391 = vmatprep.subr.bf16.mxu0 %v1297
  %1392 = vmatpush1.bf16.msra.mxu0 %v1296
  %1393 = vmatprep.subr.bf16.mxu0 %v1301
  %1394 = vmatpush1.bf16.msra.mxu0 %v1300
  %1395 = vmatprep.subr.bf16.mxu0 %v1305
  %1396 = vmatpush1.bf16.msra.mxu0 %v1304
  %1397 = vmatprep.subr.bf16.mxu0 0
  %1398 = vmatpush1.bf16.msra.mxu0 0
  %1399 = vmatprep.subr.bf16.mxu0 0
  %1400 = vmatpush1.bf16.msra.mxu0 0
  %1401 = vmatprep.subr.bf16.mxu0 0
  %1402 = vmatpush1.bf16.msra.mxu0 0
  %1403 = vmatprep.subr.bf16.mxu0 0
  %1404 = vmatpush1.bf16.msra.mxu0 0
  %1405 = vmatprep.subr.bf16.mxu0 0
  %1406 = vmatpush1.bf16.msra.mxu0 0
  %1407 = vmatprep.subr.bf16.mxu0 0
  %1408 = vmatpush1.bf16.msra.mxu0 0
  %1409 = vmatprep.subr.bf16.mxu0 0
  %1410 = vmatpush1.bf16.msra.mxu0 0
  %1411 = vmatprep.subr.bf16.mxu0 0
  %1412 = vmatpush1.bf16.msra.mxu0 0
  %1413 = vmatprep.mubr.bf16.mxu0 0
  %1414 = vmatmul.mubr.bf16.gmra.mrb[0].mxu0 %v1132
  %v1415 = vpop.f32.mrb[0].mxu0
  %v1416 = vadd.f32 %v1172, %v1415
  %v1417 = vpop.f32.mrb[0].mxu0
  %v1418 = vadd.f32 %v1173, %v1417
  %v1419 = vpop.f32.mrb[0].mxu0
  %v1420 = vadd.f32 %v1176, %v1419
  %v1421 = vpop.f32.mrb[0].mxu0
  %v1422 = vadd.f32 %v1177, %v1421
  %1423 = vdwg.mxu0
  %v1424 = vld [vmem:[%s1] sm:$0xf]
  %v1426 = vlaneseq
  %v1427 = vshrl.u32 %v1426, 7
  %v1428 = vsub.s32 0, %v1427
  %v1429 = vrot.slane %v1424, %v1428
  %v1430 = vlaneseq
  %v1431 = vshrl.u32 %v1430, 7
  %v1432 = vsub.s32 1, %v1431
  %v1433 = vrot.slane %v1424, %v1432
  %v1434 = vlaneseq
  %v1435 = vshrl.u32 %v1434, 7
  %v1436 = vsub.s32 2, %v1435
  %v1437 = vrot.slane %v1424, %v1436
  %v1438 = vlaneseq
  %v1439 = vshrl.u32 %v1438, 7
  %v1440 = vsub.s32 3, %v1439
  %v1441 = vrot.slane %v1424, %v1440
  %v1446 = vadd.f32 %v1373, %v1429
  %v1447 = vadd.f32 %v1375, %v1433
  %v1448 = vadd.f32 %v1416, %v1437
  %v1449 = vadd.f32 %v1418, %v1441
  %v1450 = vadd.f32 %v1377, %v1429
  %v1451 = vadd.f32 %v1379, %v1433
  %v1452 = vadd.f32 %v1420, %v1437
  %v1453 = vadd.f32 %v1422, %v1441
  %v1454 = vmul.f32 %v1446, 0.5
  %v1455 = vmul.f32 %v1450, 0.5
  %v1456 = vtanh.pop %v1454
  %v1457 = vtanh.pop %v1455
  %v1458 = vadd.f32 %v1456, 1.0
  %v1459 = vadd.f32 %v1457, 1.0
  %v1460 = vmul.f32 %v1458, 0.5
  %v1461 = vmul.f32 %v1459, 0.5
  %v1462 = vmul.f32 %v1447, 0.5
  %v1463 = vmul.f32 %v1451, 0.5
  %v1464 = vtanh.pop %v1462
  %v1465 = vtanh.pop %v1463
  %v1466 = vadd.f32 %v1464, 1.0
  %v1467 = vadd.f32 %v1465, 1.0
  %v1468 = vmul.f32 %v1466, 0.5
  %v1469 = vmul.f32 %v1467, 0.5
  %v1470 = vtanh.pop %v1448
  %v1471 = vtanh.pop %v1452
  %v1472 = vmul.f32 %v1449, 0.5
  %v1473 = vmul.f32 %v1453, 0.5
  %v1474 = vtanh.pop %v1472
  %v1475 = vtanh.pop %v1473
  %v1476 = vadd.f32 %v1474, 1.0
  %v1477 = vadd.f32 %v1475, 1.0
  %v1478 = vmul.f32 %v1476, 0.5
  %v1479 = vmul.f32 %v1477, 0.5
  %v1480 = vmul.f32 %v1468, %v1130
  %v1481 = vmul.f32 %v1469, %v1131
  %v1482 = vmul.f32 %v1460, %v1470
  %v1483 = vmul.f32 %v1461, %v1471
  %v1484 = vadd.f32 %v1480, %v1482
  %v1485 = vadd.f32 %v1481, %v1483
  %v1486 = vtanh.pop %v1484
  %v1487 = vtanh.pop %v1485
  %v1488 = vmul.f32 %v1478, %v1486
  %v1489 = vmul.f32 %v1479, %v1487
  %1490 = vst [vmem:[#allocation3] sm:$0xff] %v1484
  %1491 = vst [vmem:[#allocation3 + $0x8] sm:$0xff] %v1485
  %1492 = vst [vmem:[#allocation2] sm:$0xff] %v1488
  %1493 = vst [vmem:[#allocation2 + $0x8] sm:$0xff] %v1489
  %s1494 = scalar_lea.vmem %s3, 48
  %1495 = vst [vmem:[%s1494] sm:$0xff] %v1488
  %1496 = vst [vmem:[%s1494 + $0x8] sm:$0xff] %v1489
  %v1497 = vld [vmem:[#allocation2] sm:$0xff]
  %v1498 = vld [vmem:[#allocation2 + $0x8] sm:$0xff]
  %v1499 = vld [vmem:[#allocation3] sm:$0xff]
  %v1500 = vld [vmem:[#allocation3 + $0x8] sm:$0xff]
  %v1501 = vpack.c.bf16 %v1498, %v1497
  %v1502 = vld [vmem:[%s2] sm:$0xff]
  %v1503 = vld [vmem:[%s2 + $0x8] sm:$0xff]
  %v1504 = vld [vmem:[%s2 + $0x10] sm:$0xff]
  %v1505 = vld [vmem:[%s2 + $0x18] sm:$0xff]
  %v1506 = vld [vmem:[%s2 + $0x20] sm:$0xff]
  %v1507 = vld [vmem:[%s2 + $0x28] sm:$0xff]
  %v1508 = vld [vmem:[%s2 + $0x30] sm:$0xff]
  %v1509 = vld [vmem:[%s2 + $0x38] sm:$0xff]
  %v1510 = vld [vmem:[%s2 + $0x40] sm:$0xff]
  %v1511 = vld [vmem:[%s2 + $0x48] sm:$0xff]
  %v1512 = vld [vmem:[%s2 + $0x50] sm:$0xff]
  %v1513 = vld [vmem:[%s2 + $0x58] sm:$0xff]
  %v1514 = vld [vmem:[%s2 + $0x60] sm:$0xff]
  %v1515 = vld [vmem:[%s2 + $0x68] sm:$0xff]
  %v1516 = vld [vmem:[%s2 + $0x70] sm:$0xff]
  %v1517 = vld [vmem:[%s2 + $0x78] sm:$0xff]
  %v1518 = vld [vmem:[%s2 + $0x80] sm:$0xff]
  %v1519 = vld [vmem:[%s2 + $0x88] sm:$0xff]
  %v1520 = vld [vmem:[%s2 + $0x90] sm:$0xff]
  %v1521 = vld [vmem:[%s2 + $0x98] sm:$0xff]
  %v1522 = vld [vmem:[%s2 + $0xa0] sm:$0xff]
  %v1523 = vld [vmem:[%s2 + $0xa8] sm:$0xff]
  %v1524 = vld [vmem:[%s2 + $0xb0] sm:$0xff]
  %v1525 = vld [vmem:[%s2 + $0xb8] sm:$0xff]
  %v1526 = vld [vmem:[%s2 + $0xc0] sm:$0xff]
  %v1527 = vld [vmem:[%s2 + $0xc8] sm:$0xff]
  %v1528 = vld [vmem:[%s2 + $0xd0] sm:$0xff]
  %v1529 = vld [vmem:[%s2 + $0xd8] sm:$0xff]
  %v1530 = vld [vmem:[%s2 + $0xe0] sm:$0xff]
  %v1531 = vld [vmem:[%s2 + $0xe8] sm:$0xff]
  %v1532 = vld [vmem:[%s2 + $0xf0] sm:$0xff]
  %v1533 = vld [vmem:[%s2 + $0xf8] sm:$0xff]
  %s1534 = scalar_lea.vmem %s0, 128
  %v1535 = vld [vmem:[%s1534] sm:$0xff]
  %v1536 = vld [vmem:[%s1534 + $0x8] sm:$0xff]
  %v1537 = vld [vmem:[%s1534 + $0x10] sm:$0xff]
  %v1538 = vld [vmem:[%s1534 + $0x18] sm:$0xff]
  %v1539 = vunpack.c.l.bf16 %v1535
  %v1540 = vunpack.c.h.bf16 %v1535
  %v1541 = vunpack.c.l.bf16 %v1536
  %v1542 = vunpack.c.h.bf16 %v1536
  %v1543 = vunpack.c.l.bf16 %v1537
  %v1544 = vunpack.c.h.bf16 %v1537
  %v1545 = vunpack.c.l.bf16 %v1538
  %v1546 = vunpack.c.h.bf16 %v1538
  %v1579 = vunpack.c.l.b16 %v1502
  %v1580 = vunpack.c.h.b16 %v1502
  %v1581 = vunpack.c.l.b16 %v1503
  %v1582 = vunpack.c.h.b16 %v1503
  %v1583 = vunpack.c.l.b16 %v1504
  %v1584 = vunpack.c.h.b16 %v1504
  %v1585 = vunpack.c.l.b16 %v1505
  %v1586 = vunpack.c.h.b16 %v1505
  %v1587 = vunpack.c.l.b16 %v1506
  %v1588 = vunpack.c.h.b16 %v1506
  %v1589 = vunpack.c.l.b16 %v1507
  %v1590 = vunpack.c.h.b16 %v1507
  %v1591 = vunpack.c.l.b16 %v1508
  %v1592 = vunpack.c.h.b16 %v1508
  %v1593 = vunpack.c.l.b16 %v1509
  %v1594 = vunpack.c.h.b16 %v1509
  %v1595 = vunpack.c.l.b16 %v1510
  %v1596 = vunpack.c.h.b16 %v1510
  %v1597 = vunpack.c.l.b16 %v1511
  %v1598 = vunpack.c.h.b16 %v1511
  %v1599 = vunpack.c.l.b16 %v1512
  %v1600 = vunpack.c.h.b16 %v1512
  %v1601 = vunpack.c.l.b16 %v1513
  %v1602 = vunpack.c.h.b16 %v1513
  %v1603 = vunpack.c.l.b16 %v1514
  %v1604 = vunpack.c.h.b16 %v1514
  %v1605 = vunpack.c.l.b16 %v1515
  %v1606 = vunpack.c.h.b16 %v1515
  %v1607 = vunpack.c.l.b16 %v1516
  %v1608 = vunpack.c.h.b16 %v1516
  %v1609 = vunpack.c.l.b16 %v1517
  %v1610 = vunpack.c.h.b16 %v1517
  %v1611 = vunpack.c.l.b16 %v1518
  %v1612 = vunpack.c.h.b16 %v1518
  %v1613 = vunpack.c.l.b16 %v1519
  %v1614 = vunpack.c.h.b16 %v1519
  %v1615 = vunpack.c.l.b16 %v1520
  %v1616 = vunpack.c.h.b16 %v1520
  %v1617 = vunpack.c.l.b16 %v1521
  %v1618 = vunpack.c.h.b16 %v1521
  %v1619 = vunpack.c.l.b16 %v1522
  %v1620 = vunpack.c.h.b16 %v1522
  %v1621 = vunpack.c.l.b16 %v1523
  %v1622 = vunpack.c.h.b16 %v1523
  %v1623 = vunpack.c.l.b16 %v1524
  %v1624 = vunpack.c.h.b16 %v1524
  %v1625 = vunpack.c.l.b16 %v1525
  %v1626 = vunpack.c.h.b16 %v1525
  %v1627 = vunpack.c.l.b16 %v1526
  %v1628 = vunpack.c.h.b16 %v1526
  %v1629 = vunpack.c.l.b16 %v1527
  %v1630 = vunpack.c.h.b16 %v1527
  %v1631 = vunpack.c.l.b16 %v1528
  %v1632 = vunpack.c.h.b16 %v1528
  %v1633 = vunpack.c.l.b16 %v1529
  %v1634 = vunpack.c.h.b16 %v1529
  %v1635 = vunpack.c.l.b16 %v1530
  %v1636 = vunpack.c.h.b16 %v1530
  %v1637 = vunpack.c.l.b16 %v1531
  %v1638 = vunpack.c.h.b16 %v1531
  %v1639 = vunpack.c.l.b16 %v1532
  %v1640 = vunpack.c.h.b16 %v1532
  %v1641 = vunpack.c.l.b16 %v1533
  %v1642 = vunpack.c.h.b16 %v1533
  %v1643 = vpack.c.b16 %v1583, %v1579
  %v1644 = vpack.c.b16 %v1584, %v1580
  %v1645 = vpack.c.b16 %v1585, %v1581
  %v1646 = vpack.c.b16 %v1586, %v1582
  %v1647 = vpack.c.b16 %v1591, %v1587
  %v1648 = vpack.c.b16 %v1592, %v1588
  %v1649 = vpack.c.b16 %v1593, %v1589
  %v1650 = vpack.c.b16 %v1594, %v1590
  %v1651 = vpack.c.b16 %v1599, %v1595
  %v1652 = vpack.c.b16 %v1600, %v1596
  %v1653 = vpack.c.b16 %v1601, %v1597
  %v1654 = vpack.c.b16 %v1602, %v1598
  %v1655 = vpack.c.b16 %v1607, %v1603
  %v1656 = vpack.c.b16 %v1608, %v1604
  %v1657 = vpack.c.b16 %v1609, %v1605
  %v1658 = vpack.c.b16 %v1610, %v1606
  %v1659 = vpack.c.b16 %v1615, %v1611
  %v1660 = vpack.c.b16 %v1616, %v1612
  %v1661 = vpack.c.b16 %v1617, %v1613
  %v1662 = vpack.c.b16 %v1618, %v1614
  %v1663 = vpack.c.b16 %v1623, %v1619
  %v1664 = vpack.c.b16 %v1624, %v1620
  %v1665 = vpack.c.b16 %v1625, %v1621
  %v1666 = vpack.c.b16 %v1626, %v1622
  %v1667 = vpack.c.b16 %v1631, %v1627
  %v1668 = vpack.c.b16 %v1632, %v1628
  %v1669 = vpack.c.b16 %v1633, %v1629
  %v1670 = vpack.c.b16 %v1634, %v1630
  %v1671 = vpack.c.b16 %v1639, %v1635
  %v1672 = vpack.c.b16 %v1640, %v1636
  %v1673 = vpack.c.b16 %v1641, %v1637
  %v1674 = vpack.c.b16 %v1642, %v1638
  %1707 = vmatprep.subr.bf16.mxu0 %v1644
  %1708 = vmatpush1.bf16.msra.mxu0 %v1643
  %1709 = vmatprep.subr.bf16.mxu0 %v1648
  %1710 = vmatpush1.bf16.msra.mxu0 %v1647
  %1711 = vmatprep.subr.bf16.mxu0 %v1652
  %1712 = vmatpush1.bf16.msra.mxu0 %v1651
  %1713 = vmatprep.subr.bf16.mxu0 %v1656
  %1714 = vmatpush1.bf16.msra.mxu0 %v1655
  %1715 = vmatprep.subr.bf16.mxu0 %v1660
  %1716 = vmatpush1.bf16.msra.mxu0 %v1659
  %1717 = vmatprep.subr.bf16.mxu0 %v1664
  %1718 = vmatpush1.bf16.msra.mxu0 %v1663
  %1719 = vmatprep.subr.bf16.mxu0 %v1668
  %1720 = vmatpush1.bf16.msra.mxu0 %v1667
  %1721 = vmatprep.subr.bf16.mxu0 %v1672
  %1722 = vmatpush1.bf16.msra.mxu0 %v1671
  %1723 = vmatprep.subr.bf16.mxu0 0
  %1724 = vmatpush1.bf16.msra.mxu0 0
  %1725 = vmatprep.subr.bf16.mxu0 0
  %1726 = vmatpush1.bf16.msra.mxu0 0
  %1727 = vmatprep.subr.bf16.mxu0 0
  %1728 = vmatpush1.bf16.msra.mxu0 0
  %1729 = vmatprep.subr.bf16.mxu0 0
  %1730 = vmatpush1.bf16.msra.mxu0 0
  %1731 = vmatprep.subr.bf16.mxu0 0
  %1732 = vmatpush1.bf16.msra.mxu0 0
  %1733 = vmatprep.subr.bf16.mxu0 0
  %1734 = vmatpush1.bf16.msra.mxu0 0
  %1735 = vmatprep.subr.bf16.mxu0 0
  %1736 = vmatpush1.bf16.msra.mxu0 0
  %1737 = vmatprep.subr.bf16.mxu0 0
  %1738 = vmatpush1.bf16.msra.mxu0 0
  %1739 = vmatprep.mubr.bf16.mxu0 0
  %1740 = vmatmul.mubr.bf16.gmra.mrb[0].mxu0 %v1501
  %v1741 = vpop.f32.mrb[0].mxu0
  %v1742 = vadd.f32 %v1539, %v1741
  %v1743 = vpop.f32.mrb[0].mxu0
  %v1744 = vadd.f32 %v1540, %v1743
  %v1745 = vpop.f32.mrb[0].mxu0
  %v1746 = vadd.f32 %v1543, %v1745
  %v1747 = vpop.f32.mrb[0].mxu0
  %v1748 = vadd.f32 %v1544, %v1747
  %1749 = vdwg.mxu0
  %1750 = vmatprep.subr.bf16.mxu0 %v1646
  %1751 = vmatpush1.bf16.msra.mxu0 %v1645
  %1752 = vmatprep.subr.bf16.mxu0 %v1650
  %1753 = vmatpush1.bf16.msra.mxu0 %v1649
  %1754 = vmatprep.subr.bf16.mxu0 %v1654
  %1755 = vmatpush1.bf16.msra.mxu0 %v1653
  %1756 = vmatprep.subr.bf16.mxu0 %v1658
  %1757 = vmatpush1.bf16.msra.mxu0 %v1657
  %1758 = vmatprep.subr.bf16.mxu0 %v1662
  %1759 = vmatpush1.bf16.msra.mxu0 %v1661
  %1760 = vmatprep.subr.bf16.mxu0 %v1666
  %1761 = vmatpush1.bf16.msra.mxu0 %v1665
  %1762 = vmatprep.subr.bf16.mxu0 %v1670
  %1763 = vmatpush1.bf16.msra.mxu0 %v1669
  %1764 = vmatprep.subr.bf16.mxu0 %v1674
  %1765 = vmatpush1.bf16.msra.mxu0 %v1673
  %1766 = vmatprep.subr.bf16.mxu0 0
  %1767 = vmatpush1.bf16.msra.mxu0 0
  %1768 = vmatprep.subr.bf16.mxu0 0
  %1769 = vmatpush1.bf16.msra.mxu0 0
  %1770 = vmatprep.subr.bf16.mxu0 0
  %1771 = vmatpush1.bf16.msra.mxu0 0
  %1772 = vmatprep.subr.bf16.mxu0 0
  %1773 = vmatpush1.bf16.msra.mxu0 0
  %1774 = vmatprep.subr.bf16.mxu0 0
  %1775 = vmatpush1.bf16.msra.mxu0 0
  %1776 = vmatprep.subr.bf16.mxu0 0
  %1777 = vmatpush1.bf16.msra.mxu0 0
  %1778 = vmatprep.subr.bf16.mxu0 0
  %1779 = vmatpush1.bf16.msra.mxu0 0
  %1780 = vmatprep.subr.bf16.mxu0 0
  %1781 = vmatpush1.bf16.msra.mxu0 0
  %1782 = vmatprep.mubr.bf16.mxu0 0
  %1783 = vmatmul.mubr.bf16.gmra.mrb[0].mxu0 %v1501
  %v1784 = vpop.f32.mrb[0].mxu0
  %v1785 = vadd.f32 %v1541, %v1784
  %v1786 = vpop.f32.mrb[0].mxu0
  %v1787 = vadd.f32 %v1542, %v1786
  %v1788 = vpop.f32.mrb[0].mxu0
  %v1789 = vadd.f32 %v1545, %v1788
  %v1790 = vpop.f32.mrb[0].mxu0
  %v1791 = vadd.f32 %v1546, %v1790
  %1792 = vdwg.mxu0
  %v1793 = vld [vmem:[%s1] sm:$0xf]
  %v1795 = vlaneseq
  %v1796 = vshrl.u32 %v1795, 7
  %v1797 = vsub.s32 0, %v1796
  %v1798 = vrot.slane %v1793, %v1797
  %v1799 = vlaneseq
  %v1800 = vshrl.u32 %v1799, 7
  %v1801 = vsub.s32 1, %v1800
  %v1802 = vrot.slane %v1793, %v1801
  %v1803 = vlaneseq
  %v1804 = vshrl.u32 %v1803, 7
  %v1805 = vsub.s32 2, %v1804
  %v1806 = vrot.slane %v1793, %v1805
  %v1807 = vlaneseq
  %v1808 = vshrl.u32 %v1807, 7
  %v1809 = vsub.s32 3, %v1808
  %v1810 = vrot.slane %v1793, %v1809
  %v1815 = vadd.f32 %v1742, %v1798
  %v1816 = vadd.f32 %v1744, %v1802
  %v1817 = vadd.f32 %v1785, %v1806
  %v1818 = vadd.f32 %v1787, %v1810
  %v1819 = vadd.f32 %v1746, %v1798
  %v1820 = vadd.f32 %v1748, %v1802
  %v1821 = vadd.f32 %v1789, %v1806
  %v1822 = vadd.f32 %v1791, %v1810
  %v1823 = vmul.f32 %v1815, 0.5
  %v1824 = vmul.f32 %v1819, 0.5
  %v1825 = vtanh.pop %v1823
  %v1826 = vtanh.pop %v1824
  %v1827 = vadd.f32 %v1825, 1.0
  %v1828 = vadd.f32 %v1826, 1.0
  %v1829 = vmul.f32 %v1827, 0.5
  %v1830 = vmul.f32 %v1828, 0.5
  %v1831 = vmul.f32 %v1816, 0.5
  %v1832 = vmul.f32 %v1820, 0.5
  %v1833 = vtanh.pop %v1831
  %v1834 = vtanh.pop %v1832
  %v1835 = vadd.f32 %v1833, 1.0
  %v1836 = vadd.f32 %v1834, 1.0
  %v1837 = vmul.f32 %v1835, 0.5
  %v1838 = vmul.f32 %v1836, 0.5
  %v1839 = vtanh.pop %v1817
  %v1840 = vtanh.pop %v1821
  %v1841 = vmul.f32 %v1818, 0.5
  %v1842 = vmul.f32 %v1822, 0.5
  %v1843 = vtanh.pop %v1841
  %v1844 = vtanh.pop %v1842
  %v1845 = vadd.f32 %v1843, 1.0
  %v1846 = vadd.f32 %v1844, 1.0
  %v1847 = vmul.f32 %v1845, 0.5
  %v1848 = vmul.f32 %v1846, 0.5
  %v1849 = vmul.f32 %v1837, %v1499
  %v1850 = vmul.f32 %v1838, %v1500
  %v1851 = vmul.f32 %v1829, %v1839
  %v1852 = vmul.f32 %v1830, %v1840
  %v1853 = vadd.f32 %v1849, %v1851
  %v1854 = vadd.f32 %v1850, %v1852
  %v1855 = vtanh.pop %v1853
  %v1856 = vtanh.pop %v1854
  %v1857 = vmul.f32 %v1847, %v1855
  %v1858 = vmul.f32 %v1848, %v1856
  %1859 = vst [vmem:[#allocation3] sm:$0xff] %v1853
  %1860 = vst [vmem:[#allocation3 + $0x8] sm:$0xff] %v1854
  %1861 = vst [vmem:[#allocation2] sm:$0xff] %v1857
  %1862 = vst [vmem:[#allocation2 + $0x8] sm:$0xff] %v1858
  %s1863 = scalar_lea.vmem %s3, 64
  %1864 = vst [vmem:[%s1863] sm:$0xff] %v1857
  %1865 = vst [vmem:[%s1863 + $0x8] sm:$0xff] %v1858
  %v1866 = vld [vmem:[#allocation2] sm:$0xff]
  %v1867 = vld [vmem:[#allocation2 + $0x8] sm:$0xff]
  %v1868 = vld [vmem:[#allocation3] sm:$0xff]
  %v1869 = vld [vmem:[#allocation3 + $0x8] sm:$0xff]
  %v1870 = vpack.c.bf16 %v1867, %v1866
  %v1871 = vld [vmem:[%s2] sm:$0xff]
  %v1872 = vld [vmem:[%s2 + $0x8] sm:$0xff]
  %v1873 = vld [vmem:[%s2 + $0x10] sm:$0xff]
  %v1874 = vld [vmem:[%s2 + $0x18] sm:$0xff]
  %v1875 = vld [vmem:[%s2 + $0x20] sm:$0xff]
  %v1876 = vld [vmem:[%s2 + $0x28] sm:$0xff]
  %v1877 = vld [vmem:[%s2 + $0x30] sm:$0xff]
  %v1878 = vld [vmem:[%s2 + $0x38] sm:$0xff]
  %v1879 = vld [vmem:[%s2 + $0x40] sm:$0xff]
  %v1880 = vld [vmem:[%s2 + $0x48] sm:$0xff]
  %v1881 = vld [vmem:[%s2 + $0x50] sm:$0xff]
  %v1882 = vld [vmem:[%s2 + $0x58] sm:$0xff]
  %v1883 = vld [vmem:[%s2 + $0x60] sm:$0xff]
  %v1884 = vld [vmem:[%s2 + $0x68] sm:$0xff]
  %v1885 = vld [vmem:[%s2 + $0x70] sm:$0xff]
  %v1886 = vld [vmem:[%s2 + $0x78] sm:$0xff]
  %v1887 = vld [vmem:[%s2 + $0x80] sm:$0xff]
  %v1888 = vld [vmem:[%s2 + $0x88] sm:$0xff]
  %v1889 = vld [vmem:[%s2 + $0x90] sm:$0xff]
  %v1890 = vld [vmem:[%s2 + $0x98] sm:$0xff]
  %v1891 = vld [vmem:[%s2 + $0xa0] sm:$0xff]
  %v1892 = vld [vmem:[%s2 + $0xa8] sm:$0xff]
  %v1893 = vld [vmem:[%s2 + $0xb0] sm:$0xff]
  %v1894 = vld [vmem:[%s2 + $0xb8] sm:$0xff]
  %v1895 = vld [vmem:[%s2 + $0xc0] sm:$0xff]
  %v1896 = vld [vmem:[%s2 + $0xc8] sm:$0xff]
  %v1897 = vld [vmem:[%s2 + $0xd0] sm:$0xff]
  %v1898 = vld [vmem:[%s2 + $0xd8] sm:$0xff]
  %v1899 = vld [vmem:[%s2 + $0xe0] sm:$0xff]
  %v1900 = vld [vmem:[%s2 + $0xe8] sm:$0xff]
  %v1901 = vld [vmem:[%s2 + $0xf0] sm:$0xff]
  %v1902 = vld [vmem:[%s2 + $0xf8] sm:$0xff]
  %s1903 = scalar_lea.vmem %s0, 160
  %v1904 = vld [vmem:[%s1903] sm:$0xff]
  %v1905 = vld [vmem:[%s1903 + $0x8] sm:$0xff]
  %v1906 = vld [vmem:[%s1903 + $0x10] sm:$0xff]
  %v1907 = vld [vmem:[%s1903 + $0x18] sm:$0xff]
  %v1908 = vunpack.c.l.bf16 %v1904
  %v1909 = vunpack.c.h.bf16 %v1904
  %v1910 = vunpack.c.l.bf16 %v1905
  %v1911 = vunpack.c.h.bf16 %v1905
  %v1912 = vunpack.c.l.bf16 %v1906
  %v1913 = vunpack.c.h.bf16 %v1906
  %v1914 = vunpack.c.l.bf16 %v1907
  %v1915 = vunpack.c.h.bf16 %v1907
  %v1948 = vunpack.c.l.b16 %v1871
  %v1949 = vunpack.c.h.b16 %v1871
  %v1950 = vunpack.c.l.b16 %v1872
  %v1951 = vunpack.c.h.b16 %v1872
  %v1952 = vunpack.c.l.b16 %v1873
  %v1953 = vunpack.c.h.b16 %v1873
  %v1954 = vunpack.c.l.b16 %v1874
  %v1955 = vunpack.c.h.b16 %v1874
  %v1956 = vunpack.c.l.b16 %v1875
  %v1957 = vunpack.c.h.b16 %v1875
  %v1958 = vunpack.c.l.b16 %v1876
  %v1959 = vunpack.c.h.b16 %v1876
  %v1960 = vunpack.c.l.b16 %v1877
  %v1961 = vunpack.c.h.b16 %v1877
  %v1962 = vunpack.c.l.b16 %v1878
  %v1963 = vunpack.c.h.b16 %v1878
  %v1964 = vunpack.c.l.b16 %v1879
  %v1965 = vunpack.c.h.b16 %v1879
  %v1966 = vunpack.c.l.b16 %v1880
  %v1967 = vunpack.c.h.b16 %v1880
  %v1968 = vunpack.c.l.b16 %v1881
  %v1969 = vunpack.c.h.b16 %v1881
  %v1970 = vunpack.c.l.b16 %v1882
  %v1971 = vunpack.c.h.b16 %v1882
  %v1972 = vunpack.c.l.b16 %v1883
  %v1973 = vunpack.c.h.b16 %v1883
  %v1974 = vunpack.c.l.b16 %v1884
  %v1975 = vunpack.c.h.b16 %v1884
  %v1976 = vunpack.c.l.b16 %v1885
  %v1977 = vunpack.c.h.b16 %v1885
  %v1978 = vunpack.c.l.b16 %v1886
  %v1979 = vunpack.c.h.b16 %v1886
  %v1980 = vunpack.c.l.b16 %v1887
  %v1981 = vunpack.c.h.b16 %v1887
  %v1982 = vunpack.c.l.b16 %v1888
  %v1983 = vunpack.c.h.b16 %v1888
  %v1984 = vunpack.c.l.b16 %v1889
  %v1985 = vunpack.c.h.b16 %v1889
  %v1986 = vunpack.c.l.b16 %v1890
  %v1987 = vunpack.c.h.b16 %v1890
  %v1988 = vunpack.c.l.b16 %v1891
  %v1989 = vunpack.c.h.b16 %v1891
  %v1990 = vunpack.c.l.b16 %v1892
  %v1991 = vunpack.c.h.b16 %v1892
  %v1992 = vunpack.c.l.b16 %v1893
  %v1993 = vunpack.c.h.b16 %v1893
  %v1994 = vunpack.c.l.b16 %v1894
  %v1995 = vunpack.c.h.b16 %v1894
  %v1996 = vunpack.c.l.b16 %v1895
  %v1997 = vunpack.c.h.b16 %v1895
  %v1998 = vunpack.c.l.b16 %v1896
  %v1999 = vunpack.c.h.b16 %v1896
  %v2000 = vunpack.c.l.b16 %v1897
  %v2001 = vunpack.c.h.b16 %v1897
  %v2002 = vunpack.c.l.b16 %v1898
  %v2003 = vunpack.c.h.b16 %v1898
  %v2004 = vunpack.c.l.b16 %v1899
  %v2005 = vunpack.c.h.b16 %v1899
  %v2006 = vunpack.c.l.b16 %v1900
  %v2007 = vunpack.c.h.b16 %v1900
  %v2008 = vunpack.c.l.b16 %v1901
  %v2009 = vunpack.c.h.b16 %v1901
  %v2010 = vunpack.c.l.b16 %v1902
  %v2011 = vunpack.c.h.b16 %v1902
  %v2012 = vpack.c.b16 %v1952, %v1948
  %v2013 = vpack.c.b16 %v1953, %v1949
  %v2014 = vpack.c.b16 %v1954, %v1950
  %v2015 = vpack.c.b16 %v1955, %v1951
  %v2016 = vpack.c.b16 %v1960, %v1956
  %v2017 = vpack.c.b16 %v1961, %v1957
  %v2018 = vpack.c.b16 %v1962, %v1958
  %v2019 = vpack.c.b16 %v1963, %v1959
  %v2020 = vpack.c.b16 %v1968, %v1964
  %v2021 = vpack.c.b16 %v1969, %v1965
  %v2022 = vpack.c.b16 %v1970, %v1966
  %v2023 = vpack.c.b16 %v1971, %v1967
  %v2024 = vpack.c.b16 %v1976, %v1972
  %v2025 = vpack.c.b16 %v1977, %v1973
  %v2026 = vpack.c.b16 %v1978, %v1974
  %v2027 = vpack.c.b16 %v1979, %v1975
  %v2028 = vpack.c.b16 %v1984, %v1980
  %v2029 = vpack.c.b16 %v1985, %v1981
  %v2030 = vpack.c.b16 %v1986, %v1982
  %v2031 = vpack.c.b16 %v1987, %v1983
  %v2032 = vpack.c.b16 %v1992, %v1988
  %v2033 = vpack.c.b16 %v1993, %v1989
  %v2034 = vpack.c.b16 %v1994, %v1990
  %v2035 = vpack.c.b16 %v1995, %v1991
  %v2036 = vpack.c.b16 %v2000, %v1996
  %v2037 = vpack.c.b16 %v2001, %v1997
  %v2038 = vpack.c.b16 %v2002, %v1998
  %v2039 = vpack.c.b16 %v2003, %v1999
  %v2040 = vpack.c.b16 %v2008, %v2004
  %v2041 = vpack.c.b16 %v2009, %v2005
  %v2042 = vpack.c.b16 %v2010, %v2006
  %v2043 = vpack.c.b16 %v2011, %v2007
  %2076 = vmatprep.subr.bf16.mxu0 %v2013
  %2077 = vmatpush1.bf16.msra.mxu0 %v2012
  %2078 = vmatprep.subr.bf16.mxu0 %v2017
  %2079 = vmatpush1.bf16.msra.mxu0 %v2016
  %2080 = vmatprep.subr.bf16.mxu0 %v2021
  %2081 = vmatpush1.bf16.msra.mxu0 %v2020
  %2082 = vmatprep.subr.bf16.mxu0 %v2025
  %2083 = vmatpush1.bf16.msra.mxu0 %v2024
  %2084 = vmatprep.subr.bf16.mxu0 %v2029
  %2085 = vmatpush1.bf16.msra.mxu0 %v2028
  %2086 = vmatprep.subr.bf16.mxu0 %v2033
  %2087 = vmatpush1.bf16.msra.mxu0 %v2032
  %2088 = vmatprep.subr.bf16.mxu0 %v2037
  %2089 = vmatpush1.bf16.msra.mxu0 %v2036
  %2090 = vmatprep.subr.bf16.mxu0 %v2041
  %2091 = vmatpush1.bf16.msra.mxu0 %v2040
  %2092 = vmatprep.subr.bf16.mxu0 0
  %2093 = vmatpush1.bf16.msra.mxu0 0
  %2094 = vmatprep.subr.bf16.mxu0 0
  %2095 = vmatpush1.bf16.msra.mxu0 0
  %2096 = vmatprep.subr.bf16.mxu0 0
  %2097 = vmatpush1.bf16.msra.mxu0 0
  %2098 = vmatprep.subr.bf16.mxu0 0
  %2099 = vmatpush1.bf16.msra.mxu0 0
  %2100 = vmatprep.subr.bf16.mxu0 0
  %2101 = vmatpush1.bf16.msra.mxu0 0
  %2102 = vmatprep.subr.bf16.mxu0 0
  %2103 = vmatpush1.bf16.msra.mxu0 0
  %2104 = vmatprep.subr.bf16.mxu0 0
  %2105 = vmatpush1.bf16.msra.mxu0 0
  %2106 = vmatprep.subr.bf16.mxu0 0
  %2107 = vmatpush1.bf16.msra.mxu0 0
  %2108 = vmatprep.mubr.bf16.mxu0 0
  %2109 = vmatmul.mubr.bf16.gmra.mrb[0].mxu0 %v1870
  %v2110 = vpop.f32.mrb[0].mxu0
  %v2111 = vadd.f32 %v1908, %v2110
  %v2112 = vpop.f32.mrb[0].mxu0
  %v2113 = vadd.f32 %v1909, %v2112
  %v2114 = vpop.f32.mrb[0].mxu0
  %v2115 = vadd.f32 %v1912, %v2114
  %v2116 = vpop.f32.mrb[0].mxu0
  %v2117 = vadd.f32 %v1913, %v2116
  %2118 = vdwg.mxu0
  %2119 = vmatprep.subr.bf16.mxu0 %v2015
  %2120 = vmatpush1.bf16.msra.mxu0 %v2014
  %2121 = vmatprep.subr.bf16.mxu0 %v2019
  %2122 = vmatpush1.bf16.msra.mxu0 %v2018
  %2123 = vmatprep.subr.bf16.mxu0 %v2023
  %2124 = vmatpush1.bf16.msra.mxu0 %v2022
  %2125 = vmatprep.subr.bf16.mxu0 %v2027
  %2126 = vmatpush1.bf16.msra.mxu0 %v2026
  %2127 = vmatprep.subr.bf16.mxu0 %v2031
  %2128 = vmatpush1.bf16.msra.mxu0 %v2030
  %2129 = vmatprep.subr.bf16.mxu0 %v2035
  %2130 = vmatpush1.bf16.msra.mxu0 %v2034
  %2131 = vmatprep.subr.bf16.mxu0 %v2039
  %2132 = vmatpush1.bf16.msra.mxu0 %v2038
  %2133 = vmatprep.subr.bf16.mxu0 %v2043
  %2134 = vmatpush1.bf16.msra.mxu0 %v2042
  %2135 = vmatprep.subr.bf16.mxu0 0
  %2136 = vmatpush1.bf16.msra.mxu0 0
  %2137 = vmatprep.subr.bf16.mxu0 0
  %2138 = vmatpush1.bf16.msra.mxu0 0
  %2139 = vmatprep.subr.bf16.mxu0 0
  %2140 = vmatpush1.bf16.msra.mxu0 0
  %2141 = vmatprep.subr.bf16.mxu0 0
  %2142 = vmatpush1.bf16.msra.mxu0 0
  %2143 = vmatprep.subr.bf16.mxu0 0
  %2144 = vmatpush1.bf16.msra.mxu0 0
  %2145 = vmatprep.subr.bf16.mxu0 0
  %2146 = vmatpush1.bf16.msra.mxu0 0
  %2147 = vmatprep.subr.bf16.mxu0 0
  %2148 = vmatpush1.bf16.msra.mxu0 0
  %2149 = vmatprep.subr.bf16.mxu0 0
  %2150 = vmatpush1.bf16.msra.mxu0 0
  %2151 = vmatprep.mubr.bf16.mxu0 0
  %2152 = vmatmul.mubr.bf16.gmra.mrb[0].mxu0 %v1870
  %v2153 = vpop.f32.mrb[0].mxu0
  %v2154 = vadd.f32 %v1910, %v2153
  %v2155 = vpop.f32.mrb[0].mxu0
  %v2156 = vadd.f32 %v1911, %v2155
  %v2157 = vpop.f32.mrb[0].mxu0
  %v2158 = vadd.f32 %v1914, %v2157
  %v2159 = vpop.f32.mrb[0].mxu0
  %v2160 = vadd.f32 %v1915, %v2159
  %2161 = vdwg.mxu0
  %v2162 = vld [vmem:[%s1] sm:$0xf]
  %v2164 = vlaneseq
  %v2165 = vshrl.u32 %v2164, 7
  %v2166 = vsub.s32 0, %v2165
  %v2167 = vrot.slane %v2162, %v2166
  %v2168 = vlaneseq
  %v2169 = vshrl.u32 %v2168, 7
  %v2170 = vsub.s32 1, %v2169
  %v2171 = vrot.slane %v2162, %v2170
  %v2172 = vlaneseq
  %v2173 = vshrl.u32 %v2172, 7
  %v2174 = vsub.s32 2, %v2173
  %v2175 = vrot.slane %v2162, %v2174
  %v2176 = vlaneseq
  %v2177 = vshrl.u32 %v2176, 7
  %v2178 = vsub.s32 3, %v2177
  %v2179 = vrot.slane %v2162, %v2178
  %v2184 = vadd.f32 %v2111, %v2167
  %v2185 = vadd.f32 %v2113, %v2171
  %v2186 = vadd.f32 %v2154, %v2175
  %v2187 = vadd.f32 %v2156, %v2179
  %v2188 = vadd.f32 %v2115, %v2167
  %v2189 = vadd.f32 %v2117, %v2171
  %v2190 = vadd.f32 %v2158, %v2175
  %v2191 = vadd.f32 %v2160, %v2179
  %v2192 = vmul.f32 %v2184, 0.5
  %v2193 = vmul.f32 %v2188, 0.5
  %v2194 = vtanh.pop %v2192
  %v2195 = vtanh.pop %v2193
  %v2196 = vadd.f32 %v2194, 1.0
  %v2197 = vadd.f32 %v2195, 1.0
  %v2198 = vmul.f32 %v2196, 0.5
  %v2199 = vmul.f32 %v2197, 0.5
  %v2200 = vmul.f32 %v2185, 0.5
  %v2201 = vmul.f32 %v2189, 0.5
  %v2202 = vtanh.pop %v2200
  %v2203 = vtanh.pop %v2201
  %v2204 = vadd.f32 %v2202, 1.0
  %v2205 = vadd.f32 %v2203, 1.0
  %v2206 = vmul.f32 %v2204, 0.5
  %v2207 = vmul.f32 %v2205, 0.5
  %v2208 = vtanh.pop %v2186
  %v2209 = vtanh.pop %v2190
  %v2210 = vmul.f32 %v2187, 0.5
  %v2211 = vmul.f32 %v2191, 0.5
  %v2212 = vtanh.pop %v2210
  %v2213 = vtanh.pop %v2211
  %v2214 = vadd.f32 %v2212, 1.0
  %v2215 = vadd.f32 %v2213, 1.0
  %v2216 = vmul.f32 %v2214, 0.5
  %v2217 = vmul.f32 %v2215, 0.5
  %v2218 = vmul.f32 %v2206, %v1868
  %v2219 = vmul.f32 %v2207, %v1869
  %v2220 = vmul.f32 %v2198, %v2208
  %v2221 = vmul.f32 %v2199, %v2209
  %v2222 = vadd.f32 %v2218, %v2220
  %v2223 = vadd.f32 %v2219, %v2221
  %v2224 = vtanh.pop %v2222
  %v2225 = vtanh.pop %v2223
  %v2226 = vmul.f32 %v2216, %v2224
  %v2227 = vmul.f32 %v2217, %v2225
  %2228 = vst [vmem:[#allocation3] sm:$0xff] %v2222
  %2229 = vst [vmem:[#allocation3 + $0x8] sm:$0xff] %v2223
  %2230 = vst [vmem:[#allocation2] sm:$0xff] %v2226
  %2231 = vst [vmem:[#allocation2 + $0x8] sm:$0xff] %v2227
  %s2232 = scalar_lea.vmem %s3, 80
  %2233 = vst [vmem:[%s2232] sm:$0xff] %v2226
  %2234 = vst [vmem:[%s2232 + $0x8] sm:$0xff] %v2227
  %v2235 = vld [vmem:[#allocation2] sm:$0xff]
  %v2236 = vld [vmem:[#allocation2 + $0x8] sm:$0xff]
  %v2237 = vld [vmem:[#allocation3] sm:$0xff]
  %v2238 = vld [vmem:[#allocation3 + $0x8] sm:$0xff]
  %v2239 = vpack.c.bf16 %v2236, %v2235
  %v2240 = vld [vmem:[%s2] sm:$0xff]
  %v2241 = vld [vmem:[%s2 + $0x8] sm:$0xff]
  %v2242 = vld [vmem:[%s2 + $0x10] sm:$0xff]
  %v2243 = vld [vmem:[%s2 + $0x18] sm:$0xff]
  %v2244 = vld [vmem:[%s2 + $0x20] sm:$0xff]
  %v2245 = vld [vmem:[%s2 + $0x28] sm:$0xff]
  %v2246 = vld [vmem:[%s2 + $0x30] sm:$0xff]
  %v2247 = vld [vmem:[%s2 + $0x38] sm:$0xff]
  %v2248 = vld [vmem:[%s2 + $0x40] sm:$0xff]
  %v2249 = vld [vmem:[%s2 + $0x48] sm:$0xff]
  %v2250 = vld [vmem:[%s2 + $0x50] sm:$0xff]
  %v2251 = vld [vmem:[%s2 + $0x58] sm:$0xff]
  %v2252 = vld [vmem:[%s2 + $0x60] sm:$0xff]
  %v2253 = vld [vmem:[%s2 + $0x68] sm:$0xff]
  %v2254 = vld [vmem:[%s2 + $0x70] sm:$0xff]
  %v2255 = vld [vmem:[%s2 + $0x78] sm:$0xff]
  %v2256 = vld [vmem:[%s2 + $0x80] sm:$0xff]
  %v2257 = vld [vmem:[%s2 + $0x88] sm:$0xff]
  %v2258 = vld [vmem:[%s2 + $0x90] sm:$0xff]
  %v2259 = vld [vmem:[%s2 + $0x98] sm:$0xff]
  %v2260 = vld [vmem:[%s2 + $0xa0] sm:$0xff]
  %v2261 = vld [vmem:[%s2 + $0xa8] sm:$0xff]
  %v2262 = vld [vmem:[%s2 + $0xb0] sm:$0xff]
  %v2263 = vld [vmem:[%s2 + $0xb8] sm:$0xff]
  %v2264 = vld [vmem:[%s2 + $0xc0] sm:$0xff]
  %v2265 = vld [vmem:[%s2 + $0xc8] sm:$0xff]
  %v2266 = vld [vmem:[%s2 + $0xd0] sm:$0xff]
  %v2267 = vld [vmem:[%s2 + $0xd8] sm:$0xff]
  %v2268 = vld [vmem:[%s2 + $0xe0] sm:$0xff]
  %v2269 = vld [vmem:[%s2 + $0xe8] sm:$0xff]
  %v2270 = vld [vmem:[%s2 + $0xf0] sm:$0xff]
  %v2271 = vld [vmem:[%s2 + $0xf8] sm:$0xff]
  %s2272 = scalar_lea.vmem %s0, 192
  %v2273 = vld [vmem:[%s2272] sm:$0xff]
  %v2274 = vld [vmem:[%s2272 + $0x8] sm:$0xff]
  %v2275 = vld [vmem:[%s2272 + $0x10] sm:$0xff]
  %v2276 = vld [vmem:[%s2272 + $0x18] sm:$0xff]
  %v2277 = vunpack.c.l.bf16 %v2273
  %v2278 = vunpack.c.h.bf16 %v2273
  %v2279 = vunpack.c.l.bf16 %v2274
  %v2280 = vunpack.c.h.bf16 %v2274
  %v2281 = vunpack.c.l.bf16 %v2275
  %v2282 = vunpack.c.h.bf16 %v2275
  %v2283 = vunpack.c.l.bf16 %v2276
  %v2284 = vunpack.c.h.bf16 %v2276
  %v2317 = vunpack.c.l.b16 %v2240
  %v2318 = vunpack.c.h.b16 %v2240
  %v2319 = vunpack.c.l.b16 %v2241
  %v2320 = vunpack.c.h.b16 %v2241
  %v2321 = vunpack.c.l.b16 %v2242
  %v2322 = vunpack.c.h.b16 %v2242
  %v2323 = vunpack.c.l.b16 %v2243
  %v2324 = vunpack.c.h.b16 %v2243
  %v2325 = vunpack.c.l.b16 %v2244
  %v2326 = vunpack.c.h.b16 %v2244
  %v2327 = vunpack.c.l.b16 %v2245
  %v2328 = vunpack.c.h.b16 %v2245
  %v2329 = vunpack.c.l.b16 %v2246
  %v2330 = vunpack.c.h.b16 %v2246
  %v2331 = vunpack.c.l.b16 %v2247
  %v2332 = vunpack.c.h.b16 %v2247
  %v2333 = vunpack.c.l.b16 %v2248
  %v2334 = vunpack.c.h.b16 %v2248
  %v2335 = vunpack.c.l.b16 %v2249
  %v2336 = vunpack.c.h.b16 %v2249
  %v2337 = vunpack.c.l.b16 %v2250
  %v2338 = vunpack.c.h.b16 %v2250
  %v2339 = vunpack.c.l.b16 %v2251
  %v2340 = vunpack.c.h.b16 %v2251
  %v2341 = vunpack.c.l.b16 %v2252
  %v2342 = vunpack.c.h.b16 %v2252
  %v2343 = vunpack.c.l.b16 %v2253
  %v2344 = vunpack.c.h.b16 %v2253
  %v2345 = vunpack.c.l.b16 %v2254
  %v2346 = vunpack.c.h.b16 %v2254
  %v2347 = vunpack.c.l.b16 %v2255
  %v2348 = vunpack.c.h.b16 %v2255
  %v2349 = vunpack.c.l.b16 %v2256
  %v2350 = vunpack.c.h.b16 %v2256
  %v2351 = vunpack.c.l.b16 %v2257
  %v2352 = vunpack.c.h.b16 %v2257
  %v2353 = vunpack.c.l.b16 %v2258
  %v2354 = vunpack.c.h.b16 %v2258
  %v2355 = vunpack.c.l.b16 %v2259
  %v2356 = vunpack.c.h.b16 %v2259
  %v2357 = vunpack.c.l.b16 %v2260
  %v2358 = vunpack.c.h.b16 %v2260
  %v2359 = vunpack.c.l.b16 %v2261
  %v2360 = vunpack.c.h.b16 %v2261
  %v2361 = vunpack.c.l.b16 %v2262
  %v2362 = vunpack.c.h.b16 %v2262
  %v2363 = vunpack.c.l.b16 %v2263
  %v2364 = vunpack.c.h.b16 %v2263
  %v2365 = vunpack.c.l.b16 %v2264
  %v2366 = vunpack.c.h.b16 %v2264
  %v2367 = vunpack.c.l.b16 %v2265
  %v2368 = vunpack.c.h.b16 %v2265
  %v2369 = vunpack.c.l.b16 %v2266
  %v2370 = vunpack.c.h.b16 %v2266
  %v2371 = vunpack.c.l.b16 %v2267
  %v2372 = vunpack.c.h.b16 %v2267
  %v2373 = vunpack.c.l.b16 %v2268
  %v2374 = vunpack.c.h.b16 %v2268
  %v2375 = vunpack.c.l.b16 %v2269
  %v2376 = vunpack.c.h.b16 %v2269
  %v2377 = vunpack.c.l.b16 %v2270
  %v2378 = vunpack.c.h.b16 %v2270
  %v2379 = vunpack.c.l.b16 %v2271
  %v2380 = vunpack.c.h.b16 %v2271
  %v2381 = vpack.c.b16 %v2321, %v2317
  %v2382 = vpack.c.b16 %v2322, %v2318
  %v2383 = vpack.c.b16 %v2323, %v2319
  %v2384 = vpack.c.b16 %v2324, %v2320
  %v2385 = vpack.c.b16 %v2329, %v2325
  %v2386 = vpack.c.b16 %v2330, %v2326
  %v2387 = vpack.c.b16 %v2331, %v2327
  %v2388 = vpack.c.b16 %v2332, %v2328
  %v2389 = vpack.c.b16 %v2337, %v2333
  %v2390 = vpack.c.b16 %v2338, %v2334
  %v2391 = vpack.c.b16 %v2339, %v2335
  %v2392 = vpack.c.b16 %v2340, %v2336
  %v2393 = vpack.c.b16 %v2345, %v2341
  %v2394 = vpack.c.b16 %v2346, %v2342
  %v2395 = vpack.c.b16 %v2347, %v2343
  %v2396 = vpack.c.b16 %v2348, %v2344
  %v2397 = vpack.c.b16 %v2353, %v2349
  %v2398 = vpack.c.b16 %v2354, %v2350
  %v2399 = vpack.c.b16 %v2355, %v2351
  %v2400 = vpack.c.b16 %v2356, %v2352
  %v2401 = vpack.c.b16 %v2361, %v2357
  %v2402 = vpack.c.b16 %v2362, %v2358
  %v2403 = vpack.c.b16 %v2363, %v2359
  %v2404 = vpack.c.b16 %v2364, %v2360
  %v2405 = vpack.c.b16 %v2369, %v2365
  %v2406 = vpack.c.b16 %v2370, %v2366
  %v2407 = vpack.c.b16 %v2371, %v2367
  %v2408 = vpack.c.b16 %v2372, %v2368
  %v2409 = vpack.c.b16 %v2377, %v2373
  %v2410 = vpack.c.b16 %v2378, %v2374
  %v2411 = vpack.c.b16 %v2379, %v2375
  %v2412 = vpack.c.b16 %v2380, %v2376
  %2445 = vmatprep.subr.bf16.mxu0 %v2382
  %2446 = vmatpush1.bf16.msra.mxu0 %v2381
  %2447 = vmatprep.subr.bf16.mxu0 %v2386
  %2448 = vmatpush1.bf16.msra.mxu0 %v2385
  %2449 = vmatprep.subr.bf16.mxu0 %v2390
  %2450 = vmatpush1.bf16.msra.mxu0 %v2389
  %2451 = vmatprep.subr.bf16.mxu0 %v2394
  %2452 = vmatpush1.bf16.msra.mxu0 %v2393
  %2453 = vmatprep.subr.bf16.mxu0 %v2398
  %2454 = vmatpush1.bf16.msra.mxu0 %v2397
  %2455 = vmatprep.subr.bf16.mxu0 %v2402
  %2456 = vmatpush1.bf16.msra.mxu0 %v2401
  %2457 = vmatprep.subr.bf16.mxu0 %v2406
  %2458 = vmatpush1.bf16.msra.mxu0 %v2405
  %2459 = vmatprep.subr.bf16.mxu0 %v2410
  %2460 = vmatpush1.bf16.msra.mxu0 %v2409
  %2461 = vmatprep.subr.bf16.mxu0 0
  %2462 = vmatpush1.bf16.msra.mxu0 0
  %2463 = vmatprep.subr.bf16.mxu0 0
  %2464 = vmatpush1.bf16.msra.mxu0 0
  %2465 = vmatprep.subr.bf16.mxu0 0
  %2466 = vmatpush1.bf16.msra.mxu0 0
  %2467 = vmatprep.subr.bf16.mxu0 0
  %2468 = vmatpush1.bf16.msra.mxu0 0
  %2469 = vmatprep.subr.bf16.mxu0 0
  %2470 = vmatpush1.bf16.msra.mxu0 0
  %2471 = vmatprep.subr.bf16.mxu0 0
  %2472 = vmatpush1.bf16.msra.mxu0 0
  %2473 = vmatprep.subr.bf16.mxu0 0
  %2474 = vmatpush1.bf16.msra.mxu0 0
  %2475 = vmatprep.subr.bf16.mxu0 0
  %2476 = vmatpush1.bf16.msra.mxu0 0
  %2477 = vmatprep.mubr.bf16.mxu0 0
  %2478 = vmatmul.mubr.bf16.gmra.mrb[0].mxu0 %v2239
  %v2479 = vpop.f32.mrb[0].mxu0
  %v2480 = vadd.f32 %v2277, %v2479
  %v2481 = vpop.f32.mrb[0].mxu0
  %v2482 = vadd.f32 %v2278, %v2481
  %v2483 = vpop.f32.mrb[0].mxu0
  %v2484 = vadd.f32 %v2281, %v2483
  %v2485 = vpop.f32.mrb[0].mxu0
  %v2486 = vadd.f32 %v2282, %v2485
  %2487 = vdwg.mxu0
  %2488 = vmatprep.subr.bf16.mxu0 %v2384
  %2489 = vmatpush1.bf16.msra.mxu0 %v2383
  %2490 = vmatprep.subr.bf16.mxu0 %v2388
  %2491 = vmatpush1.bf16.msra.mxu0 %v2387
  %2492 = vmatprep.subr.bf16.mxu0 %v2392
  %2493 = vmatpush1.bf16.msra.mxu0 %v2391
  %2494 = vmatprep.subr.bf16.mxu0 %v2396
  %2495 = vmatpush1.bf16.msra.mxu0 %v2395
  %2496 = vmatprep.subr.bf16.mxu0 %v2400
  %2497 = vmatpush1.bf16.msra.mxu0 %v2399
  %2498 = vmatprep.subr.bf16.mxu0 %v2404
  %2499 = vmatpush1.bf16.msra.mxu0 %v2403
  %2500 = vmatprep.subr.bf16.mxu0 %v2408
  %2501 = vmatpush1.bf16.msra.mxu0 %v2407
  %2502 = vmatprep.subr.bf16.mxu0 %v2412
  %2503 = vmatpush1.bf16.msra.mxu0 %v2411
  %2504 = vmatprep.subr.bf16.mxu0 0
  %2505 = vmatpush1.bf16.msra.mxu0 0
  %2506 = vmatprep.subr.bf16.mxu0 0
  %2507 = vmatpush1.bf16.msra.mxu0 0
  %2508 = vmatprep.subr.bf16.mxu0 0
  %2509 = vmatpush1.bf16.msra.mxu0 0
  %2510 = vmatprep.subr.bf16.mxu0 0
  %2511 = vmatpush1.bf16.msra.mxu0 0
  %2512 = vmatprep.subr.bf16.mxu0 0
  %2513 = vmatpush1.bf16.msra.mxu0 0
  %2514 = vmatprep.subr.bf16.mxu0 0
  %2515 = vmatpush1.bf16.msra.mxu0 0
  %2516 = vmatprep.subr.bf16.mxu0 0
  %2517 = vmatpush1.bf16.msra.mxu0 0
  %2518 = vmatprep.subr.bf16.mxu0 0
  %2519 = vmatpush1.bf16.msra.mxu0 0
  %2520 = vmatprep.mubr.bf16.mxu0 0
  %2521 = vmatmul.mubr.bf16.gmra.mrb[0].mxu0 %v2239
  %v2522 = vpop.f32.mrb[0].mxu0
  %v2523 = vadd.f32 %v2279, %v2522
  %v2524 = vpop.f32.mrb[0].mxu0
  %v2525 = vadd.f32 %v2280, %v2524
  %v2526 = vpop.f32.mrb[0].mxu0
  %v2527 = vadd.f32 %v2283, %v2526
  %v2528 = vpop.f32.mrb[0].mxu0
  %v2529 = vadd.f32 %v2284, %v2528
  %2530 = vdwg.mxu0
  %v2531 = vld [vmem:[%s1] sm:$0xf]
  %v2533 = vlaneseq
  %v2534 = vshrl.u32 %v2533, 7
  %v2535 = vsub.s32 0, %v2534
  %v2536 = vrot.slane %v2531, %v2535
  %v2537 = vlaneseq
  %v2538 = vshrl.u32 %v2537, 7
  %v2539 = vsub.s32 1, %v2538
  %v2540 = vrot.slane %v2531, %v2539
  %v2541 = vlaneseq
  %v2542 = vshrl.u32 %v2541, 7
  %v2543 = vsub.s32 2, %v2542
  %v2544 = vrot.slane %v2531, %v2543
  %v2545 = vlaneseq
  %v2546 = vshrl.u32 %v2545, 7
  %v2547 = vsub.s32 3, %v2546
  %v2548 = vrot.slane %v2531, %v2547
  %v2553 = vadd.f32 %v2480, %v2536
  %v2554 = vadd.f32 %v2482, %v2540
  %v2555 = vadd.f32 %v2523, %v2544
  %v2556 = vadd.f32 %v2525, %v2548
  %v2557 = vadd.f32 %v2484, %v2536
  %v2558 = vadd.f32 %v2486, %v2540
  %v2559 = vadd.f32 %v2527, %v2544
  %v2560 = vadd.f32 %v2529, %v2548
  %v2561 = vmul.f32 %v2553, 0.5
  %v2562 = vmul.f32 %v2557, 0.5
  %v2563 = vtanh.pop %v2561
  %v2564 = vtanh.pop %v2562
  %v2565 = vadd.f32 %v2563, 1.0
  %v2566 = vadd.f32 %v2564, 1.0
  %v2567 = vmul.f32 %v2565, 0.5
  %v2568 = vmul.f32 %v2566, 0.5
  %v2569 = vmul.f32 %v2554, 0.5
  %v2570 = vmul.f32 %v2558, 0.5
  %v2571 = vtanh.pop %v2569
  %v2572 = vtanh.pop %v2570
  %v2573 = vadd.f32 %v2571, 1.0
  %v2574 = vadd.f32 %v2572, 1.0
  %v2575 = vmul.f32 %v2573, 0.5
  %v2576 = vmul.f32 %v2574, 0.5
  %v2577 = vtanh.pop %v2555
  %v2578 = vtanh.pop %v2559
  %v2579 = vmul.f32 %v2556, 0.5
  %v2580 = vmul.f32 %v2560, 0.5
  %v2581 = vtanh.pop %v2579
  %v2582 = vtanh.pop %v2580
  %v2583 = vadd.f32 %v2581, 1.0
  %v2584 = vadd.f32 %v2582, 1.0
  %v2585 = vmul.f32 %v2583, 0.5
  %v2586 = vmul.f32 %v2584, 0.5
  %v2587 = vmul.f32 %v2575, %v2237
  %v2588 = vmul.f32 %v2576, %v2238
  %v2589 = vmul.f32 %v2567, %v2577
  %v2590 = vmul.f32 %v2568, %v2578
  %v2591 = vadd.f32 %v2587, %v2589
  %v2592 = vadd.f32 %v2588, %v2590
  %v2593 = vtanh.pop %v2591
  %v2594 = vtanh.pop %v2592
  %v2595 = vmul.f32 %v2585, %v2593
  %v2596 = vmul.f32 %v2586, %v2594
  %2597 = vst [vmem:[#allocation3] sm:$0xff] %v2591
  %2598 = vst [vmem:[#allocation3 + $0x8] sm:$0xff] %v2592
  %2599 = vst [vmem:[#allocation2] sm:$0xff] %v2595
  %2600 = vst [vmem:[#allocation2 + $0x8] sm:$0xff] %v2596
  %s2601 = scalar_lea.vmem %s3, 96
  %2602 = vst [vmem:[%s2601] sm:$0xff] %v2595
  %2603 = vst [vmem:[%s2601 + $0x8] sm:$0xff] %v2596
  %v2604 = vld [vmem:[#allocation2] sm:$0xff]
  %v2605 = vld [vmem:[#allocation2 + $0x8] sm:$0xff]
  %v2606 = vld [vmem:[#allocation3] sm:$0xff]
  %v2607 = vld [vmem:[#allocation3 + $0x8] sm:$0xff]
  %v2608 = vpack.c.bf16 %v2605, %v2604
  %v2609 = vld [vmem:[%s2] sm:$0xff]
  %v2610 = vld [vmem:[%s2 + $0x8] sm:$0xff]
  %v2611 = vld [vmem:[%s2 + $0x10] sm:$0xff]
  %v2612 = vld [vmem:[%s2 + $0x18] sm:$0xff]
  %v2613 = vld [vmem:[%s2 + $0x20] sm:$0xff]
  %v2614 = vld [vmem:[%s2 + $0x28] sm:$0xff]
  %v2615 = vld [vmem:[%s2 + $0x30] sm:$0xff]
  %v2616 = vld [vmem:[%s2 + $0x38] sm:$0xff]
  %v2617 = vld [vmem:[%s2 + $0x40] sm:$0xff]
  %v2618 = vld [vmem:[%s2 + $0x48] sm:$0xff]
  %v2619 = vld [vmem:[%s2 + $0x50] sm:$0xff]
  %v2620 = vld [vmem:[%s2 + $0x58] sm:$0xff]
  %v2621 = vld [vmem:[%s2 + $0x60] sm:$0xff]
  %v2622 = vld [vmem:[%s2 + $0x68] sm:$0xff]
  %v2623 = vld [vmem:[%s2 + $0x70] sm:$0xff]
  %v2624 = vld [vmem:[%s2 + $0x78] sm:$0xff]
  %v2625 = vld [vmem:[%s2 + $0x80] sm:$0xff]
  %v2626 = vld [vmem:[%s2 + $0x88] sm:$0xff]
  %v2627 = vld [vmem:[%s2 + $0x90] sm:$0xff]
  %v2628 = vld [vmem:[%s2 + $0x98] sm:$0xff]
  %v2629 = vld [vmem:[%s2 + $0xa0] sm:$0xff]
  %v2630 = vld [vmem:[%s2 + $0xa8] sm:$0xff]
  %v2631 = vld [vmem:[%s2 + $0xb0] sm:$0xff]
  %v2632 = vld [vmem:[%s2 + $0xb8] sm:$0xff]
  %v2633 = vld [vmem:[%s2 + $0xc0] sm:$0xff]
  %v2634 = vld [vmem:[%s2 + $0xc8] sm:$0xff]
  %v2635 = vld [vmem:[%s2 + $0xd0] sm:$0xff]
  %v2636 = vld [vmem:[%s2 + $0xd8] sm:$0xff]
  %v2637 = vld [vmem:[%s2 + $0xe0] sm:$0xff]
  %v2638 = vld [vmem:[%s2 + $0xe8] sm:$0xff]
  %v2639 = vld [vmem:[%s2 + $0xf0] sm:$0xff]
  %v2640 = vld [vmem:[%s2 + $0xf8] sm:$0xff]
  %s2641 = scalar_lea.vmem %s0, 224
  %v2642 = vld [vmem:[%s2641] sm:$0xff]
  %v2643 = vld [vmem:[%s2641 + $0x8] sm:$0xff]
  %v2644 = vld [vmem:[%s2641 + $0x10] sm:$0xff]
  %v2645 = vld [vmem:[%s2641 + $0x18] sm:$0xff]
  %v2646 = vunpack.c.l.bf16 %v2642
  %v2647 = vunpack.c.h.bf16 %v2642
  %v2648 = vunpack.c.l.bf16 %v2643
  %v2649 = vunpack.c.h.bf16 %v2643
  %v2650 = vunpack.c.l.bf16 %v2644
  %v2651 = vunpack.c.h.bf16 %v2644
  %v2652 = vunpack.c.l.bf16 %v2645
  %v2653 = vunpack.c.h.bf16 %v2645
  %v2686 = vunpack.c.l.b16 %v2609
  %v2687 = vunpack.c.h.b16 %v2609
  %v2688 = vunpack.c.l.b16 %v2610
  %v2689 = vunpack.c.h.b16 %v2610
  %v2690 = vunpack.c.l.b16 %v2611
  %v2691 = vunpack.c.h.b16 %v2611
  %v2692 = vunpack.c.l.b16 %v2612
  %v2693 = vunpack.c.h.b16 %v2612
  %v2694 = vunpack.c.l.b16 %v2613
  %v2695 = vunpack.c.h.b16 %v2613
  %v2696 = vunpack.c.l.b16 %v2614
  %v2697 = vunpack.c.h.b16 %v2614
  %v2698 = vunpack.c.l.b16 %v2615
  %v2699 = vunpack.c.h.b16 %v2615
  %v2700 = vunpack.c.l.b16 %v2616
  %v2701 = vunpack.c.h.b16 %v2616
  %v2702 = vunpack.c.l.b16 %v2617
  %v2703 = vunpack.c.h.b16 %v2617
  %v2704 = vunpack.c.l.b16 %v2618
  %v2705 = vunpack.c.h.b16 %v2618
  %v2706 = vunpack.c.l.b16 %v2619
  %v2707 = vunpack.c.h.b16 %v2619
  %v2708 = vunpack.c.l.b16 %v2620
  %v2709 = vunpack.c.h.b16 %v2620
  %v2710 = vunpack.c.l.b16 %v2621
  %v2711 = vunpack.c.h.b16 %v2621
  %v2712 = vunpack.c.l.b16 %v2622
  %v2713 = vunpack.c.h.b16 %v2622
  %v2714 = vunpack.c.l.b16 %v2623
  %v2715 = vunpack.c.h.b16 %v2623
  %v2716 = vunpack.c.l.b16 %v2624
  %v2717 = vunpack.c.h.b16 %v2624
  %v2718 = vunpack.c.l.b16 %v2625
  %v2719 = vunpack.c.h.b16 %v2625
  %v2720 = vunpack.c.l.b16 %v2626
  %v2721 = vunpack.c.h.b16 %v2626
  %v2722 = vunpack.c.l.b16 %v2627
  %v2723 = vunpack.c.h.b16 %v2627
  %v2724 = vunpack.c.l.b16 %v2628
  %v2725 = vunpack.c.h.b16 %v2628
  %v2726 = vunpack.c.l.b16 %v2629
  %v2727 = vunpack.c.h.b16 %v2629
  %v2728 = vunpack.c.l.b16 %v2630
  %v2729 = vunpack.c.h.b16 %v2630
  %v2730 = vunpack.c.l.b16 %v2631
  %v2731 = vunpack.c.h.b16 %v2631
  %v2732 = vunpack.c.l.b16 %v2632
  %v2733 = vunpack.c.h.b16 %v2632
  %v2734 = vunpack.c.l.b16 %v2633
  %v2735 = vunpack.c.h.b16 %v2633
  %v2736 = vunpack.c.l.b16 %v2634
  %v2737 = vunpack.c.h.b16 %v2634
  %v2738 = vunpack.c.l.b16 %v2635
  %v2739 = vunpack.c.h.b16 %v2635
  %v2740 = vunpack.c.l.b16 %v2636
  %v2741 = vunpack.c.h.b16 %v2636
  %v2742 = vunpack.c.l.b16 %v2637
  %v2743 = vunpack.c.h.b16 %v2637
  %v2744 = vunpack.c.l.b16 %v2638
  %v2745 = vunpack.c.h.b16 %v2638
  %v2746 = vunpack.c.l.b16 %v2639
  %v2747 = vunpack.c.h.b16 %v2639
  %v2748 = vunpack.c.l.b16 %v2640
  %v2749 = vunpack.c.h.b16 %v2640
  %v2750 = vpack.c.b16 %v2690, %v2686
  %v2751 = vpack.c.b16 %v2691, %v2687
  %v2752 = vpack.c.b16 %v2692, %v2688
  %v2753 = vpack.c.b16 %v2693, %v2689
  %v2754 = vpack.c.b16 %v2698, %v2694
  %v2755 = vpack.c.b16 %v2699, %v2695
  %v2756 = vpack.c.b16 %v2700, %v2696
  %v2757 = vpack.c.b16 %v2701, %v2697
  %v2758 = vpack.c.b16 %v2706, %v2702
  %v2759 = vpack.c.b16 %v2707, %v2703
  %v2760 = vpack.c.b16 %v2708, %v2704
  %v2761 = vpack.c.b16 %v2709, %v2705
  %v2762 = vpack.c.b16 %v2714, %v2710
  %v2763 = vpack.c.b16 %v2715, %v2711
  %v2764 = vpack.c.b16 %v2716, %v2712
  %v2765 = vpack.c.b16 %v2717, %v2713
  %v2766 = vpack.c.b16 %v2722, %v2718
  %v2767 = vpack.c.b16 %v2723, %v2719
  %v2768 = vpack.c.b16 %v2724, %v2720
  %v2769 = vpack.c.b16 %v2725, %v2721
  %v2770 = vpack.c.b16 %v2730, %v2726
  %v2771 = vpack.c.b16 %v2731, %v2727
  %v2772 = vpack.c.b16 %v2732, %v2728
  %v2773 = vpack.c.b16 %v2733, %v2729
  %v2774 = vpack.c.b16 %v2738, %v2734
  %v2775 = vpack.c.b16 %v2739, %v2735
  %v2776 = vpack.c.b16 %v2740, %v2736
  %v2777 = vpack.c.b16 %v2741, %v2737
  %v2778 = vpack.c.b16 %v2746, %v2742
  %v2779 = vpack.c.b16 %v2747, %v2743
  %v2780 = vpack.c.b16 %v2748, %v2744
  %v2781 = vpack.c.b16 %v2749, %v2745
  %2814 = vmatprep.subr.bf16.mxu0 %v2751
  %2815 = vmatpush1.bf16.msra.mxu0 %v2750
  %2816 = vmatprep.subr.bf16.mxu0 %v2755
  %2817 = vmatpush1.bf16.msra.mxu0 %v2754
  %2818 = vmatprep.subr.bf16.mxu0 %v2759
  %2819 = vmatpush1.bf16.msra.mxu0 %v2758
  %2820 = vmatprep.subr.bf16.mxu0 %v2763
  %2821 = vmatpush1.bf16.msra.mxu0 %v2762
  %2822 = vmatprep.subr.bf16.mxu0 %v2767
  %2823 = vmatpush1.bf16.msra.mxu0 %v2766
  %2824 = vmatprep.subr.bf16.mxu0 %v2771
  %2825 = vmatpush1.bf16.msra.mxu0 %v2770
  %2826 = vmatprep.subr.bf16.mxu0 %v2775
  %2827 = vmatpush1.bf16.msra.mxu0 %v2774
  %2828 = vmatprep.subr.bf16.mxu0 %v2779
  %2829 = vmatpush1.bf16.msra.mxu0 %v2778
  %2830 = vmatprep.subr.bf16.mxu0 0
  %2831 = vmatpush1.bf16.msra.mxu0 0
  %2832 = vmatprep.subr.bf16.mxu0 0
  %2833 = vmatpush1.bf16.msra.mxu0 0
  %2834 = vmatprep.subr.bf16.mxu0 0
  %2835 = vmatpush1.bf16.msra.mxu0 0
  %2836 = vmatprep.subr.bf16.mxu0 0
  %2837 = vmatpush1.bf16.msra.mxu0 0
  %2838 = vmatprep.subr.bf16.mxu0 0
  %2839 = vmatpush1.bf16.msra.mxu0 0
  %2840 = vmatprep.subr.bf16.mxu0 0
  %2841 = vmatpush1.bf16.msra.mxu0 0
  %2842 = vmatprep.subr.bf16.mxu0 0
  %2843 = vmatpush1.bf16.msra.mxu0 0
  %2844 = vmatprep.subr.bf16.mxu0 0
  %2845 = vmatpush1.bf16.msra.mxu0 0
  %2846 = vmatprep.mubr.bf16.mxu0 0
  %2847 = vmatmul.mubr.bf16.gmra.mrb[0].mxu0 %v2608
  %v2848 = vpop.f32.mrb[0].mxu0
  %v2849 = vadd.f32 %v2646, %v2848
  %v2850 = vpop.f32.mrb[0].mxu0
  %v2851 = vadd.f32 %v2647, %v2850
  %v2852 = vpop.f32.mrb[0].mxu0
  %v2853 = vadd.f32 %v2650, %v2852
  %v2854 = vpop.f32.mrb[0].mxu0
  %v2855 = vadd.f32 %v2651, %v2854
  %2856 = vdwg.mxu0
  %2857 = vmatprep.subr.bf16.mxu0 %v2753
  %2858 = vmatpush1.bf16.msra.mxu0 %v2752
  %2859 = vmatprep.subr.bf16.mxu0 %v2757
  %2860 = vmatpush1.bf16.msra.mxu0 %v2756
  %2861 = vmatprep.subr.bf16.mxu0 %v2761
  %2862 = vmatpush1.bf16.msra.mxu0 %v2760
  %2863 = vmatprep.subr.bf16.mxu0 %v2765
  %2864 = vmatpush1.bf16.msra.mxu0 %v2764
  %2865 = vmatprep.subr.bf16.mxu0 %v2769
  %2866 = vmatpush1.bf16.msra.mxu0 %v2768
  %2867 = vmatprep.subr.bf16.mxu0 %v2773
  %2868 = vmatpush1.bf16.msra.mxu0 %v2772
  %2869 = vmatprep.subr.bf16.mxu0 %v2777
  %2870 = vmatpush1.bf16.msra.mxu0 %v2776
  %2871 = vmatprep.subr.bf16.mxu0 %v2781
  %2872 = vmatpush1.bf16.msra.mxu0 %v2780
  %2873 = vmatprep.subr.bf16.mxu0 0
  %2874 = vmatpush1.bf16.msra.mxu0 0
  %2875 = vmatprep.subr.bf16.mxu0 0
  %2876 = vmatpush1.bf16.msra.mxu0 0
  %2877 = vmatprep.subr.bf16.mxu0 0
  %2878 = vmatpush1.bf16.msra.mxu0 0
  %2879 = vmatprep.subr.bf16.mxu0 0
  %2880 = vmatpush1.bf16.msra.mxu0 0
  %2881 = vmatprep.subr.bf16.mxu0 0
  %2882 = vmatpush1.bf16.msra.mxu0 0
  %2883 = vmatprep.subr.bf16.mxu0 0
  %2884 = vmatpush1.bf16.msra.mxu0 0
  %2885 = vmatprep.subr.bf16.mxu0 0
  %2886 = vmatpush1.bf16.msra.mxu0 0
  %2887 = vmatprep.subr.bf16.mxu0 0
  %2888 = vmatpush1.bf16.msra.mxu0 0
  %2889 = vmatprep.mubr.bf16.mxu0 0
  %2890 = vmatmul.mubr.bf16.gmra.mrb[0].mxu0 %v2608
  %v2891 = vpop.f32.mrb[0].mxu0
  %v2892 = vadd.f32 %v2648, %v2891
  %v2893 = vpop.f32.mrb[0].mxu0
  %v2894 = vadd.f32 %v2649, %v2893
  %v2895 = vpop.f32.mrb[0].mxu0
  %v2896 = vadd.f32 %v2652, %v2895
  %v2897 = vpop.f32.mrb[0].mxu0
  %v2898 = vadd.f32 %v2653, %v2897
  %2899 = vdwg.mxu0
  %v2900 = vld [vmem:[%s1] sm:$0xf]
  %v2902 = vlaneseq
  %v2903 = vshrl.u32 %v2902, 7
  %v2904 = vsub.s32 0, %v2903
  %v2905 = vrot.slane %v2900, %v2904
  %v2906 = vlaneseq
  %v2907 = vshrl.u32 %v2906, 7
  %v2908 = vsub.s32 1, %v2907
  %v2909 = vrot.slane %v2900, %v2908
  %v2910 = vlaneseq
  %v2911 = vshrl.u32 %v2910, 7
  %v2912 = vsub.s32 2, %v2911
  %v2913 = vrot.slane %v2900, %v2912
  %v2914 = vlaneseq
  %v2915 = vshrl.u32 %v2914, 7
  %v2916 = vsub.s32 3, %v2915
  %v2917 = vrot.slane %v2900, %v2916
  %v2922 = vadd.f32 %v2849, %v2905
  %v2923 = vadd.f32 %v2851, %v2909
  %v2924 = vadd.f32 %v2892, %v2913
  %v2925 = vadd.f32 %v2894, %v2917
  %v2926 = vadd.f32 %v2853, %v2905
  %v2927 = vadd.f32 %v2855, %v2909
  %v2928 = vadd.f32 %v2896, %v2913
  %v2929 = vadd.f32 %v2898, %v2917
  %v2930 = vmul.f32 %v2922, 0.5
  %v2931 = vmul.f32 %v2926, 0.5
  %v2932 = vtanh.pop %v2930
  %v2933 = vtanh.pop %v2931
  %v2934 = vadd.f32 %v2932, 1.0
  %v2935 = vadd.f32 %v2933, 1.0
  %v2936 = vmul.f32 %v2934, 0.5
  %v2937 = vmul.f32 %v2935, 0.5
  %v2938 = vmul.f32 %v2923, 0.5
  %v2939 = vmul.f32 %v2927, 0.5
  %v2940 = vtanh.pop %v2938
  %v2941 = vtanh.pop %v2939
  %v2942 = vadd.f32 %v2940, 1.0
  %v2943 = vadd.f32 %v2941, 1.0
  %v2944 = vmul.f32 %v2942, 0.5
  %v2945 = vmul.f32 %v2943, 0.5
  %v2946 = vtanh.pop %v2924
  %v2947 = vtanh.pop %v2928
  %v2948 = vmul.f32 %v2925, 0.5
  %v2949 = vmul.f32 %v2929, 0.5
  %v2950 = vtanh.pop %v2948
  %v2951 = vtanh.pop %v2949
  %v2952 = vadd.f32 %v2950, 1.0
  %v2953 = vadd.f32 %v2951, 1.0
  %v2954 = vmul.f32 %v2952, 0.5
  %v2955 = vmul.f32 %v2953, 0.5
  %v2956 = vmul.f32 %v2944, %v2606
  %v2957 = vmul.f32 %v2945, %v2607
  %v2958 = vmul.f32 %v2936, %v2946
  %v2959 = vmul.f32 %v2937, %v2947
  %v2960 = vadd.f32 %v2956, %v2958
  %v2961 = vadd.f32 %v2957, %v2959
  %v2962 = vtanh.pop %v2960
  %v2963 = vtanh.pop %v2961
  %v2964 = vmul.f32 %v2954, %v2962
  %v2965 = vmul.f32 %v2955, %v2963
  %2966 = vst [vmem:[#allocation3] sm:$0xff] %v2960
  %2967 = vst [vmem:[#allocation3 + $0x8] sm:$0xff] %v2961
  %2968 = vst [vmem:[#allocation2] sm:$0xff] %v2964
  %2969 = vst [vmem:[#allocation2 + $0x8] sm:$0xff] %v2965
  %s2970 = scalar_lea.vmem %s3, 112
  %2971 = vst [vmem:[%s2970] sm:$0xff] %v2964
  %2972 = vst [vmem:[%s2970 + $0x8] sm:$0xff] %v2965
  // Predicated region
  $region18: #{encoder_forward.1} parent=0 // pred_check
    _
  $region19: #{encoder_forward.1} parent=0 // pred_check_branch
    %2974 = sbr.rel (0) target = $region21
  $region20: #{encoder_forward.1} parent=0 // pred_region
    _
  $region21: #{encoder_forward.1} parent=0 // pred_fallthru
    _
  // Predicated region
  $region22: #{encoder_forward.1} parent=0 // pred_check
    _
  $region23: #{encoder_forward.1} parent=0 // pred_check_branch
    %2976 = sbr.rel (0) target = $region25
  $region24: #{encoder_forward.1} parent=0 // pred_region
    _
  $region25: #{encoder_forward.1} parent=0 // pred_fallthru
    _

</llo_original>
